<compile_context>
chip_gen: v5e
topology: v5e:2x2
jax: 0.10.0
libtpu: 0.0.40
codegen_flags: <defaults>
</compile_context>

<pallas_src>
import functools

import jax
import jax.numpy as jnp
import numpy as np
from jax import lax
from jax.experimental import pallas as pl
from jax.experimental.pallas import tpu as pltpu


def _round_up(x, m):
    return ((x + m - 1) // m) * m


@functools.lru_cache(maxsize=None)
def _gather_matmul_precision():
    """HIGHEST-precision f32 matmul if the Mosaic lowering supports it."""
    def _probe_kernel(x_ref, y_ref, o_ref):
        o_ref[...] = jnp.dot(x_ref[...], y_ref[...],
                             preferred_element_type=jnp.float32,
                             precision=lax.Precision.HIGHEST)

    try:
        x = jnp.zeros((8, 128), jnp.float32)
        y = jnp.zeros((128, 128), jnp.float32)
        out = pl.pallas_call(
            _probe_kernel,
            out_shape=jax.ShapeDtypeStruct((8, 128), jnp.float32),
        )(x, y)
        jax.block_until_ready(out)
        return lax.Precision.HIGHEST
    except Exception:
        return None


def _vecint_kernel(base_ref, vec_ref, out_ref, vmat_ref, *,
                   nsteps, D, H, W, S_pad, chunk, K, precision):
    """base_ref: (3, S_pad) identity grid coords (x, y, z rows), zero padded.
       vec_ref : (1, 3, S_pad) input velocity field block (one batch element).
       out_ref : (1, 3, S_pad) running / final integrated displacement field.
       vmat_ref: (3, R, K) VMEM scratch, start-of-step field in gatherable
                 layout: vmat[c, r, l] = field[c, K*r + l]."""
    R = S_pad // K
    n_chunks = S_pad // chunk
    shift = K.bit_length() - 1          # log2(K)
    f32 = jnp.float32
    scale = f32(1.0 / (2.0 ** nsteps))

    # Running field lives directly in the output VMEM block.
    out_ref[0] = vec_ref[0] * scale

    # Hoisted iotas: built exactly once (JAX does not CSE broadcast_in_dim).
    lane_iota = lax.broadcasted_iota(jnp.int32, (K, chunk), 0)
    row_iota = lax.broadcasted_iota(jnp.int32, (R, chunk), 0)

    # Per-channel clamp limits, channel order x/W, y/H, z/D.
    ch = lax.broadcasted_iota(jnp.int32, (3, 1), 0)
    lim_i = jnp.where(ch == 0, W - 1,
                      jnp.where(ch == 1, H - 1, D - 1)).astype(jnp.int32)
    lim_f = lim_i.astype(f32)

    def step(_, carry):
        # Snapshot the start-of-step field in gatherable layout.
        # TODO(synk): for large R replace this per-row store loop with a bulk
        # (3, S_pad) -> (3, R, K) relayout once Mosaic reshape support for this
        # pattern is confirmed; also roll the chunk loop (dynamic pl.ds) when
        # n_chunks is large to bound program size.
        for r in range(R):
            vmat_ref[:, r, :] = out_ref[0, :, K * r:K * (r + 1)]

        # Per-chunk: coordinate math, 8-corner MXU gather, in-place update.
        for ci in range(n_chunks):
            sl = slice(ci * chunk, (ci + 1) * chunk)
            v = out_ref[0, :, sl]                       # start-of-step field chunk
            # Sample position = identity grid + flow, border clamp
            # (align_corners=True, padding_mode='border').
            pos = jnp.clip(base_ref[:, sl] + v, 0.0, lim_f)
            p0f = jnp.floor(pos)
            frac = pos - p0f
            i0 = p0f.astype(jnp.int32)
            i1 = jnp.minimum(i0 + 1, lim_i)

            x0, y0, z0 = i0[0:1], i0[1:2], i0[2:3]
            x1, y1, z1 = i1[0:1], i1[1:2], i1[2:3]
            tx, ty, tz = frac[0:1], frac[1:2], frac[2:3]

            acc = [jnp.zeros((1, chunk), f32) for _ in range(3)]
            for zc, wz in ((z0, 1.0 - tz), (z1, tz)):
                for yc, wy in ((y0, 1.0 - ty), (y1, ty)):
                    for xc, wx in ((x0, 1.0 - tx), (x1, tx)):
                        idx = zc * (H * W) + yc * W + xc          # (1, chunk)
                        wgt = wz * wy * wx                        # (1, chunk)
                        lane = jnp.bitwise_and(idx, K - 1)        # idx % K
                        rowi = jnp.right_shift(idx, shift)        # idx // K
                        # Lane one-hot: ohl[l, p] = (lane(p) == l).
                        ohl = (lane_iota == lane).astype(f32)     # (K, chunk)
                        # Row mask with the trilinear weight folded in.
                        wrow = jnp.where(row_iota == rowi, wgt, 0.0)  # (R, chunk)
                        for c in range(3):
                            # MXU gather over the lane part:
                            #   a[r, p] = field[c, K*r + lane(p)]
                            a = jnp.dot(vmat_ref[c], ohl,
                                        preferred_element_type=f32,
                                        precision=precision)      # (R, chunk)
                            # Row select + weight + reduce on VPU/XLU.
                            acc[c] = acc[c] + jnp.sum(a * wrow, axis=0,
                                                      keepdims=True)

            # vec = vec + transformer(vec, vec), updated in place per chunk.
            out_ref[0, :, sl] = v + jnp.concatenate(acc, axis=0)
        return carry

    # Non-unrolled: the per-step body is long, cross-step scheduling gains are
    # negligible and unrolling would explode program size for larger nsteps.
    lax.fori_loop(0, nsteps, step, 0)


def vecint_pallas(vec, nsteps):
    """vec: (N, 3, D, H, W) float32 velocity field -> integrated field (same shape)."""
    N, C, D, H, W = vec.shape
    assert C == 3, "VecInt kernel assumes a 3-D displacement field (3 channels)"
    assert nsteps >= 0
    S = D * H * W

    # ---- tiling parameters ---------------------------------------------------
    # K: width of one row of the gatherable layout / depth of the lane one-hot.
    #    256 fills the 256-wide MXU of v6e/v7x and halves the row-mask work;
    #    tiny volumes stay at 128.  (Affects performance only, not semantics.)
    K = 256 if S >= 2048 else 128
    S_pad = _round_up(S, K)
    R = S_pad // K

    # chunk: output voxels per inner tile.  Budget the per-chunk intermediates
    # (3 x (R, chunk) gather results + (K, chunk) one-hot) to ~<1.5 MiB, keep
    # it lane-dense (multiple of K), and make it divide S_pad exactly.
    budget_bytes = (3 * 1024 * 1024) // 2
    cap = max(K, min(2048, S_pad,
                     (budget_bytes // (4 * (3 * R + K))) // K * K))
    chunk = K
    for c in range(cap // K, 0, -1):
        if S_pad % (c * K) == 0:
            chunk = c * K
            break

    vec_flat = vec.reshape(N, C, S).astype(jnp.float32)

    # Identity grid (flattened): row0 = x (W-axis), row1 = y (H), row2 = z (D).
    zz, yy, xx = jnp.meshgrid(
        jnp.arange(D, dtype=jnp.float32),
        jnp.arange(H, dtype=jnp.float32),
        jnp.arange(W, dtype=jnp.float32),
        indexing="ij",
    )
    base = jnp.stack(
        [xx.reshape(-1), yy.reshape(-1), zz.reshape(-1)], axis=0
    ).astype(jnp.float32)                                     # (3, S)

    if S_pad != S:
        vec_flat = jnp.pad(vec_flat, ((0, 0), (0, 0), (0, S_pad - S)))
        base = jnp.pad(base, ((0, 0), (0, S_pad - S)))

    # VMEM budget from the actual footprint: base x2 (double buffered) +
    # vec x2 + out x2 + vmat snapshot, plus headroom for chunk temporaries;
    # clamped to the chip's capacity (generation-aware when queryable).
    field_bytes = 3 * S_pad * 4
    try:
        vmem_cap = int(pltpu.get_tpu_info().vmem_capacity_bytes)
    except Exception:
        vmem_cap = 64 * 1024 * 1024
    vmem_limit = min(int(0.85 * vmem_cap),
                     max(32 * 1024 * 1024, 7 * field_bytes + 16 * 1024 * 1024))

    kernel = functools.partial(
        _vecint_kernel, nsteps=nsteps, D=D, H=H, W=W,
        S_pad=S_pad, chunk=chunk, K=K, precision=_gather_matmul_precision())

    # TODO(synk): for N == 1 on v7x, split output chunks across the two
    # TensorCores (core_map) and exchange only the updated half-field plus a
    # core barrier between squaring steps.
    out = pl.pallas_call(
        kernel,
        out_shape=jax.ShapeDtypeStruct((N, C, S_pad), jnp.float32),
        grid_spec=pltpu.PrefetchScalarGridSpec(
            num_scalar_prefetch=0,
            grid=(N,),
            in_specs=[
                pl.BlockSpec((C, S_pad), lambda n: (0, 0)),        # identity grid
                pl.BlockSpec((1, C, S_pad), lambda n: (n, 0, 0)),  # velocity field
            ],
            out_specs=pl.BlockSpec((1, C, S_pad), lambda n: (n, 0, 0)),
            scratch_shapes=[
                pltpu.VMEM((C, S_pad // K, K), jnp.float32),  # gatherable snapshot
            ],
        ),
        compiler_params=pltpu.CompilerParams(
            dimension_semantics=("parallel",),
            vmem_limit_bytes=vmem_limit,
        ),
    )(base, vec_flat)

    return out[:, :, :S].reshape(N, C, D, H, W)


# ----------------------- pure-JAX reference (for checking) -----------------------
def _warp_ref(img, flow):
    """Trilinear grid_sample(img, identity+flow), align_corners=True, border pad."""
    C, D, H, W = img.shape
    zz, yy, xx = jnp.meshgrid(
        jnp.arange(D, dtype=jnp.float32),
        jnp.arange(H, dtype=jnp.float32),
        jnp.arange(W, dtype=jnp.float32),
        indexing="ij",
    )
    x = jnp.clip(xx + flow[0], 0.0, W - 1.0)
    y = jnp.clip(yy + flow[1], 0.0, H - 1.0)
    z = jnp.clip(zz + flow[2], 0.0, D - 1.0)
    x0 = jnp.floor(x); y0 = jnp.floor(y); z0 = jnp.floor(z)
    tx = x - x0; ty = y - y0; tz = z - z0
    x0i = x0.astype(jnp.int32); x1i = jnp.minimum(x0i + 1, W - 1)
    y0i = y0.astype(jnp.int32); y1i = jnp.minimum(y0i + 1, H - 1)
    z0i = z0.astype(jnp.int32); z1i = jnp.minimum(z0i + 1, D - 1)

    img_flat = img.reshape(C, -1)
    out = jnp.zeros((C, D * H * W), jnp.float32)
    for zi, wz in ((z0i, 1.0 - tz), (z1i, tz)):
        for yi, wy in ((y0i, 1.0 - ty), (y1i, ty)):
            for xi, wx in ((x0i, 1.0 - tx), (x1i, tx)):
                idx = (zi * (H * W) + yi * W + xi).reshape(-1)
                wgt = (wz * wy * wx).reshape(-1)
                out = out + wgt[None, :] * jnp.take(img_flat, idx, axis=1)
    return out.reshape(C, D, H, W)


def vecint_ref(vec, nsteps):
    v = vec.astype(jnp.float32) * (1.0 / 2.0 ** nsteps)

    def one_batch(vb):
        def step(_, cur):
            return cur + _warp_ref(cur, cur)
        return lax.fori_loop(0, nsteps, step, vb)

    return jax.vmap(one_batch)(v)


# --------------------------------------- main ---------------------------------------
if __name__ == "__main__":
    cases = [
        ((2, 3, 8, 8, 8), 4),      # S = 512  (multiple of 128, K=128 path)
        ((1, 3, 5, 6, 7), 3),      # S = 210  (exercises lane padding)
        ((1, 3, 16, 16, 16), 4),   # S = 4096 (K=256 path, several chunks)
    ]
    key = jax.random.PRNGKey(0)
    for shape, nsteps in cases:
        key, sub = jax.random.split(key)
        vec = jax.random.normal(sub, shape, dtype=jnp.float32) * 2.0

        out = jax.block_until_ready(vecint_pallas(vec, nsteps))
        ref = jax.block_until_ready(vecint_ref(vec, nsteps))

        assert out.shape == shape
        err = float(np.max(np.abs(np.asarray(out) - np.asarray(ref))))
        assert np.allclose(np.asarray(out), np.asarray(ref),
                           atol=2e-4, rtol=2e-4), (
            "mismatch vs reference for %s: max abs err = %e" % (str(shape), err))

    print("KERNEL_OK")
</pallas_src>

<mosaic_0001>
module attributes {stable_mosaic.version = 11 : i64} {
  func.func @_probe_kernel(%arg0: memref<8x128xf32, #tpu.memory_space<vmem>>, %arg1: memref<128x128xf32, #tpu.memory_space<vmem>>, %arg2: memref<8x128xf32, #tpu.memory_space<vmem>>) attributes {dimension_semantics = [], scalar_prefetch = 0 : i64, scratch_operands = 0 : i64, tpu.core_type = #tpu.core_type<tc>} {
    %c0 = arith.constant 0 : index
    %c0_0 = arith.constant 0 : index
    %0 = vector.load %arg0[%c0, %c0_0] : memref<8x128xf32, #tpu.memory_space<vmem>>, vector<8x128xf32>
    %c0_1 = arith.constant 0 : index
    %c0_2 = arith.constant 0 : index
    %1 = vector.load %arg1[%c0_1, %c0_2] : memref<128x128xf32, #tpu.memory_space<vmem>>, vector<128x128xf32>
    %cst = arith.constant dense<0.000000e+00> : vector<8x128xf32>
    %2 = tpu.matmul %0, %1, %cst {dimension_numbers = #tpu.dot_dimension_numbers<[1], [0], [0], [1], [0, 0, 1, 1], [], []>, precision = #tpu.contract_precision<fp32>} : vector<8x128xf32>, vector<128x128xf32>, vector<8x128xf32> -> vector<8x128xf32>
    %c0_3 = arith.constant 0 : index
    %c0_4 = arith.constant 0 : index
    %3 = vector.load %arg2[%c0_3, %c0_4] : memref<8x128xf32, #tpu.memory_space<vmem>>, vector<8x128xf32>
    tpu.vector_store %arg2[%c0_3, %c0_4], %2 {strides = array<i32>} : memref<8x128xf32, #tpu.memory_space<vmem>>, vector<8x128xf32>,
    return
  }
}

module attributes {stable_mosaic.version = 11 : i64} {
  func.func @_vecint_kernel(%arg0: i32, %arg1: memref<3x512xf32, #tpu.memory_space<vmem>>, %arg2: memref<1x3x512xf32, #tpu.memory_space<vmem>>, %arg3: memref<1x3x512xf32, #tpu.memory_space<vmem>>, %arg4: memref<3x4x128xf32, #tpu.memory_space<vmem>>) attributes {dimension_semantics = [#tpu.dimension_semantics<parallel>], iteration_bounds = array<i64: 2>, scalar_prefetch = 0 : i64, scratch_operands = 1 : i64, tpu.core_type = #tpu.core_type<tc>, window_params = [{pipeline_mode = #tpu.pipeline_mode<synchronous>, transform_indices = @transform_0, window_bounds = array<i64: 3, 512>}, {transform_indices = @transform_1, window_bounds = array<i64: 1, 3, 512>}, {transform_indices = @transform_2, window_bounds = array<i64: 1, 3, 512>}]} {
    %c0 = arith.constant 0 : index
    %c0_0 = arith.constant 0 : index
    %c0_1 = arith.constant 0 : index
    %0 = vector.load %arg2[%c0, %c0_0, %c0_1] : memref<1x3x512xf32, #tpu.memory_space<vmem>>, vector<1x3x512xf32>
    %1 = vector.shape_cast %0 : vector<1x3x512xf32> to vector<3x512xf32>
    %cst = arith.constant 6.250000e-02 : f32
    %2 = vector.broadcast %cst : f32 to vector<3x512xf32>
    %3 = arith.mulf %1, %2 : vector<3x512xf32>
    %c0_2 = arith.constant 0 : index
    %c0_3 = arith.constant 0 : index
    %c0_4 = arith.constant 0 : index
    %4 = vector.load %arg3[%c0_2, %c0_3, %c0_4] : memref<1x3x512xf32, #tpu.memory_space<vmem>>, vector<1x3x512xf32>
    %5 = vector.shape_cast %4 : vector<1x3x512xf32> to vector<3x512xf32>
    %6 = vector.shape_cast %3 : vector<3x512xf32> to vector<1x3x512xf32>
    tpu.vector_store %arg3[%c0_2, %c0_3, %c0_4], %6 {strides = array<i32>} : memref<1x3x512xf32, #tpu.memory_space<vmem>>, vector<1x3x512xf32>,
    %7 = tpu.iota {dimensions = array<i32: 0>} : vector<128x512xi32>
    %8 = tpu.iota {dimensions = array<i32: 0>} : vector<4x512xi32>
    %9 = tpu.iota {dimensions = array<i32: 0>} : vector<3x1xi32>
    %c0_i32 = arith.constant 0 : i32
    %10 = vector.broadcast %c0_i32 : i32 to vector<3x1xi32>
    %11 = arith.cmpi eq, %9, %10 : vector<3x1xi32>
    %c1_i32 = arith.constant 1 : i32
    %12 = vector.broadcast %c1_i32 : i32 to vector<3x1xi32>
    %13 = arith.cmpi eq, %9, %12 : vector<3x1xi32>
    %c7_i32 = arith.constant 7 : i32
    %c7_i32_5 = arith.constant 7 : i32
    %14 = vector.broadcast %c7_i32 : i32 to vector<3x1xi32>
    %15 = vector.broadcast %c7_i32_5 : i32 to vector<3x1xi32>
    %16 = arith.select %13, %14, %15 : vector<3x1xi1>, vector<3x1xi32>
    %c7_i32_6 = arith.constant 7 : i32
    %17 = vector.broadcast %c7_i32_6 : i32 to vector<3x1xi32>
    %18 = arith.select %11, %17, %16 : vector<3x1xi1>, vector<3x1xi32>
    %19 = arith.sitofp %18 : vector<3x1xi32> to vector<3x1xf32>
    %c0_i32_7 = arith.constant 0 : i32
    %c4_i32 = arith.constant 4 : i32
    %20 = arith.addi %c0_i32_7, %c4_i32 : i32
    %c1_i32_8 = arith.constant 1 : i32
    scf.for %arg5 = %c0_i32_7 to %20 step %c1_i32_8  : i32 {
      %c0_9 = arith.constant 0 : index
      %c0_10 = arith.constant 0 : index
      %c0_11 = arith.constant 0 : index
      %21 = vector.load %arg3[%c0_9, %c0_10, %c0_11] : memref<1x3x512xf32, #tpu.memory_space<vmem>>, vector<1x3x128xf32>
      %22 = vector.shape_cast %21 : vector<1x3x128xf32> to vector<3x128xf32>
      %c0_12 = arith.constant 0 : index
      %c0_13 = arith.constant 0 : index
      %c0_14 = arith.constant 0 : index
      %23 = vector.load %arg4[%c0_12, %c0_13, %c0_14] : memref<3x4x128xf32, #tpu.memory_space<vmem>>, vector<3x1x128xf32>
      %24 = vector.shape_cast %23 : vector<3x1x128xf32> to vector<3x128xf32>
      %25 = vector.shape_cast %22 : vector<3x128xf32> to vector<3x1x128xf32>
      tpu.vector_store %arg4[%c0_12, %c0_13, %c0_14], %25 {strides = array<i32>} : memref<3x4x128xf32, #tpu.memory_space<vmem>>, vector<3x1x128xf32>,
      %c0_15 = arith.constant 0 : index
      %c0_16 = arith.constant 0 : index
      %c128 = arith.constant 128 : index
      %26 = vector.load %arg3[%c0_15, %c0_16, %c128] : memref<1x3x512xf32, #tpu.memory_space<vmem>>, vector<1x3x128xf32>
      %27 = vector.shape_cast %26 : vector<1x3x128xf32> to vector<3x128xf32>
      %c0_17 = arith.constant 0 : index
      %c1 = arith.constant 1 : index
      %c0_18 = arith.constant 0 : index
      %28 = vector.load %arg4[%c0_17, %c1, %c0_18] : memref<3x4x128xf32, #tpu.memory_space<vmem>>, vector<3x1x128xf32>
      %29 = vector.shape_cast %28 : vector<3x1x128xf32> to vector<3x128xf32>
      %30 = vector.shape_cast %27 : vector<3x128xf32> to vector<3x1x128xf32>
      tpu.vector_store %arg4[%c0_17, %c1, %c0_18], %30 {strides = array<i32>} : memref<3x4x128xf32, #tpu.memory_space<vmem>>, vector<3x1x128xf32>,
      %c0_19 = arith.constant 0 : index
      %c0_20 = arith.constant 0 : index
      %c256 = arith.constant 256 : index
      %31 = vector.load %arg3[%c0_19, %c0_20, %c256] : memref<1x3x512xf32, #tpu.memory_space<vmem>>, vector<1x3x128xf32>
      %32 = vector.shape_cast %31 : vector<1x3x128xf32> to vector<3x128xf32>
      %c0_21 = arith.constant 0 : index
      %c2 = arith.constant 2 : index
      %c0_22 = arith.constant 0 : index
      %33 = vector.load %arg4[%c0_21, %c2, %c0_22] : memref<3x4x128xf32, #tpu.memory_space<vmem>>, vector<3x1x128xf32>
      %34 = vector.shape_cast %33 : vector<3x1x128xf32> to vector<3x128xf32>
      %35 = vector.shape_cast %32 : vector<3x128xf32> to vector<3x1x128xf32>
      tpu.vector_store %arg4[%c0_21, %c2, %c0_22], %35 {strides = array<i32>} : memref<3x4x128xf32, #tpu.memory_space<vmem>>, vector<3x1x128xf32>,
      %c0_23 = arith.constant 0 : index
      %c0_24 = arith.constant 0 : index
      %c384 = arith.constant 384 : index
      %36 = vector.load %arg3[%c0_23, %c0_24, %c384] : memref<1x3x512xf32, #tpu.memory_space<vmem>>, vector<1x3x128xf32>
      %37 = vector.shape_cast %36 : vector<1x3x128xf32> to vector<3x128xf32>
      %c0_25 = arith.constant 0 : index
      %c3 = arith.constant 3 : index
      %c0_26 = arith.constant 0 : index
      %38 = vector.load %arg4[%c0_25, %c3, %c0_26] : memref<3x4x128xf32, #tpu.memory_space<vmem>>, vector<3x1x128xf32>
      %39 = vector.shape_cast %38 : vector<3x1x128xf32> to vector<3x128xf32>
      %40 = vector.shape_cast %37 : vector<3x128xf32> to vector<3x1x128xf32>
      tpu.vector_store %arg4[%c0_25, %c3, %c0_26], %40 {strides = array<i32>} : memref<3x4x128xf32, #tpu.memory_space<vmem>>, vector<3x1x128xf32>,
      %c0_27 = arith.constant 0 : index
      %c0_28 = arith.constant 0 : index
      %c0_29 = arith.constant 0 : index
      %41 = vector.load %arg3[%c0_27, %c0_28, %c0_29] : memref<1x3x512xf32, #tpu.memory_space<vmem>>, vector<1x3x512xf32>
      %42 = vector.shape_cast %41 : vector<1x3x512xf32> to vector<3x512xf32>
      %c0_30 = arith.constant 0 : index
      %c0_31 = arith.constant 0 : index
      %43 = vector.load %arg1[%c0_30, %c0_31] : memref<3x512xf32, #tpu.memory_space<vmem>>, vector<3x512xf32>
      %44 = arith.addf %43, %42 : vector<3x512xf32>
      %cst_32 = arith.constant 0.000000e+00 : f32
      %45 = vector.broadcast %cst_32 : f32 to vector<3x512xf32>
      %46 = arith.maximumf %45, %44 : vector<3x512xf32>
      %47 = vector.broadcast %19 : vector<3x1xf32> to vector<3x512xf32>
      %48 = arith.minimumf %47, %46 : vector<3x512xf32>
      %49 = math.floor %48 : vector<3x512xf32>
      %50 = arith.subf %48, %49 : vector<3x512xf32>
      %51 = arith.fptosi %49 : vector<3x512xf32> to vector<3x512xi32>
      %c1_i32_33 = arith.constant 1 : i32
      %52 = vector.broadcast %c1_i32_33 : i32 to vector<3x512xi32>
      %53 = arith.addi %51, %52 : vector<3x512xi32>
      %54 = vector.broadcast %18 : vector<3x1xi32> to vector<3x512xi32>
      %55 = arith.minsi %53, %54 : vector<3x512xi32>
      %56 = vector.extract_strided_slice %51 {offsets = [0, 0], sizes = [1, 512], strides = [1, 1]} : vector<3x512xi32> to vector<1x512xi32>
      %57 = vector.extract_strided_slice %51 {offsets = [1, 0], sizes = [1, 512], strides = [1, 1]} : vector<3x512xi32> to vector<1x512xi32>
      %58 = vector.extract_strided_slice %51 {offsets = [2, 0], sizes = [1, 512], strides = [1, 1]} : vector<3x512xi32> to vector<1x512xi32>
      %59 = vector.extract_strided_slice %55 {offsets = [0, 0], sizes = [1, 512], strides = [1, 1]} : vector<3x512xi32> to vector<1x512xi32>
      %60 = vector.extract_strided_slice %55 {offsets = [1, 0], sizes = [1, 512], strides = [1, 1]} : vector<3x512xi32> to vector<1x512xi32>
      %61 = vector.extract_strided_slice %55 {offsets = [2, 0], sizes = [1, 512], strides = [1, 1]} : vector<3x512xi32> to vector<1x512xi32>
      %62 = vector.extract_strided_slice %50 {offsets = [0, 0], sizes = [1, 512], strides = [1, 1]} : vector<3x512xf32> to vector<1x512xf32>
      %63 = vector.extract_strided_slice %50 {offsets = [1, 0], sizes = [1, 512], strides = [1, 1]} : vector<3x512xf32> to vector<1x512xf32>
      %64 = vector.extract_strided_slice %50 {offsets = [2, 0], sizes = [1, 512], strides = [1, 1]} : vector<3x512xf32> to vector<1x512xf32>
      %cst_34 = arith.constant 0.000000e+00 : f32
      %65 = vector.broadcast %cst_34 : f32 to vector<1x512xf32>
      %cst_35 = arith.constant 0.000000e+00 : f32
      %66 = vector.broadcast %cst_35 : f32 to vector<1x512xf32>
      %cst_36 = arith.constant 0.000000e+00 : f32
      %67 = vector.broadcast %cst_36 : f32 to vector<1x512xf32>
      %cst_37 = arith.constant 1.000000e+00 : f32
      %68 = vector.broadcast %cst_37 : f32 to vector<1x512xf32>
      %69 = arith.subf %68, %64 : vector<1x512xf32>
      %cst_38 = arith.constant 1.000000e+00 : f32
      %70 = vector.broadcast %cst_38 : f32 to vector<1x512xf32>
      %71 = arith.subf %70, %63 : vector<1x512xf32>
      %cst_39 = arith.constant 1.000000e+00 : f32
      %72 = vector.broadcast %cst_39 : f32 to vector<1x512xf32>
      %73 = arith.subf %72, %62 : vector<1x512xf32>
      %c64_i32 = arith.constant 64 : i32
      %74 = vector.broadcast %c64_i32 : i32 to vector<1x512xi32>
      %75 = arith.muli %58, %74 : vector<1x512xi32>
      %c8_i32 = arith.constant 8 : i32
      %76 = vector.broadcast %c8_i32 : i32 to vector<1x512xi32>
      %77 = arith.muli %57, %76 : vector<1x512xi32>
      %78 = arith.addi %75, %77 : vector<1x512xi32>
      %79 = arith.addi %78, %56 : vector<1x512xi32>
      %80 = arith.mulf %69, %71 : vector<1x512xf32>
      %81 = arith.mulf %80, %73 : vector<1x512xf32>
      %c127_i32 = arith.constant 127 : i32
      %82 = vector.broadcast %c127_i32 : i32 to vector<1x512xi32>
      %83 = arith.andi %79, %82 : vector<1x512xi32>
      %c7_i32_40 = arith.constant 7 : i32
      %84 = vector.broadcast %c7_i32_40 : i32 to vector<1x512xi32>
      %85 = arith.shrsi %79, %84 : vector<1x512xi32>
      %86 = vector.broadcast %83 : vector<1x512xi32> to vector<128x512xi32>
      %87 = arith.cmpi eq, %7, %86 : vector<128x512xi32>
      %88 = arith.extui %87 : vector<128x512xi1> to vector<128x512xi32>
      %89 = arith.sitofp %88 : vector<128x512xi32> to vector<128x512xf32>
      %90 = vector.broadcast %85 : vector<1x512xi32> to vector<4x512xi32>
      %91 = arith.cmpi eq, %8, %90 : vector<4x512xi32>
      %cst_41 = arith.constant 0.000000e+00 : f32
      %92 = vector.shape_cast %81 : vector<1x512xf32> to vector<1x512xf32>
      %93 = vector.broadcast %92 : vector<1x512xf32> to vector<4x512xf32>
      %94 = vector.broadcast %cst_41 : f32 to vector<4x512xf32>
      %95 = arith.select %91, %93, %94 : vector<4x512xi1>, vector<4x512xf32>
      %c0_42 = arith.constant 0 : index
      %c0_43 = arith.constant 0 : index
      %c0_44 = arith.constant 0 : index
      %96 = vector.load %arg4[%c0_42, %c0_43, %c0_44] : memref<3x4x128xf32, #tpu.memory_space<vmem>>, vector<1x4x128xf32>
      %97 = vector.shape_cast %96 : vector<1x4x128xf32> to vector<4x128xf32>
      %cst_45 = arith.constant dense<0.000000e+00> : vector<4x512xf32>
      %98 = tpu.matmul %97, %89, %cst_45 {dimension_numbers = #tpu.dot_dimension_numbers<[1], [0], [0], [1], [0, 0, 1, 1], [], []>} : vector<4x128xf32>, vector<128x512xf32>, vector<4x512xf32> -> vector<4x512xf32>
      %99 = arith.mulf %98, %95 : vector<4x512xf32>
      %cst_46 = arith.constant dense<0.000000e+00> : vector<512xf32>
      %100 = vector.multi_reduction <add>, %99, %cst_46 [0] : vector<4x512xf32> to vector<512xf32>
      %101 = vector.shape_cast %100 : vector<512xf32> to vector<1x512xf32>
      %102 = arith.addf %65, %101 : vector<1x512xf32>
      %c1_47 = arith.constant 1 : index
      %c0_48 = arith.constant 0 : index
      %c0_49 = arith.constant 0 : index
      %103 = vector.load %arg4[%c1_47, %c0_48, %c0_49] : memref<3x4x128xf32, #tpu.memory_space<vmem>>, vector<1x4x128xf32>
      %104 = vector.shape_cast %103 : vector<1x4x128xf32> to vector<4x128xf32>
      %cst_50 = arith.constant dense<0.000000e+00> : vector<4x512xf32>
      %105 = tpu.matmul %104, %89, %cst_50 {dimension_numbers = #tpu.dot_dimension_numbers<[1], [0], [0], [1], [0, 0, 1, 1], [], []>} : vector<4x128xf32>, vector<128x512xf32>, vector<4x512xf32> -> vector<4x512xf32>
      %106 = arith.mulf %105, %95 : vector<4x512xf32>
      %cst_51 = arith.constant dense<0.000000e+00> : vector<512xf32>
      %107 = vector.multi_reduction <add>, %106, %cst_51 [0] : vector<4x512xf32> to vector<512xf32>
      %108 = vector.shape_cast %107 : vector<512xf32> to vector<1x512xf32>
      %109 = arith.addf %66, %108 : vector<1x512xf32>
      %c2_52 = arith.constant 2 : index
      %c0_53 = arith.constant 0 : index
      %c0_54 = arith.constant 0 : index
      %110 = vector.load %arg4[%c2_52, %c0_53, %c0_54] : memref<3x4x128xf32, #tpu.memory_space<vmem>>, vector<1x4x128xf32>
      %111 = vector.shape_cast %110 : vector<1x4x128xf32> to vector<4x128xf32>
      %cst_55 = arith.constant dense<0.000000e+00> : vector<4x512xf32>
      %112 = tpu.matmul %111, %89, %cst_55 {dimension_numbers = #tpu.dot_dimension_numbers<[1], [0], [0], [1], [0, 0, 1, 1], [], []>} : vector<4x128xf32>, vector<128x512xf32>, vector<4x512xf32> -> vector<4x512xf32>
      %113 = arith.mulf %112, %95 : vector<4x512xf32>
      %cst_56 = arith.constant dense<0.000000e+00> : vector<512xf32>
      %114 = vector.multi_reduction <add>, %113, %cst_56 [0] : vector<4x512xf32> to vector<512xf32>
      %115 = vector.shape_cast %114 : vector<512xf32> to vector<1x512xf32>
      %116 = arith.addf %67, %115 : vector<1x512xf32>
      %c64_i32_57 = arith.constant 64 : i32
      %117 = vector.broadcast %c64_i32_57 : i32 to vector<1x512xi32>
      %118 = arith.muli %58, %117 : vector<1x512xi32>
      %c8_i32_58 = arith.constant 8 : i32
      %119 = vector.broadcast %c8_i32_58 : i32 to vector<1x512xi32>
      %120 = arith.muli %57, %119 : vector<1x512xi32>
      %121 = arith.addi %118, %120 : vector<1x512xi32>
      %122 = arith.addi %121, %59 : vector<1x512xi32>
      %123 = arith.mulf %69, %71 : vector<1x512xf32>
      %124 = arith.mulf %123, %62 : vector<1x512xf32>
      %c127_i32_59 = arith.constant 127 : i32
      %125 = vector.broadcast %c127_i32_59 : i32 to vector<1x512xi32>
      %126 = arith.andi %122, %125 : vector<1x512xi32>
      %c7_i32_60 = arith.constant 7 : i32
      %127 = vector.broadcast %c7_i32_60 : i32 to vector<1x512xi32>
      %128 = arith.shrsi %122, %127 : vector<1x512xi32>
      %129 = vector.broadcast %126 : vector<1x512xi32> to vector<128x512xi32>
      %130 = arith.cmpi eq, %7, %129 : vector<128x512xi32>
      %131 = arith.extui %130 : vector<128x512xi1> to vector<128x512xi32>
      %132 = arith.sitofp %131 : vector<128x512xi32> to vector<128x512xf32>
      %133 = vector.broadcast %128 : vector<1x512xi32> to vector<4x512xi32>
      %134 = arith.cmpi eq, %8, %133 : vector<4x512xi32>
      %cst_61 = arith.constant 0.000000e+00 : f32
      %135 = vector.shape_cast %124 : vector<1x512xf32> to vector<1x512xf32>
      %136 = vector.broadcast %135 : vector<1x512xf32> to vector<4x512xf32>
      %137 = vector.broadcast %cst_61 : f32 to vector<4x512xf32>
      %138 = arith.select %134, %136, %137 : vector<4x512xi1>, vector<4x512xf32>
      %c0_62 = arith.constant 0 : index
      %c0_63 = arith.constant 0 : index
      %c0_64 = arith.constant 0 : index
      %139 = vector.load %arg4[%c0_62, %c0_63, %c0_64] : memref<3x4x128xf32, #tpu.memory_space<vmem>>, vector<1x4x128xf32>
      %140 = vector.shape_cast %139 : vector<1x4x128xf32> to vector<4x128xf32>
      %cst_65 = arith.constant dense<0.000000e+00> : vector<4x512xf32>
      %141 = tpu.matmul %140, %132, %cst_65 {dimension_numbers = #tpu.dot_dimension_numbers<[1], [0], [0], [1], [0, 0, 1, 1], [], []>} : vector<4x128xf32>, vector<128x512xf32>, vector<4x512xf32> -> vector<4x512xf32>
      %142 = arith.mulf %141, %138 : vector<4x512xf32>
      %cst_66 = arith.constant dense<0.000000e+00> : vector<512xf32>
      %143 = vector.multi_reduction <add>, %142, %cst_66 [0] : vector<4x512xf32> to vector<512xf32>
      %144 = vector.shape_cast %143 : vector<512xf32> to vector<1x512xf32>
      %145 = arith.addf %102, %144 : vector<1x512xf32>
      %c1_67 = arith.constant 1 : index
      %c0_68 = arith.constant 0 : index
      %c0_69 = arith.constant 0 : index
      %146 = vector.load %arg4[%c1_67, %c0_68, %c0_69] : memref<3x4x128xf32, #tpu.memory_space<vmem>>, vector<1x4x128xf32>
      %147 = vector.shape_cast %146 : vector<1x4x128xf32> to vector<4x128xf32>
      %cst_70 = arith.constant dense<0.000000e+00> : vector<4x512xf32>
      %148 = tpu.matmul %147, %132, %cst_70 {dimension_numbers = #tpu.dot_dimension_numbers<[1], [0], [0], [1], [0, 0, 1, 1], [], []>} : vector<4x128xf32>, vector<128x512xf32>, vector<4x512xf32> -> vector<4x512xf32>
      %149 = arith.mulf %148, %138 : vector<4x512xf32>
      %cst_71 = arith.constant dense<0.000000e+00> : vector<512xf32>
      %150 = vector.multi_reduction <add>, %149, %cst_71 [0] : vector<4x512xf32> to vector<512xf32>
      %151 = vector.shape_cast %150 : vector<512xf32> to vector<1x512xf32>
      %152 = arith.addf %109, %151 : vector<1x512xf32>
      %c2_72 = arith.constant 2 : index
      %c0_73 = arith.constant 0 : index
      %c0_74 = arith.constant 0 : index
      %153 = vector.load %arg4[%c2_72, %c0_73, %c0_74] : memref<3x4x128xf32, #tpu.memory_space<vmem>>, vector<1x4x128xf32>
      %154 = vector.shape_cast %153 : vector<1x4x128xf32> to vector<4x128xf32>
      %cst_75 = arith.constant dense<0.000000e+00> : vector<4x512xf32>
      %155 = tpu.matmul %154, %132, %cst_75 {dimension_numbers = #tpu.dot_dimension_numbers<[1], [0], [0], [1], [0, 0, 1, 1], [], []>} : vector<4x128xf32>, vector<128x512xf32>, vector<4x512xf32> -> vector<4x512xf32>
      %156 = arith.mulf %155, %138 : vector<4x512xf32>
      %cst_76 = arith.constant dense<0.000000e+00> : vector<512xf32>
      %157 = vector.multi_reduction <add>, %156, %cst_76 [0] : vector<4x512xf32> to vector<512xf32>
      %158 = vector.shape_cast %157 : vector<512xf32> to vector<1x512xf32>
      %159 = arith.addf %116, %158 : vector<1x512xf32>
      %cst_77 = arith.constant 1.000000e+00 : f32
      %160 = vector.broadcast %cst_77 : f32 to vector<1x512xf32>
      %161 = arith.subf %160, %62 : vector<1x512xf32>
      %c64_i32_78 = arith.constant 64 : i32
      %162 = vector.broadcast %c64_i32_78 : i32 to vector<1x512xi32>
      %163 = arith.muli %58, %162 : vector<1x512xi32>
      %c8_i32_79 = arith.constant 8 : i32
      %164 = vector.broadcast %c8_i32_79 : i32 to vector<1x512xi32>
      %165 = arith.muli %60, %164 : vector<1x512xi32>
      %166 = arith.addi %163, %165 : vector<1x512xi32>
      %167 = arith.addi %166, %56 : vector<1x512xi32>
      %168 = arith.mulf %69, %63 : vector<1x512xf32>
      %169 = arith.mulf %168, %161 : vector<1x512xf32>
      %c127_i32_80 = arith.constant 127 : i32
      %170 = vector.broadcast %c127_i32_80 : i32 to vector<1x512xi32>
      %171 = arith.andi %167, %170 : vector<1x512xi32>
      %c7_i32_81 = arith.constant 7 : i32
      %172 = vector.broadcast %c7_i32_81 : i32 to vector<1x512xi32>
      %173 = arith.shrsi %167, %172 : vector<1x512xi32>
      %174 = vector.broadcast %171 : vector<1x512xi32> to vector<128x512xi32>
      %175 = arith.cmpi eq, %7, %174 : vector<128x512xi32>
      %176 = arith.extui %175 : vector<128x512xi1> to vector<128x512xi32>
      %177 = arith.sitofp %176 : vector<128x512xi32> to vector<128x512xf32>
      %178 = vector.broadcast %173 : vector<1x512xi32> to vector<4x512xi32>
      %179 = arith.cmpi eq, %8, %178 : vector<4x512xi32>
      %cst_82 = arith.constant 0.000000e+00 : f32
      %180 = vector.shape_cast %169 : vector<1x512xf32> to vector<1x512xf32>
      %181 = vector.broadcast %180 : vector<1x512xf32> to vector<4x512xf32>
      %182 = vector.broadcast %cst_82 : f32 to vector<4x512xf32>
      %183 = arith.select %179, %181, %182 : vector<4x512xi1>, vector<4x512xf32>
      %c0_83 = arith.constant 0 : index
      %c0_84 = arith.constant 0 : index
      %c0_85 = arith.constant 0 : index
      %184 = vector.load %arg4[%c0_83, %c0_84, %c0_85] : memref<3x4x128xf32, #tpu.memory_space<vmem>>, vector<1x4x128xf32>
      %185 = vector.shape_cast %184 : vector<1x4x128xf32> to vector<4x128xf32>
      %cst_86 = arith.constant dense<0.000000e+00> : vector<4x512xf32>
      %186 = tpu.matmul %185, %177, %cst_86 {dimension_numbers = #tpu.dot_dimension_numbers<[1], [0], [0], [1], [0, 0, 1, 1], [], []>} : vector<4x128xf32>, vector<128x512xf32>, vector<4x512xf32> -> vector<4x512xf32>
      %187 = arith.mulf %186, %183 : vector<4x512xf32>
      %cst_87 = arith.constant dense<0.000000e+00> : vector<512xf32>
      %188 = vector.multi_reduction <add>, %187, %cst_87 [0] : vector<4x512xf32> to vector<512xf32>
      %189 = vector.shape_cast %188 : vector<512xf32> to vector<1x512xf32>
      %190 = arith.addf %145, %189 : vector<1x512xf32>
      %c1_88 = arith.constant 1 : index
      %c0_89 = arith.constant 0 : index
      %c0_90 = arith.constant 0 : index
      %191 = vector.load %arg4[%c1_88, %c0_89, %c0_90] : memref<3x4x128xf32, #tpu.memory_space<vmem>>, vector<1x4x128xf32>
      %192 = vector.shape_cast %191 : vector<1x4x128xf32> to vector<4x128xf32>
      %cst_91 = arith.constant dense<0.000000e+00> : vector<4x512xf32>
      %193 = tpu.matmul %192, %177, %cst_91 {dimension_numbers = #tpu.dot_dimension_numbers<[1], [0], [0], [1], [0, 0, 1, 1], [], []>} : vector<4x128xf32>, vector<128x512xf32>, vector<4x512xf32> -> vector<4x512xf32>
      %194 = arith.mulf %193, %183 : vector<4x512xf32>
      %cst_92 = arith.constant dense<0.000000e+00> : vector<512xf32>
      %195 = vector.multi_reduction <add>, %194, %cst_92 [0] : vector<4x512xf32> to vector<512xf32>
      %196 = vector.shape_cast %195 : vector<512xf32> to vector<1x512xf32>
      %197 = arith.addf %152, %196 : vector<1x512xf32>
      %c2_93 = arith.constant 2 : index
      %c0_94 = arith.constant 0 : index
      %c0_95 = arith.constant 0 : index
      %198 = vector.load %arg4[%c2_93, %c0_94, %c0_95] : memref<3x4x128xf32, #tpu.memory_space<vmem>>, vector<1x4x128xf32>
      %199 = vector.shape_cast %198 : vector<1x4x128xf32> to vector<4x128xf32>
      %cst_96 = arith.constant dense<0.000000e+00> : vector<4x512xf32>
      %200 = tpu.matmul %199, %177, %cst_96 {dimension_numbers = #tpu.dot_dimension_numbers<[1], [0], [0], [1], [0, 0, 1, 1], [], []>} : vector<4x128xf32>, vector<128x512xf32>, vector<4x512xf32> -> vector<4x512xf32>
      %201 = arith.mulf %200, %183 : vector<4x512xf32>
      %cst_97 = arith.constant dense<0.000000e+00> : vector<512xf32>
      %202 = vector.multi_reduction <add>, %201, %cst_97 [0] : vector<4x512xf32> to vector<512xf32>
      %203 = vector.shape_cast %202 : vector<512xf32> to vector<1x512xf32>
      %204 = arith.addf %159, %203 : vector<1x512xf32>
      %c64_i32_98 = arith.constant 64 : i32
      %205 = vector.broadcast %c64_i32_98 : i32 to vector<1x512xi32>
      %206 = arith.muli %58, %205 : vector<1x512xi32>
      %c8_i32_99 = arith.constant 8 : i32
      %207 = vector.broadcast %c8_i32_99 : i32 to vector<1x512xi32>
      %208 = arith.muli %60, %207 : vector<1x512xi32>
      %209 = arith.addi %206, %208 : vector<1x512xi32>
      %210 = arith.addi %209, %59 : vector<1x512xi32>
      %211 = arith.mulf %69, %63 : vector<1x512xf32>
      %212 = arith.mulf %211, %62 : vector<1x512xf32>
      %c127_i32_100 = arith.constant 127 : i32
      %213 = vector.broadcast %c127_i32_100 : i32 to vector<1x512xi32>
      %214 = arith.andi %210, %213 : vector<1x512xi32>
      %c7_i32_101 = arith.constant 7 : i32
      %215 = vector.broadcast %c7_i32_101 : i32 to vector<1x512xi32>
      %216 = arith.shrsi %210, %215 : vector<1x512xi32>
      %217 = vector.broadcast %214 : vector<1x512xi32> to vector<128x512xi32>
      %218 = arith.cmpi eq, %7, %217 : vector<128x512xi32>
      %219 = arith.extui %218 : vector<128x512xi1> to vector<128x512xi32>
      %220 = arith.sitofp %219 : vector<128x512xi32> to vector<128x512xf32>
      %221 = vector.broadcast %216 : vector<1x512xi32> to vector<4x512xi32>
      %222 = arith.cmpi eq, %8, %221 : vector<4x512xi32>
      %cst_102 = arith.constant 0.000000e+00 : f32
      %223 = vector.shape_cast %212 : vector<1x512xf32> to vector<1x512xf32>
      %224 = vector.broadcast %223 : vector<1x512xf32> to vector<4x512xf32>
      %225 = vector.broadcast %cst_102 : f32 to vector<4x512xf32>
      %226 = arith.select %222, %224, %225 : vector<4x512xi1>, vector<4x512xf32>
      %c0_103 = arith.constant 0 : index
      %c0_104 = arith.constant 0 : index
      %c0_105 = arith.constant 0 : index
      %227 = vector.load %arg4[%c0_103, %c0_104, %c0_105] : memref<3x4x128xf32, #tpu.memory_space<vmem>>, vector<1x4x128xf32>
      %228 = vector.shape_cast %227 : vector<1x4x128xf32> to vector<4x128xf32>
      %cst_106 = arith.constant dense<0.000000e+00> : vector<4x512xf32>
      %229 = tpu.matmul %228, %220, %cst_106 {dimension_numbers = #tpu.dot_dimension_numbers<[1], [0], [0], [1], [0, 0, 1, 1], [], []>} : vector<4x128xf32>, vector<128x512xf32>, vector<4x512xf32> -> vector<4x512xf32>
      %230 = arith.mulf %229, %226 : vector<4x512xf32>
      %cst_107 = arith.constant dense<0.000000e+00> : vector<512xf32>
      %231 = vector.multi_reduction <add>, %230, %cst_107 [0] : vector<4x512xf32> to vector<512xf32>
      %232 = vector.shape_cast %231 : vector<512xf32> to vector<1x512xf32>
      %233 = arith.addf %190, %232 : vector<1x512xf32>
      %c1_108 = arith.constant 1 : index
      %c0_109 = arith.constant 0 : index
      %c0_110 = arith.constant 0 : index
      %234 = vector.load %arg4[%c1_108, %c0_109, %c0_110] : memref<3x4x128xf32, #tpu.memory_space<vmem>>, vector<1x4x128xf32>
      %235 = vector.shape_cast %234 : vector<1x4x128xf32> to vector<4x128xf32>
      %cst_111 = arith.constant dense<0.000000e+00> : vector<4x512xf32>
      %236 = tpu.matmul %235, %220, %cst_111 {dimension_numbers = #tpu.dot_dimension_numbers<[1], [0], [0], [1], [0, 0, 1, 1], [], []>} : vector<4x128xf32>, vector<128x512xf32>, vector<4x512xf32> -> vector<4x512xf32>
      %237 = arith.mulf %236, %226 : vector<4x512xf32>
      %cst_112 = arith.constant dense<0.000000e+00> : vector<512xf32>
      %238 = vector.multi_reduction <add>, %237, %cst_112 [0] : vector<4x512xf32> to vector<512xf32>
      %239 = vector.shape_cast %238 : vector<512xf32> to vector<1x512xf32>
      %240 = arith.addf %197, %239 : vector<1x512xf32>
      %c2_113 = arith.constant 2 : index
      %c0_114 = arith.constant 0 : index
      %c0_115 = arith.constant 0 : index
      %241 = vector.load %arg4[%c2_113, %c0_114, %c0_115] : memref<3x4x128xf32, #tpu.memory_space<vmem>>, vector<1x4x128xf32>
      %242 = vector.shape_cast %241 : vector<1x4x128xf32> to vector<4x128xf32>
      %cst_116 = arith.constant dense<0.000000e+00> : vector<4x512xf32>
      %243 = tpu.matmul %242, %220, %cst_116 {dimension_numbers = #tpu.dot_dimension_numbers<[1], [0], [0], [1], [0, 0, 1, 1], [], []>} : vector<4x128xf32>, vector<128x512xf32>, vector<4x512xf32> -> vector<4x512xf32>
      %244 = arith.mulf %243, %226 : vector<4x512xf32>
      %cst_117 = arith.constant dense<0.000000e+00> : vector<512xf32>
      %245 = vector.multi_reduction <add>, %244, %cst_117 [0] : vector<4x512xf32> to vector<512xf32>
      %246 = vector.shape_cast %245 : vector<512xf32> to vector<1x512xf32>
      %247 = arith.addf %204, %246 : vector<1x512xf32>
      %cst_118 = arith.constant 1.000000e+00 : f32
      %248 = vector.broadcast %cst_118 : f32 to vector<1x512xf32>
      %249 = arith.subf %248, %63 : vector<1x512xf32>
      %cst_119 = arith.constant 1.000000e+00 : f32
      %250 = vector.broadcast %cst_119 : f32 to vector<1x512xf32>
      %251 = arith.subf %250, %62 : vector<1x512xf32>
      %c64_i32_120 = arith.constant 64 : i32
      %252 = vector.broadcast %c64_i32_120 : i32 to vector<1x512xi32>
      %253 = arith.muli %61, %252 : vector<1x512xi32>
      %c8_i32_121 = arith.constant 8 : i32
      %254 = vector.broadcast %c8_i32_121 : i32 to vector<1x512xi32>
      %255 = arith.muli %57, %254 : vector<1x512xi32>
      %256 = arith.addi %253, %255 : vector<1x512xi32>
      %257 = arith.addi %256, %56 : vector<1x512xi32>
      %258 = arith.mulf %64, %249 : vector<1x512xf32>
      %259 = arith.mulf %258, %251 : vector<1x512xf32>
      %c127_i32_122 = arith.constant 127 : i32
      %260 = vector.broadcast %c127_i32_122 : i32 to vector<1x512xi32>
      %261 = arith.andi %257, %260 : vector<1x512xi32>
      %c7_i32_123 = arith.constant 7 : i32
      %262 = vector.broadcast %c7_i32_123 : i32 to vector<1x512xi32>
      %263 = arith.shrsi %257, %262 : vector<1x512xi32>
      %264 = vector.broadcast %261 : vector<1x512xi32> to vector<128x512xi32>
      %265 = arith.cmpi eq, %7, %264 : vector<128x512xi32>
      %266 = arith.extui %265 : vector<128x512xi1> to vector<128x512xi32>
      %267 = arith.sitofp %266 : vector<128x512xi32> to vector<128x512xf32>
      %268 = vector.broadcast %263 : vector<1x512xi32> to vector<4x512xi32>
      %269 = arith.cmpi eq, %8, %268 : vector<4x512xi32>
      %cst_124 = arith.constant 0.000000e+00 : f32
      %270 = vector.shape_cast %259 : vector<1x512xf32> to vector<1x512xf32>
      %271 = vector.broadcast %270 : vector<1x512xf32> to vector<4x512xf32>
      %272 = vector.broadcast %cst_124 : f32 to vector<4x512xf32>
      %273 = arith.select %269, %271, %272 : vector<4x512xi1>, vector<4x512xf32>
      %c0_125 = arith.constant 0 : index
      %c0_126 = arith.constant 0 : index
      %c0_127 = arith.constant 0 : index
      %274 = vector.load %arg4[%c0_125, %c0_126, %c0_127] : memref<3x4x128xf32, #tpu.memory_space<vmem>>, vector<1x4x128xf32>
      %275 = vector.shape_cast %274 : vector<1x4x128xf32> to vector<4x128xf32>
      %cst_128 = arith.constant dense<0.000000e+00> : vector<4x512xf32>
      %276 = tpu.matmul %275, %267, %cst_128 {dimension_numbers = #tpu.dot_dimension_numbers<[1], [0], [0], [1], [0, 0, 1, 1], [], []>} : vector<4x128xf32>, vector<128x512xf32>, vector<4x512xf32> -> vector<4x512xf32>
      %277 = arith.mulf %276, %273 : vector<4x512xf32>
      %cst_129 = arith.constant dense<0.000000e+00> : vector<512xf32>
      %278 = vector.multi_reduction <add>, %277, %cst_129 [0] : vector<4x512xf32> to vector<512xf32>
      %279 = vector.shape_cast %278 : vector<512xf32> to vector<1x512xf32>
      %280 = arith.addf %233, %279 : vector<1x512xf32>
      %c1_130 = arith.constant 1 : index
      %c0_131 = arith.constant 0 : index
      %c0_132 = arith.constant 0 : index
      %281 = vector.load %arg4[%c1_130, %c0_131, %c0_132] : memref<3x4x128xf32, #tpu.memory_space<vmem>>, vector<1x4x128xf32>
      %282 = vector.shape_cast %281 : vector<1x4x128xf32> to vector<4x128xf32>
      %cst_133 = arith.constant dense<0.000000e+00> : vector<4x512xf32>
      %283 = tpu.matmul %282, %267, %cst_133 {dimension_numbers = #tpu.dot_dimension_numbers<[1], [0], [0], [1], [0, 0, 1, 1], [], []>} : vector<4x128xf32>, vector<128x512xf32>, vector<4x512xf32> -> vector<4x512xf32>
      %284 = arith.mulf %283, %273 : vector<4x512xf32>
      %cst_134 = arith.constant dense<0.000000e+00> : vector<512xf32>
      %285 = vector.multi_reduction <add>, %284, %cst_134 [0] : vector<4x512xf32> to vector<512xf32>
      %286 = vector.shape_cast %285 : vector<512xf32> to vector<1x512xf32>
      %287 = arith.addf %240, %286 : vector<1x512xf32>
      %c2_135 = arith.constant 2 : index
      %c0_136 = arith.constant 0 : index
      %c0_137 = arith.constant 0 : index
      %288 = vector.load %arg4[%c2_135, %c0_136, %c0_137] : memref<3x4x128xf32, #tpu.memory_space<vmem>>, vector<1x4x128xf32>
      %289 = vector.shape_cast %288 : vector<1x4x128xf32> to vector<4x128xf32>
      %cst_138 = arith.constant dense<0.000000e+00> : vector<4x512xf32>
      %290 = tpu.matmul %289, %267, %cst_138 {dimension_numbers = #tpu.dot_dimension_numbers<[1], [0], [0], [1], [0, 0, 1, 1], [], []>} : vector<4x128xf32>, vector<128x512xf32>, vector<4x512xf32> -> vector<4x512xf32>
      %291 = arith.mulf %290, %273 : vector<4x512xf32>
      %cst_139 = arith.constant dense<0.000000e+00> : vector<512xf32>
      %292 = vector.multi_reduction <add>, %291, %cst_139 [0] : vector<4x512xf32> to vector<512xf32>
      %293 = vector.shape_cast %292 : vector<512xf32> to vector<1x512xf32>
      %294 = arith.addf %247, %293 : vector<1x512xf32>
      %c64_i32_140 = arith.constant 64 : i32
      %295 = vector.broadcast %c64_i32_140 : i32 to vector<1x512xi32>
      %296 = arith.muli %61, %295 : vector<1x512xi32>
      %c8_i32_141 = arith.constant 8 : i32
      %297 = vector.broadcast %c8_i32_141 : i32 to vector<1x512xi32>
      %298 = arith.muli %57, %297 : vector<1x512xi32>
      %299 = arith.addi %296, %298 : vector<1x512xi32>
      %300 = arith.addi %299, %59 : vector<1x512xi32>
      %301 = arith.mulf %64, %249 : vector<1x512xf32>
      %302 = arith.mulf %301, %62 : vector<1x512xf32>
      %c127_i32_142 = arith.constant 127 : i32
      %303 = vector.broadcast %c127_i32_142 : i32 to vector<1x512xi32>
      %304 = arith.andi %300, %303 : vector<1x512xi32>
      %c7_i32_143 = arith.constant 7 : i32
      %305 = vector.broadcast %c7_i32_143 : i32 to vector<1x512xi32>
      %306 = arith.shrsi %300, %305 : vector<1x512xi32>
      %307 = vector.broadcast %304 : vector<1x512xi32> to vector<128x512xi32>
      %308 = arith.cmpi eq, %7, %307 : vector<128x512xi32>
      %309 = arith.extui %308 : vector<128x512xi1> to vector<128x512xi32>
      %310 = arith.sitofp %309 : vector<128x512xi32> to vector<128x512xf32>
      %311 = vector.broadcast %306 : vector<1x512xi32> to vector<4x512xi32>
      %312 = arith.cmpi eq, %8, %311 : vector<4x512xi32>
      %cst_144 = arith.constant 0.000000e+00 : f32
      %313 = vector.shape_cast %302 : vector<1x512xf32> to vector<1x512xf32>
      %314 = vector.broadcast %313 : vector<1x512xf32> to vector<4x512xf32>
      %315 = vector.broadcast %cst_144 : f32 to vector<4x512xf32>
      %316 = arith.select %312, %314, %315 : vector<4x512xi1>, vector<4x512xf32>
      %c0_145 = arith.constant 0 : index
      %c0_146 = arith.constant 0 : index
      %c0_147 = arith.constant 0 : index
      %317 = vector.load %arg4[%c0_145, %c0_146, %c0_147] : memref<3x4x128xf32, #tpu.memory_space<vmem>>, vector<1x4x128xf32>
      %318 = vector.shape_cast %317 : vector<1x4x128xf32> to vector<4x128xf32>
      %cst_148 = arith.constant dense<0.000000e+00> : vector<4x512xf32>
      %319 = tpu.matmul %318, %310, %cst_148 {dimension_numbers = #tpu.dot_dimension_numbers<[1], [0], [0], [1], [0, 0, 1, 1], [], []>} : vector<4x128xf32>, vector<128x512xf32>, vector<4x512xf32> -> vector<4x512xf32>
      %320 = arith.mulf %319, %316 : vector<4x512xf32>
      %cst_149 = arith.constant dense<0.000000e+00> : vector<512xf32>
      %321 = vector.multi_reduction <add>, %320, %cst_149 [0] : vector<4x512xf32> to vector<512xf32>
      %322 = vector.shape_cast %321 : vector<512xf32> to vector<1x512xf32>
      %323 = arith.addf %280, %322 : vector<1x512xf32>
      %c1_150 = arith.constant 1 : index
      %c0_151 = arith.constant 0 : index
      %c0_152 = arith.constant 0 : index
      %324 = vector.load %arg4[%c1_150, %c0_151, %c0_152] : memref<3x4x128xf32, #tpu.memory_space<vmem>>, vector<1x4x128xf32>
      %325 = vector.shape_cast %324 : vector<1x4x128xf32> to vector<4x128xf32>
      %cst_153 = arith.constant dense<0.000000e+00> : vector<4x512xf32>
      %326 = tpu.matmul %325, %310, %cst_153 {dimension_numbers = #tpu.dot_dimension_numbers<[1], [0], [0], [1], [0, 0, 1, 1], [], []>} : vector<4x128xf32>, vector<128x512xf32>, vector<4x512xf32> -> vector<4x512xf32>
      %327 = arith.mulf %326, %316 : vector<4x512xf32>
      %cst_154 = arith.constant dense<0.000000e+00> : vector<512xf32>
      %328 = vector.multi_reduction <add>, %327, %cst_154 [0] : vector<4x512xf32> to vector<512xf32>
      %329 = vector.shape_cast %328 : vector<512xf32> to vector<1x512xf32>
      %330 = arith.addf %287, %329 : vector<1x512xf32>
      %c2_155 = arith.constant 2 : index
      %c0_156 = arith.constant 0 : index
      %c0_157 = arith.constant 0 : index
      %331 = vector.load %arg4[%c2_155, %c0_156, %c0_157] : memref<3x4x128xf32, #tpu.memory_space<vmem>>, vector<1x4x128xf32>
      %332 = vector.shape_cast %331 : vector<1x4x128xf32> to vector<4x128xf32>
      %cst_158 = arith.constant dense<0.000000e+00> : vector<4x512xf32>
      %333 = tpu.matmul %332, %310, %cst_158 {dimension_numbers = #tpu.dot_dimension_numbers<[1], [0], [0], [1], [0, 0, 1, 1], [], []>} : vector<4x128xf32>, vector<128x512xf32>, vector<4x512xf32> -> vector<4x512xf32>
      %334 = arith.mulf %333, %316 : vector<4x512xf32>
      %cst_159 = arith.constant dense<0.000000e+00> : vector<512xf32>
      %335 = vector.multi_reduction <add>, %334, %cst_159 [0] : vector<4x512xf32> to vector<512xf32>
      %336 = vector.shape_cast %335 : vector<512xf32> to vector<1x512xf32>
      %337 = arith.addf %294, %336 : vector<1x512xf32>
      %cst_160 = arith.constant 1.000000e+00 : f32
      %338 = vector.broadcast %cst_160 : f32 to vector<1x512xf32>
      %339 = arith.subf %338, %62 : vector<1x512xf32>
      %c64_i32_161 = arith.constant 64 : i32
      %340 = vector.broadcast %c64_i32_161 : i32 to vector<1x512xi32>
      %341 = arith.muli %61, %340 : vector<1x512xi32>
      %c8_i32_162 = arith.constant 8 : i32
      %342 = vector.broadcast %c8_i32_162 : i32 to vector<1x512xi32>
      %343 = arith.muli %60, %342 : vector<1x512xi32>
      %344 = arith.addi %341, %343 : vector<1x512xi32>
      %345 = arith.addi %344, %56 : vector<1x512xi32>
      %346 = arith.mulf %64, %63 : vector<1x512xf32>
      %347 = arith.mulf %346, %339 : vector<1x512xf32>
      %c127_i32_163 = arith.constant 127 : i32
      %348 = vector.broadcast %c127_i32_163 : i32 to vector<1x512xi32>
      %349 = arith.andi %345, %348 : vector<1x512xi32>
      %c7_i32_164 = arith.constant 7 : i32
      %350 = vector.broadcast %c7_i32_164 : i32 to vector<1x512xi32>
      %351 = arith.shrsi %345, %350 : vector<1x512xi32>
      %352 = vector.broadcast %349 : vector<1x512xi32> to vector<128x512xi32>
      %353 = arith.cmpi eq, %7, %352 : vector<128x512xi32>
      %354 = arith.extui %353 : vector<128x512xi1> to vector<128x512xi32>
      %355 = arith.sitofp %354 : vector<128x512xi32> to vector<128x512xf32>
      %356 = vector.broadcast %351 : vector<1x512xi32> to vector<4x512xi32>
      %357 = arith.cmpi eq, %8, %356 : vector<4x512xi32>
      %cst_165 = arith.constant 0.000000e+00 : f32
      %358 = vector.shape_cast %347 : vector<1x512xf32> to vector<1x512xf32>
      %359 = vector.broadcast %358 : vector<1x512xf32> to vector<4x512xf32>
      %360 = vector.broadcast %cst_165 : f32 to vector<4x512xf32>
      %361 = arith.select %357, %359, %360 : vector<4x512xi1>, vector<4x512xf32>
      %c0_166 = arith.constant 0 : index
      %c0_167 = arith.constant 0 : index
      %c0_168 = arith.constant 0 : index
      %362 = vector.load %arg4[%c0_166, %c0_167, %c0_168] : memref<3x4x128xf32, #tpu.memory_space<vmem>>, vector<1x4x128xf32>
      %363 = vector.shape_cast %362 : vector<1x4x128xf32> to vector<4x128xf32>
      %cst_169 = arith.constant dense<0.000000e+00> : vector<4x512xf32>
      %364 = tpu.matmul %363, %355, %cst_169 {dimension_numbers = #tpu.dot_dimension_numbers<[1], [0], [0], [1], [0, 0, 1, 1], [], []>} : vector<4x128xf32>, vector<128x512xf32>, vector<4x512xf32> -> vector<4x512xf32>
      %365 = arith.mulf %364, %361 : vector<4x512xf32>
      %cst_170 = arith.constant dense<0.000000e+00> : vector<512xf32>
      %366 = vector.multi_reduction <add>, %365, %cst_170 [0] : vector<4x512xf32> to vector<512xf32>
      %367 = vector.shape_cast %366 : vector<512xf32> to vector<1x512xf32>
      %368 = arith.addf %323, %367 : vector<1x512xf32>
      %c1_171 = arith.constant 1 : index
      %c0_172 = arith.constant 0 : index
      %c0_173 = arith.constant 0 : index
      %369 = vector.load %arg4[%c1_171, %c0_172, %c0_173] : memref<3x4x128xf32, #tpu.memory_space<vmem>>, vector<1x4x128xf32>
      %370 = vector.shape_cast %369 : vector<1x4x128xf32> to vector<4x128xf32>
      %cst_174 = arith.constant dense<0.000000e+00> : vector<4x512xf32>
      %371 = tpu.matmul %370, %355, %cst_174 {dimension_numbers = #tpu.dot_dimension_numbers<[1], [0], [0], [1], [0, 0, 1, 1], [], []>} : vector<4x128xf32>, vector<128x512xf32>, vector<4x512xf32> -> vector<4x512xf32>
      %372 = arith.mulf %371, %361 : vector<4x512xf32>
      %cst_175 = arith.constant dense<0.000000e+00> : vector<512xf32>
      %373 = vector.multi_reduction <add>, %372, %cst_175 [0] : vector<4x512xf32> to vector<512xf32>
      %374 = vector.shape_cast %373 : vector<512xf32> to vector<1x512xf32>
      %375 = arith.addf %330, %374 : vector<1x512xf32>
      %c2_176 = arith.constant 2 : index
      %c0_177 = arith.constant 0 : index
      %c0_178 = arith.constant 0 : index
      %376 = vector.load %arg4[%c2_176, %c0_177, %c0_178] : memref<3x4x128xf32, #tpu.memory_space<vmem>>, vector<1x4x128xf32>
      %377 = vector.shape_cast %376 : vector<1x4x128xf32> to vector<4x128xf32>
      %cst_179 = arith.constant dense<0.000000e+00> : vector<4x512xf32>
      %378 = tpu.matmul %377, %355, %cst_179 {dimension_numbers = #tpu.dot_dimension_numbers<[1], [0], [0], [1], [0, 0, 1, 1], [], []>} : vector<4x128xf32>, vector<128x512xf32>, vector<4x512xf32> -> vector<4x512xf32>
      %379 = arith.mulf %378, %361 : vector<4x512xf32>
      %cst_180 = arith.constant dense<0.000000e+00> : vector<512xf32>
      %380 = vector.multi_reduction <add>, %379, %cst_180 [0] : vector<4x512xf32> to vector<512xf32>
      %381 = vector.shape_cast %380 : vector<512xf32> to vector<1x512xf32>
      %382 = arith.addf %337, %381 : vector<1x512xf32>
      %c64_i32_181 = arith.constant 64 : i32
      %383 = vector.broadcast %c64_i32_181 : i32 to vector<1x512xi32>
      %384 = arith.muli %61, %383 : vector<1x512xi32>
      %c8_i32_182 = arith.constant 8 : i32
      %385 = vector.broadcast %c8_i32_182 : i32 to vector<1x512xi32>
      %386 = arith.muli %60, %385 : vector<1x512xi32>
      %387 = arith.addi %384, %386 : vector<1x512xi32>
      %388 = arith.addi %387, %59 : vector<1x512xi32>
      %389 = arith.mulf %64, %63 : vector<1x512xf32>
      %390 = arith.mulf %389, %62 : vector<1x512xf32>
      %c127_i32_183 = arith.constant 127 : i32
      %391 = vector.broadcast %c127_i32_183 : i32 to vector<1x512xi32>
      %392 = arith.andi %388, %391 : vector<1x512xi32>
      %c7_i32_184 = arith.constant 7 : i32
      %393 = vector.broadcast %c7_i32_184 : i32 to vector<1x512xi32>
      %394 = arith.shrsi %388, %393 : vector<1x512xi32>
      %395 = vector.broadcast %392 : vector<1x512xi32> to vector<128x512xi32>
      %396 = arith.cmpi eq, %7, %395 : vector<128x512xi32>
      %397 = arith.extui %396 : vector<128x512xi1> to vector<128x512xi32>
      %398 = arith.sitofp %397 : vector<128x512xi32> to vector<128x512xf32>
      %399 = vector.broadcast %394 : vector<1x512xi32> to vector<4x512xi32>
      %400 = arith.cmpi eq, %8, %399 : vector<4x512xi32>
      %cst_185 = arith.constant 0.000000e+00 : f32
      %401 = vector.shape_cast %390 : vector<1x512xf32> to vector<1x512xf32>
      %402 = vector.broadcast %401 : vector<1x512xf32> to vector<4x512xf32>
      %403 = vector.broadcast %cst_185 : f32 to vector<4x512xf32>
      %404 = arith.select %400, %402, %403 : vector<4x512xi1>, vector<4x512xf32>
      %c0_186 = arith.constant 0 : index
      %c0_187 = arith.constant 0 : index
      %c0_188 = arith.constant 0 : index
      %405 = vector.load %arg4[%c0_186, %c0_187, %c0_188] : memref<3x4x128xf32, #tpu.memory_space<vmem>>, vector<1x4x128xf32>
      %406 = vector.shape_cast %405 : vector<1x4x128xf32> to vector<4x128xf32>
      %cst_189 = arith.constant dense<0.000000e+00> : vector<4x512xf32>
      %407 = tpu.matmul %406, %398, %cst_189 {dimension_numbers = #tpu.dot_dimension_numbers<[1], [0], [0], [1], [0, 0, 1, 1], [], []>} : vector<4x128xf32>, vector<128x512xf32>, vector<4x512xf32> -> vector<4x512xf32>
      %408 = arith.mulf %407, %404 : vector<4x512xf32>
      %cst_190 = arith.constant dense<0.000000e+00> : vector<512xf32>
      %409 = vector.multi_reduction <add>, %408, %cst_190 [0] : vector<4x512xf32> to vector<512xf32>
      %410 = vector.shape_cast %409 : vector<512xf32> to vector<1x512xf32>
      %411 = arith.addf %368, %410 : vector<1x512xf32>
      %c1_191 = arith.constant 1 : index
      %c0_192 = arith.constant 0 : index
      %c0_193 = arith.constant 0 : index
      %412 = vector.load %arg4[%c1_191, %c0_192, %c0_193] : memref<3x4x128xf32, #tpu.memory_space<vmem>>, vector<1x4x128xf32>
      %413 = vector.shape_cast %412 : vector<1x4x128xf32> to vector<4x128xf32>
      %cst_194 = arith.constant dense<0.000000e+00> : vector<4x512xf32>
      %414 = tpu.matmul %413, %398, %cst_194 {dimension_numbers = #tpu.dot_dimension_numbers<[1], [0], [0], [1], [0, 0, 1, 1], [], []>} : vector<4x128xf32>, vector<128x512xf32>, vector<4x512xf32> -> vector<4x512xf32>
      %415 = arith.mulf %414, %404 : vector<4x512xf32>
      %cst_195 = arith.constant dense<0.000000e+00> : vector<512xf32>
      %416 = vector.multi_reduction <add>, %415, %cst_195 [0] : vector<4x512xf32> to vector<512xf32>
      %417 = vector.shape_cast %416 : vector<512xf32> to vector<1x512xf32>
      %418 = arith.addf %375, %417 : vector<1x512xf32>
      %c2_196 = arith.constant 2 : index
      %c0_197 = arith.constant 0 : index
      %c0_198 = arith.constant 0 : index
      %419 = vector.load %arg4[%c2_196, %c0_197, %c0_198] : memref<3x4x128xf32, #tpu.memory_space<vmem>>, vector<1x4x128xf32>
      %420 = vector.shape_cast %419 : vector<1x4x128xf32> to vector<4x128xf32>
      %cst_199 = arith.constant dense<0.000000e+00> : vector<4x512xf32>
      %421 = tpu.matmul %420, %398, %cst_199 {dimension_numbers = #tpu.dot_dimension_numbers<[1], [0], [0], [1], [0, 0, 1, 1], [], []>} : vector<4x128xf32>, vector<128x512xf32>, vector<4x512xf32> -> vector<4x512xf32>
      %422 = arith.mulf %421, %404 : vector<4x512xf32>
      %cst_200 = arith.constant dense<0.000000e+00> : vector<512xf32>
      %423 = vector.multi_reduction <add>, %422, %cst_200 [0] : vector<4x512xf32> to vector<512xf32>
      %424 = vector.shape_cast %423 : vector<512xf32> to vector<1x512xf32>
      %425 = arith.addf %382, %424 : vector<1x512xf32>
      %426 = tpu.concatenate %411, %418, %425 in 0 : vector<1x512xf32>, vector<1x512xf32>, vector<1x512xf32> -> vector<3x512xf32>
      %427 = arith.addf %42, %426 : vector<3x512xf32>
      %c0_201 = arith.constant 0 : index
      %c0_202 = arith.constant 0 : index
      %c0_203 = arith.constant 0 : index
      %428 = vector.load %arg3[%c0_201, %c0_202, %c0_203] : memref<1x3x512xf32, #tpu.memory_space<vmem>>, vector<1x3x512xf32>
      %429 = vector.shape_cast %428 : vector<1x3x512xf32> to vector<3x512xf32>
      %430 = vector.shape_cast %427 : vector<3x512xf32> to vector<1x3x512xf32>
      tpu.vector_store %arg3[%c0_201, %c0_202, %c0_203], %430 {strides = array<i32>} : memref<1x3x512xf32, #tpu.memory_space<vmem>>, vector<1x3x512xf32>,
    }
    return
  }
  func.func @transform_0(%arg0: i32) -> (i32, i32) {
    %c0_i32 = arith.constant 0 : i32
    %c0_i32_0 = arith.constant 0 : i32
    %c0_i32_1 = arith.constant 0 : i32
    return %c0_i32, %c0_i32_0 : i32, i32
  }
  func.func @transform_1(%arg0: i32) -> (i32, i32, i32) {
    %c0_i32 = arith.constant 0 : i32
    %c0_i32_0 = arith.constant 0 : i32
    %c0_i32_1 = arith.constant 0 : i32
    return %arg0, %c0_i32, %c0_i32_0 : i32, i32, i32
  }
  func.func @transform_2(%arg0: i32) -> (i32, i32, i32) {
    %c0_i32 = arith.constant 0 : i32
    %c0_i32_0 = arith.constant 0 : i32
    %c0_i32_1 = arith.constant 0 : i32
    return %arg0, %c0_i32, %c0_i32_0 : i32, i32, i32
  }
}

</mosaic_0001>

<llo_original>
// kernel: tpu_custom_call.1
$region0: #{tpu_custom_call.1}
  #allocation0 [shape = 'u32[]', space=smem, size = 0x4, offset = 0x4, fixed_abs, tag = 'smem constant byte address 0x4 - core index']
  #allocation1 [shape = 'u32[72,128]{1,0:T(1,128)}', space=vmem, size = 0x9000, scoped, tag = 'internal scratch']
  %s0 = inlined_call_operand.hbm [shape: f32[8,128], index: 0, kind: input, shape index: {}]
  %s1 = inlined_call_operand.hbm [shape: f32[128,128], index: 1, kind: input, shape index: {}]
  %s2 = inlined_call_operand.hbm [shape: f32[8,128], index: 2, kind: output, shape index: {}]
  %s3 = sld [smem:[#allocation0]]
  $region26: #{tpu_custom_call.1} parent=0
    _
  %s5 = ssub.s32 1, %s3
  %s6 = scalar_select 0, %s5, %s3
  $region1: #{tpu_custom_call.1} parent=0
    #allocation2 [shape = 'u8[4096]{0}', space=vmem, size = 0x1000, scoped, tag = 'input window, operand 0, single buffered']
    #allocation3 [shape = 's32[1]{0}', space=sflag, size = 0x4, scoped, tag = 'scoped memory for tpu_custom_call.1']
    #allocation4 [shape = 's32[1]{0}', space=sflag, size = 0x4, scoped, tag = 'scoped memory for tpu_custom_call.1']
    #allocation5 [shape = 'u8[65536]{0}', space=vmem, size = 0x10000, scoped, tag = 'input window, operand 1, single buffered']
    #allocation6 [shape = 's32[1]{0}', space=sflag, size = 0x4, scoped, tag = 'scoped memory for tpu_custom_call.1']
    #allocation7 [shape = 'u8[4096]{0}', space=vmem, size = 0x1000, scoped, tag = 'output window, operand 0, single buffered']
    %7 = vsyncpa [#allocation3], 0
    %8 = vsyncpa [#allocation6], 0
    %9 = vsyncpa [#allocation4], 0
    // Predicated region
    $region2: #{tpu_custom_call.1} parent=1 // pred_check
      _
    $region3: #{tpu_custom_call.1} parent=1 // pred_check_branch
      %11 = sbr.rel (0) target = $region5
    $region4: #{tpu_custom_call.1} parent=1 // pred_region
      %13 = vsyncadd [#allocation3], 0
      %s15 = sshll.u32 %s0, 4
      %s16 = int_to_ptr.hbm [resolvable:$true] %s15
      %s17 = sshll.u32 [#allocation2], 4
      %s18 = int_to_ptr.vmem [resolvable:$true] %s17
      %20 = dma.hbm_to_vmem [thread:$0]  %s16, 128, %s18, [#allocation3]
    $region5: #{tpu_custom_call.1} parent=1 // pred_fallthru
      _
    // Predicated region
    $region6: #{tpu_custom_call.1} parent=1 // pred_check
      _
    $region7: #{tpu_custom_call.1} parent=1 // pred_check_branch
      %22 = sbr.rel (0) target = $region9
    $region8: #{tpu_custom_call.1} parent=1 // pred_region
      %24 = vsyncadd [#allocation6], 0
      %s25 = sshll.u32 %s1, 4
      %s26 = int_to_ptr.hbm [resolvable:$true] %s25
      %s27 = sshll.u32 [#allocation5], 4
      %s28 = int_to_ptr.vmem [resolvable:$true] %s27
      %33 = dma.hbm_to_vmem [thread:$0]  %s26, 2048, %s28, [#allocation6], 128, 128, 8
    $region9: #{tpu_custom_call.1} parent=1 // pred_fallthru
      _
    // Predicated region
    $region10: #{tpu_custom_call.1} parent=1 // pred_check
      _
    $region11: #{tpu_custom_call.1} parent=1 // pred_check_branch
      %35 = sbr.rel (0) target = $region13
    $region12: #{tpu_custom_call.1} parent=1 // pred_region
      %37 = dma.done [#allocation3], 128
    $region13: #{tpu_custom_call.1} parent=1 // pred_fallthru
      _
    // Predicated region
    $region14: #{tpu_custom_call.1} parent=1 // pred_check
      _
    $region15: #{tpu_custom_call.1} parent=1 // pred_check_branch
      %39 = sbr.rel (0) target = $region17
    $region16: #{tpu_custom_call.1} parent=1 // pred_region
      %41 = dma.done [#allocation6], 2048
    $region17: #{tpu_custom_call.1} parent=1 // pred_fallthru
      _
    %v42 = vld [vmem:[#allocation2] sm:$0xff]
    %v43 = vld [vmem:[#allocation5] sm:$0xff]
    %v44 = vld [vmem:[#allocation5 + $0x8] sm:$0xff]
    %v45 = vld [vmem:[#allocation5 + $0x10] sm:$0xff]
    %v46 = vld [vmem:[#allocation5 + $0x18] sm:$0xff]
    %v47 = vld [vmem:[#allocation5 + $0x20] sm:$0xff]
    %v48 = vld [vmem:[#allocation5 + $0x28] sm:$0xff]
    %v49 = vld [vmem:[#allocation5 + $0x30] sm:$0xff]
    %v50 = vld [vmem:[#allocation5 + $0x38] sm:$0xff]
    %v51 = vld [vmem:[#allocation5 + $0x40] sm:$0xff]
    %v52 = vld [vmem:[#allocation5 + $0x48] sm:$0xff]
    %v53 = vld [vmem:[#allocation5 + $0x50] sm:$0xff]
    %v54 = vld [vmem:[#allocation5 + $0x58] sm:$0xff]
    %v55 = vld [vmem:[#allocation5 + $0x60] sm:$0xff]
    %v56 = vld [vmem:[#allocation5 + $0x68] sm:$0xff]
    %v57 = vld [vmem:[#allocation5 + $0x70] sm:$0xff]
    %v58 = vld [vmem:[#allocation5 + $0x78] sm:$0xff]
    %v59 = vand.u32 %v58, 4294901760
    %60 = vmatpush.msra.mxu0 %v59
    %v61 = vand.u32 %v57, 4294901760
    %62 = vmatpush.msra.mxu0 %v61
    %v63 = vand.u32 %v56, 4294901760
    %64 = vmatpush.msra.mxu0 %v63
    %v65 = vand.u32 %v55, 4294901760
    %66 = vmatpush.msra.mxu0 %v65
    %v67 = vand.u32 %v54, 4294901760
    %68 = vmatpush.msra.mxu0 %v67
    %v69 = vand.u32 %v53, 4294901760
    %70 = vmatpush.msra.mxu0 %v69
    %v71 = vand.u32 %v52, 4294901760
    %72 = vmatpush.msra.mxu0 %v71
    %v73 = vand.u32 %v51, 4294901760
    %74 = vmatpush.msra.mxu0 %v73
    %v75 = vand.u32 %v50, 4294901760
    %76 = vmatpush.msra.mxu0 %v75
    %v77 = vand.u32 %v49, 4294901760
    %78 = vmatpush.msra.mxu0 %v77
    %v79 = vand.u32 %v48, 4294901760
    %80 = vmatpush.msra.mxu0 %v79
    %v81 = vand.u32 %v47, 4294901760
    %82 = vmatpush.msra.mxu0 %v81
    %v83 = vand.u32 %v46, 4294901760
    %84 = vmatpush.msra.mxu0 %v83
    %v85 = vand.u32 %v45, 4294901760
    %86 = vmatpush.msra.mxu0 %v85
    %v87 = vand.u32 %v44, 4294901760
    %88 = vmatpush.msra.mxu0 %v87
    %v89 = vand.u32 %v43, 4294901760
    %90 = vmatpush.msra.mxu0 %v89
    %v91 = vand.u32 %v42, 4294901760
    %v92 = vsub.f32 %v42, %v91
    %v93 = vand.u32 %v92, 4294901760
    %v94 = vsub.f32 %v92, %v93
    %v95 = vand.u32 %v94, 4294901760
    %96 = vmatmul.f32.gmra.mxu0 %v95
    %v97 = vpop.f32.mrf.mxu0
    %v98 = vadd.f32 0.0, %v97
    %99 = vdwg.mxu0
    %v100 = vand.u32 %v58, 4294901760
    %v101 = vsub.f32 %v58, %v100
    %v102 = vand.u32 %v101, 4294901760
    %v103 = vsub.f32 %v101, %v102
    %v104 = vand.u32 %v103, 4294901760
    %105 = vmatpush.msra.mxu0 %v104
    %v106 = vand.u32 %v57, 4294901760
    %v107 = vsub.f32 %v57, %v106
    %v108 = vand.u32 %v107, 4294901760
    %v109 = vsub.f32 %v107, %v108
    %v110 = vand.u32 %v109, 4294901760
    %111 = vmatpush.msra.mxu0 %v110
    %v112 = vand.u32 %v56, 4294901760
    %v113 = vsub.f32 %v56, %v112
    %v114 = vand.u32 %v113, 4294901760
    %v115 = vsub.f32 %v113, %v114
    %v116 = vand.u32 %v115, 4294901760
    %117 = vmatpush.msra.mxu0 %v116
    %v118 = vand.u32 %v55, 4294901760
    %v119 = vsub.f32 %v55, %v118
    %v120 = vand.u32 %v119, 4294901760
    %v121 = vsub.f32 %v119, %v120
    %v122 = vand.u32 %v121, 4294901760
    %123 = vmatpush.msra.mxu0 %v122
    %v124 = vand.u32 %v54, 4294901760
    %v125 = vsub.f32 %v54, %v124
    %v126 = vand.u32 %v125, 4294901760
    %v127 = vsub.f32 %v125, %v126
    %v128 = vand.u32 %v127, 4294901760
    %129 = vmatpush.msra.mxu0 %v128
    %v130 = vand.u32 %v53, 4294901760
    %v131 = vsub.f32 %v53, %v130
    %v132 = vand.u32 %v131, 4294901760
    %v133 = vsub.f32 %v131, %v132
    %v134 = vand.u32 %v133, 4294901760
    %135 = vmatpush.msra.mxu0 %v134
    %v136 = vand.u32 %v52, 4294901760
    %v137 = vsub.f32 %v52, %v136
    %v138 = vand.u32 %v137, 4294901760
    %v139 = vsub.f32 %v137, %v138
    %v140 = vand.u32 %v139, 4294901760
    %141 = vmatpush.msra.mxu0 %v140
    %v142 = vand.u32 %v51, 4294901760
    %v143 = vsub.f32 %v51, %v142
    %v144 = vand.u32 %v143, 4294901760
    %v145 = vsub.f32 %v143, %v144
    %v146 = vand.u32 %v145, 4294901760
    %147 = vmatpush.msra.mxu0 %v146
    %v148 = vand.u32 %v50, 4294901760
    %v149 = vsub.f32 %v50, %v148
    %v150 = vand.u32 %v149, 4294901760
    %v151 = vsub.f32 %v149, %v150
    %v152 = vand.u32 %v151, 4294901760
    %153 = vmatpush.msra.mxu0 %v152
    %v154 = vand.u32 %v49, 4294901760
    %v155 = vsub.f32 %v49, %v154
    %v156 = vand.u32 %v155, 4294901760
    %v157 = vsub.f32 %v155, %v156
    %v158 = vand.u32 %v157, 4294901760
    %159 = vmatpush.msra.mxu0 %v158
    %v160 = vand.u32 %v48, 4294901760
    %v161 = vsub.f32 %v48, %v160
    %v162 = vand.u32 %v161, 4294901760
    %v163 = vsub.f32 %v161, %v162
    %v164 = vand.u32 %v163, 4294901760
    %165 = vmatpush.msra.mxu0 %v164
    %v166 = vand.u32 %v47, 4294901760
    %v167 = vsub.f32 %v47, %v166
    %v168 = vand.u32 %v167, 4294901760
    %v169 = vsub.f32 %v167, %v168
    %v170 = vand.u32 %v169, 4294901760
    %171 = vmatpush.msra.mxu0 %v170
    %v172 = vand.u32 %v46, 4294901760
    %v173 = vsub.f32 %v46, %v172
    %v174 = vand.u32 %v173, 4294901760
    %v175 = vsub.f32 %v173, %v174
    %v176 = vand.u32 %v175, 4294901760
    %177 = vmatpush.msra.mxu0 %v176
    %v178 = vand.u32 %v45, 4294901760
    %v179 = vsub.f32 %v45, %v178
    %v180 = vand.u32 %v179, 4294901760
    %v181 = vsub.f32 %v179, %v180
    %v182 = vand.u32 %v181, 4294901760
    %183 = vmatpush.msra.mxu0 %v182
    %v184 = vand.u32 %v44, 4294901760
    %v185 = vsub.f32 %v44, %v184
    %v186 = vand.u32 %v185, 4294901760
    %v187 = vsub.f32 %v185, %v186
    %v188 = vand.u32 %v187, 4294901760
    %189 = vmatpush.msra.mxu0 %v188
    %v190 = vand.u32 %v43, 4294901760
    %v191 = vsub.f32 %v43, %v190
    %v192 = vand.u32 %v191, 4294901760
    %v193 = vsub.f32 %v191, %v192
    %v194 = vand.u32 %v193, 4294901760
    %195 = vmatpush.msra.mxu0 %v194
    %v196 = vand.u32 %v42, 4294901760
    %197 = vmatmul.f32.gmra.mxu0 %v196
    %v198 = vpop.f32.mrf.mxu0
    %v199 = vadd.f32 %v98, %v198
    %200 = vdwg.mxu0
    %v201 = vand.u32 %v58, 4294901760
    %v202 = vsub.f32 %v58, %v201
    %203 = vmatpush.msra.mxu0 %v202
    %v204 = vand.u32 %v57, 4294901760
    %v205 = vsub.f32 %v57, %v204
    %206 = vmatpush.msra.mxu0 %v205
    %v207 = vand.u32 %v56, 4294901760
    %v208 = vsub.f32 %v56, %v207
    %209 = vmatpush.msra.mxu0 %v208
    %v210 = vand.u32 %v55, 4294901760
    %v211 = vsub.f32 %v55, %v210
    %212 = vmatpush.msra.mxu0 %v211
    %v213 = vand.u32 %v54, 4294901760
    %v214 = vsub.f32 %v54, %v213
    %215 = vmatpush.msra.mxu0 %v214
    %v216 = vand.u32 %v53, 4294901760
    %v217 = vsub.f32 %v53, %v216
    %218 = vmatpush.msra.mxu0 %v217
    %v219 = vand.u32 %v52, 4294901760
    %v220 = vsub.f32 %v52, %v219
    %221 = vmatpush.msra.mxu0 %v220
    %v222 = vand.u32 %v51, 4294901760
    %v223 = vsub.f32 %v51, %v222
    %224 = vmatpush.msra.mxu0 %v223
    %v225 = vand.u32 %v50, 4294901760
    %v226 = vsub.f32 %v50, %v225
    %227 = vmatpush.msra.mxu0 %v226
    %v228 = vand.u32 %v49, 4294901760
    %v229 = vsub.f32 %v49, %v228
    %230 = vmatpush.msra.mxu0 %v229
    %v231 = vand.u32 %v48, 4294901760
    %v232 = vsub.f32 %v48, %v231
    %233 = vmatpush.msra.mxu0 %v232
    %v234 = vand.u32 %v47, 4294901760
    %v235 = vsub.f32 %v47, %v234
    %236 = vmatpush.msra.mxu0 %v235
    %v237 = vand.u32 %v46, 4294901760
    %v238 = vsub.f32 %v46, %v237
    %239 = vmatpush.msra.mxu0 %v238
    %v240 = vand.u32 %v45, 4294901760
    %v241 = vsub.f32 %v45, %v240
    %242 = vmatpush.msra.mxu0 %v241
    %v243 = vand.u32 %v44, 4294901760
    %v244 = vsub.f32 %v44, %v243
    %245 = vmatpush.msra.mxu0 %v244
    %v246 = vand.u32 %v43, 4294901760
    %v247 = vsub.f32 %v43, %v246
    %248 = vmatpush.msra.mxu0 %v247
    %v249 = vand.u32 %v42, 4294901760
    %v250 = vsub.f32 %v42, %v249
    %251 = vmatmul.f32.gmra.mxu0 %v250
    %v252 = vpop.f32.mrf.mxu0
    %v253 = vadd.f32 %v199, %v252
    %254 = vdwg.mxu0
    %v255 = vand.u32 %v58, 4294901760
    %256 = vmatpush.msra.mxu0 %v255
    %v257 = vand.u32 %v57, 4294901760
    %258 = vmatpush.msra.mxu0 %v257
    %v259 = vand.u32 %v56, 4294901760
    %260 = vmatpush.msra.mxu0 %v259
    %v261 = vand.u32 %v55, 4294901760
    %262 = vmatpush.msra.mxu0 %v261
    %v263 = vand.u32 %v54, 4294901760
    %264 = vmatpush.msra.mxu0 %v263
    %v265 = vand.u32 %v53, 4294901760
    %266 = vmatpush.msra.mxu0 %v265
    %v267 = vand.u32 %v52, 4294901760
    %268 = vmatpush.msra.mxu0 %v267
    %v269 = vand.u32 %v51, 4294901760
    %270 = vmatpush.msra.mxu0 %v269
    %v271 = vand.u32 %v50, 4294901760
    %272 = vmatpush.msra.mxu0 %v271
    %v273 = vand.u32 %v49, 4294901760
    %274 = vmatpush.msra.mxu0 %v273
    %v275 = vand.u32 %v48, 4294901760
    %276 = vmatpush.msra.mxu0 %v275
    %v277 = vand.u32 %v47, 4294901760
    %278 = vmatpush.msra.mxu0 %v277
    %v279 = vand.u32 %v46, 4294901760
    %280 = vmatpush.msra.mxu0 %v279
    %v281 = vand.u32 %v45, 4294901760
    %282 = vmatpush.msra.mxu0 %v281
    %v283 = vand.u32 %v44, 4294901760
    %284 = vmatpush.msra.mxu0 %v283
    %v285 = vand.u32 %v43, 4294901760
    %286 = vmatpush.msra.mxu0 %v285
    %v287 = vand.u32 %v42, 4294901760
    %v288 = vsub.f32 %v42, %v287
    %v289 = vand.u32 %v288, 4294901760
    %290 = vmatmul.f32.gmra.mxu0 %v289
    %v291 = vpop.f32.mrf.mxu0
    %v292 = vadd.f32 %v253, %v291
    %293 = vdwg.mxu0
    %v294 = vand.u32 %v58, 4294901760
    %v295 = vsub.f32 %v58, %v294
    %v296 = vand.u32 %v295, 4294901760
    %297 = vmatpush.msra.mxu0 %v296
    %v298 = vand.u32 %v57, 4294901760
    %v299 = vsub.f32 %v57, %v298
    %v300 = vand.u32 %v299, 4294901760
    %301 = vmatpush.msra.mxu0 %v300
    %v302 = vand.u32 %v56, 4294901760
    %v303 = vsub.f32 %v56, %v302
    %v304 = vand.u32 %v303, 4294901760
    %305 = vmatpush.msra.mxu0 %v304
    %v306 = vand.u32 %v55, 4294901760
    %v307 = vsub.f32 %v55, %v306
    %v308 = vand.u32 %v307, 4294901760
    %309 = vmatpush.msra.mxu0 %v308
    %v310 = vand.u32 %v54, 4294901760
    %v311 = vsub.f32 %v54, %v310
    %v312 = vand.u32 %v311, 4294901760
    %313 = vmatpush.msra.mxu0 %v312
    %v314 = vand.u32 %v53, 4294901760
    %v315 = vsub.f32 %v53, %v314
    %v316 = vand.u32 %v315, 4294901760
    %317 = vmatpush.msra.mxu0 %v316
    %v318 = vand.u32 %v52, 4294901760
    %v319 = vsub.f32 %v52, %v318
    %v320 = vand.u32 %v319, 4294901760
    %321 = vmatpush.msra.mxu0 %v320
    %v322 = vand.u32 %v51, 4294901760
    %v323 = vsub.f32 %v51, %v322
    %v324 = vand.u32 %v323, 4294901760
    %325 = vmatpush.msra.mxu0 %v324
    %v326 = vand.u32 %v50, 4294901760
    %v327 = vsub.f32 %v50, %v326
    %v328 = vand.u32 %v327, 4294901760
    %329 = vmatpush.msra.mxu0 %v328
    %v330 = vand.u32 %v49, 4294901760
    %v331 = vsub.f32 %v49, %v330
    %v332 = vand.u32 %v331, 4294901760
    %333 = vmatpush.msra.mxu0 %v332
    %v334 = vand.u32 %v48, 4294901760
    %v335 = vsub.f32 %v48, %v334
    %v336 = vand.u32 %v335, 4294901760
    %337 = vmatpush.msra.mxu0 %v336
    %v338 = vand.u32 %v47, 4294901760
    %v339 = vsub.f32 %v47, %v338
    %v340 = vand.u32 %v339, 4294901760
    %341 = vmatpush.msra.mxu0 %v340
    %v342 = vand.u32 %v46, 4294901760
    %v343 = vsub.f32 %v46, %v342
    %v344 = vand.u32 %v343, 4294901760
    %345 = vmatpush.msra.mxu0 %v344
    %v346 = vand.u32 %v45, 4294901760
    %v347 = vsub.f32 %v45, %v346
    %v348 = vand.u32 %v347, 4294901760
    %349 = vmatpush.msra.mxu0 %v348
    %v350 = vand.u32 %v44, 4294901760
    %v351 = vsub.f32 %v44, %v350
    %v352 = vand.u32 %v351, 4294901760
    %353 = vmatpush.msra.mxu0 %v352
    %v354 = vand.u32 %v43, 4294901760
    %v355 = vsub.f32 %v43, %v354
    %v356 = vand.u32 %v355, 4294901760
    %357 = vmatpush.msra.mxu0 %v356
    %v358 = vand.u32 %v42, 4294901760
    %359 = vmatmul.f32.gmra.mxu0 %v358
    %v360 = vpop.f32.mrf.mxu0
    %v361 = vadd.f32 %v292, %v360
    %362 = vdwg.mxu0
    %v363 = vand.u32 %v58, 4294901760
    %364 = vmatpush.msra.mxu0 %v363
    %v365 = vand.u32 %v57, 4294901760
    %366 = vmatpush.msra.mxu0 %v365
    %v367 = vand.u32 %v56, 4294901760
    %368 = vmatpush.msra.mxu0 %v367
    %v369 = vand.u32 %v55, 4294901760
    %370 = vmatpush.msra.mxu0 %v369
    %v371 = vand.u32 %v54, 4294901760
    %372 = vmatpush.msra.mxu0 %v371
    %v373 = vand.u32 %v53, 4294901760
    %374 = vmatpush.msra.mxu0 %v373
    %v375 = vand.u32 %v52, 4294901760
    %376 = vmatpush.msra.mxu0 %v375
    %v377 = vand.u32 %v51, 4294901760
    %378 = vmatpush.msra.mxu0 %v377
    %v379 = vand.u32 %v50, 4294901760
    %380 = vmatpush.msra.mxu0 %v379
    %v381 = vand.u32 %v49, 4294901760
    %382 = vmatpush.msra.mxu0 %v381
    %v383 = vand.u32 %v48, 4294901760
    %384 = vmatpush.msra.mxu0 %v383
    %v385 = vand.u32 %v47, 4294901760
    %386 = vmatpush.msra.mxu0 %v385
    %v387 = vand.u32 %v46, 4294901760
    %388 = vmatpush.msra.mxu0 %v387
    %v389 = vand.u32 %v45, 4294901760
    %390 = vmatpush.msra.mxu0 %v389
    %v391 = vand.u32 %v44, 4294901760
    %392 = vmatpush.msra.mxu0 %v391
    %v393 = vand.u32 %v43, 4294901760
    %394 = vmatpush.msra.mxu0 %v393
    %v395 = vand.u32 %v42, 4294901760
    %396 = vmatmul.f32.gmra.mxu0 %v395
    %v397 = vpop.f32.mrf.mxu0
    %v398 = vadd.f32 %v361, %v397
    %399 = vdwg.mxu0
    %400 = vst [vmem:[#allocation7] sm:$0xff] %v398
    // Predicated region
    $region18: #{tpu_custom_call.1} parent=1 // pred_check
      _
    $region19: #{tpu_custom_call.1} parent=1 // pred_check_branch
      %402 = sbr.rel (0) target = $region21
    $region20: #{tpu_custom_call.1} parent=1 // pred_region
      %404 = vsyncadd [#allocation4], 0
      %s406 = sshll.u32 [#allocation7], 4
      %s407 = int_to_ptr.vmem [resolvable:$true] %s406
      %s408 = sshll.u32 %s2, 4
      %s409 = int_to_ptr.hbm [resolvable:$true] %s408
      %411 = dma.vmem_to_hbm [thread:$0]  %s407, 128, %s409, [#allocation4]
    $region21: #{tpu_custom_call.1} parent=1 // pred_fallthru
      _
    // Predicated region
    $region22: #{tpu_custom_call.1} parent=1 // pred_check
      _
    $region23: #{tpu_custom_call.1} parent=1 // pred_check_branch
      %413 = sbr.rel (0) target = $region25
    $region24: #{tpu_custom_call.1} parent=1 // pred_region
      %415 = dma.done [#allocation4], 128
    $region25: #{tpu_custom_call.1} parent=1 // pred_fallthru
      _
    %416 = vsyncpa [#allocation3], 1
    %417 = vsyncpa [#allocation6], 1
    %418 = vsyncpa [#allocation4], 1

// kernel: tpu_custom_call.1
$region0: #{tpu_custom_call.1}
  #allocation0 [shape = 'u32[]', space=smem, size = 0x4, offset = 0x4, fixed_abs, tag = 'smem constant byte address 0x4 - core index']
  #allocation1 [shape = 'u32[72,128]{1,0:T(1,128)}', space=vmem, size = 0x9000, scoped, tag = 'internal scratch']
  #allocation2 [shape = 'f32[3,4,128]{2,1,0:T(4,128)}', space=vmem, size = 0x1800, scoped, tag = 'scratch operand']
  %s0 = inlined_call_operand.vmem [shape: f32[3,512], index: 0, kind: input, shape index: {}]
  %s1 = inlined_call_operand.vmem [shape: f32[2,3,512], index: 1, kind: input, shape index: {}]
  %s2 = inlined_call_operand.vmem [shape: f32[2,3,512], index: 2, kind: output, shape index: {}]
  %s3 = sld [smem:[#allocation0]]
  $region48: #{tpu_custom_call.1} parent=0
    _
  %s5 = ssub.s32 1, %s3
  %s6 = scalar_select 0, %s5, %s3
  loop: start=0, step=1, limit=4
  $region2: #{tpu_custom_call.1} parent=0 // loop_pre_header
    _
  $region3: #{tpu_custom_call.1} parent=0 // loop_header
    %s8 = sphi 0, %s12
    %p9 = scmp.ge.s32.totalorder %s8, 4
    %s16 = sphi 0, %s16
    %s18 = sphi 0, %s16
    %s19 = sphi 0, %s18
    %s33 = sphi 0, %s19
    %s39 = sphi 0, %s41
    %s42 = sphi 0, %s39
    %s43 = sphi 0, %s42
    %s59 = sphi 0, %s43
    %s65 = sphi 0, %s67
    %s68 = sphi 0, %s65
    %s69 = sphi 0, %s68
    %s85 = sphi 0, %s69
  $region4: #{tpu_custom_call.1} parent=0 // loop_header_branch
    %11 = sbr.rel (%p9) target = $region8
  $region5: #{tpu_custom_call.1} parent=0 // loop_body
    %s13 = ssub.s32 %s8, 1
    %s14 = ssub.s32 %s8, 2
    %s15 = sadd.s32 %s8, 1
    %s17 = sadd.s32 %s16, 1
    %p20 = scmp.eq.s32.totalorder %s8, 1
    %p21 = scmp.ne.s32.totalorder %s16, %s18
    %p22 = scmp.eq.s32.totalorder %s8, 0
    %p23 = por %p21, %p22
    %p24 = scmp.ne.s32.totalorder %s16, %s18
    %p25 = scmp.eq.s32.totalorder %s13, 1
    %p26 = por %p24, %p25
    %p27 = scmp.ne.s32.totalorder %s18, %s19
    %p28 = scmp.eq.s32.totalorder %s13, 0
    %p29 = por %p27, %p28
    %p30 = scmp.ne.s32.totalorder %s18, %s19
    %p31 = scmp.eq.s32.totalorder %s14, 1
    %p32 = por %p30, %p31
    %p34 = scmp.ne.s32.totalorder %s19, %s33
    %p35 = scmp.eq.s32.totalorder %s14, 0
    %p36 = por %p34, %p35
    %s37 = ssub.s32 %s8, %s15
    %p38 = scmp.eq.s32.totalorder %s37, 0
    %s40 = sadd.s32 %s39, 1
    %s41 = scalar_select %p38, %s39, %s40
    %p44 = pneg %p38
    %p45 = scmp.eq.s32.totalorder %s8, 1
    %p46 = por %p44, %p45
    %p47 = scmp.ne.s32.totalorder %s39, %s42
    %p48 = scmp.eq.s32.totalorder %s8, 0
    %p49 = por %p47, %p48
    %p50 = scmp.ne.s32.totalorder %s39, %s42
    %p51 = scmp.eq.s32.totalorder %s13, 1
    %p52 = por %p50, %p51
    %p53 = scmp.ne.s32.totalorder %s42, %s43
    %p54 = scmp.eq.s32.totalorder %s13, 0
    %p55 = por %p53, %p54
    %p56 = scmp.ne.s32.totalorder %s42, %s43
    %p57 = scmp.eq.s32.totalorder %s14, 1
    %p58 = por %p56, %p57
    %p60 = scmp.ne.s32.totalorder %s43, %s59
    %p61 = scmp.eq.s32.totalorder %s14, 0
    %p62 = por %p60, %p61
    %s63 = ssub.s32 %s8, %s15
    %p64 = scmp.eq.s32.totalorder %s63, 0
    %s66 = sadd.s32 %s65, 1
    %s67 = scalar_select %p64, %s65, %s66
    %p70 = pneg %p64
    %p71 = scmp.eq.s32.totalorder %s8, 1
    %p72 = por %p70, %p71
    %p73 = scmp.ne.s32.totalorder %s65, %s68
    %p74 = scmp.eq.s32.totalorder %s8, 0
    %p75 = por %p73, %p74
    %p76 = scmp.ne.s32.totalorder %s65, %s68
    %p77 = scmp.eq.s32.totalorder %s13, 1
    %p78 = por %p76, %p77
    %p79 = scmp.ne.s32.totalorder %s68, %s69
    %p80 = scmp.eq.s32.totalorder %s13, 0
    %p81 = por %p79, %p80
    %p82 = scmp.ne.s32.totalorder %s68, %s69
    %p83 = scmp.eq.s32.totalorder %s14, 1
    %p84 = por %p82, %p83
    %p86 = scmp.ne.s32.totalorder %s69, %s85
    %p87 = scmp.eq.s32.totalorder %s14, 0
    %p88 = por %p86, %p87
    %p89 = scmp.le.s32.totalorder 1, %s8
    %p90 = scmp.lt.s32.totalorder %s8, 3
    %p91 = pnand %p89, %p90
    %p92 = pneg %p91
    // Predicated region
    $region9: #{tpu_custom_call.1} parent=5 // pred_check
      _
    $region10: #{tpu_custom_call.1} parent=5 // pred_check_branch
      %94 = sbr.rel (%p91) target = $region12
    $region11: #{tpu_custom_call.1} parent=5 // pred_region
      %s95 = ssub.s32 %s8, 1
      // Predicated region
      $region13: #{tpu_custom_call.1} parent=11 // pred_check
        %p96 = pneg %p29
      $region14: #{tpu_custom_call.1} parent=11 // pred_check_branch
        %98 = sbr.rel (%p96) target = $region16
      $region15: #{tpu_custom_call.1} parent=11 // pred_region
        _
      $region16: #{tpu_custom_call.1} parent=11 // pred_fallthru
        _
    $region12: #{tpu_custom_call.1} parent=5 // pred_fallthru
      _
    %p99 = scmp.lt.s32.totalorder %s8, 2
    // Predicated region
    $region17: #{tpu_custom_call.1} parent=5 // pred_check
      %p100 = pneg %p99
    $region18: #{tpu_custom_call.1} parent=5 // pred_check_branch
      %102 = sbr.rel (%p100) target = $region20
    $region19: #{tpu_custom_call.1} parent=5 // pred_region
      // Predicated region
      $region21: #{tpu_custom_call.1} parent=19 // pred_check
        %p103 = pneg %p49
      $region22: #{tpu_custom_call.1} parent=19 // pred_check_branch
        %105 = sbr.rel (%p103) target = $region24
      $region23: #{tpu_custom_call.1} parent=19 // pred_region
        %p106 = scmp.lt.s32.totalorder %s8, 1
        %s107 = scalar_select %p106, %s8, 1
        %s108 = smul.addr %s107, 4
        %s109 = smul.addr %s108, 4
        %s110 = scalar_lea.vmem %s1, %s109
      $region24: #{tpu_custom_call.1} parent=19 // pred_fallthru
        _
    $region20: #{tpu_custom_call.1} parent=5 // pred_fallthru
      _
    %p111 = scmp.le.s32.totalorder 1, %s8
    %p112 = scmp.lt.s32.totalorder %s8, 3
    %p113 = pnand %p111, %p112
    %p114 = pneg %p113
    // Predicated region
    $region25: #{tpu_custom_call.1} parent=5 // pred_check
      _
    $region26: #{tpu_custom_call.1} parent=5 // pred_check_branch
      %116 = sbr.rel (%p113) target = $region28
    $region27: #{tpu_custom_call.1} parent=5 // pred_region
      %s117 = ssub.s32 %s8, 1
      %p118 = pneg %p29
      %p119 = pneg %p26
      %p120 = scmp.lt.s32.totalorder %s13, 1
      %s121 = scalar_select %p120, %s13, 1
      %s122 = smul.addr %s121, 4
      %s123 = smul.addr %s122, 4
      %s124 = scalar_lea.vmem %s1, %s123
      %p125 = pneg %p55
      %p126 = pneg %p52
      %p127 = pneg %p81
      %p128 = pneg %p78
      %p129 = scmp.lt.s32.totalorder %s13, 1
      %s130 = scalar_select %p129, %s13, 1
      %s131 = smul.addr %s130, 4
      %s132 = smul.addr %s131, 4
      %s133 = scalar_lea.vmem %s2, %s132
      %p134 = scmp.lt.s32.totalorder %s13, 1
      %s135 = scalar_select %p134, %s13, 1
      %s136 = smul.addr %s135, 4
      %s137 = smul.addr %s136, 4
      %s138 = scalar_lea.vmem %s1, %s137
      %p139 = scmp.lt.s32.totalorder %s13, 1
      %s140 = scalar_select %p139, %s13, 1
      %s141 = smul.addr %s140, 4
      %s142 = smul.addr %s141, 4
      %s143 = scalar_lea.vmem %s2, %s142
      %v144 = vld [vmem:[%s138] sm:$0x77]
      %v145 = vld [vmem:[%s138 + $0x8] sm:$0x77]
      %v146 = vmul.f32 %v144, 0.0625
      %v147 = vmul.f32 %v145, 0.0625
      %148 = vst [vmem:[%s143] sm:$0x77] %v146
      %149 = vst [vmem:[%s143 + $0x8] sm:$0x77] %v147
      %v150 = vlaneseq
      %v151 = vshrl.u32 %v150, 7
      %v152 = vadd.s32 %v151, 8
      %v153 = vadd.s32 %v151, 16
      %v154 = vadd.s32 %v151, 24
      %v155 = vadd.s32 %v151, 32
      %v156 = vadd.s32 %v151, 40
      %v157 = vadd.s32 %v151, 48
      %v158 = vadd.s32 %v151, 56
      %v159 = vadd.s32 %v151, 64
      %v160 = vadd.s32 %v151, 72
      %v161 = vadd.s32 %v151, 80
      %v162 = vadd.s32 %v151, 88
      %v163 = vadd.s32 %v151, 96
      %v164 = vadd.s32 %v151, 104
      %v165 = vadd.s32 %v151, 112
      %v166 = vadd.s32 %v151, 120
      loop: start=0, step=1, limit=4
      $region29: #{tpu_custom_call.1} parent=27 // loop_pre_header
        _
      $region30: #{tpu_custom_call.1} parent=27 // loop_header
        %s168 = sphi 0, %s172
        %p169 = scmp.ge.s32.totalorder %s168, 4
      $region31: #{tpu_custom_call.1} parent=27 // loop_header_branch
        %171 = sbr.rel (%p169) target = $region35
      $region32: #{tpu_custom_call.1} parent=27 // loop_body
        %v173 = vld [vmem:[%s143] sm:$0x7]
        %v175 = vrot.slane %v173, 3
        %vm176 = vcmask 1040384
        %v177 = vsel %vm176, %v173, %v175
        %vm178 = vcmask 1041409
        %v179 = vsel %vm178, %v173, %v175
        %v180 = vrot.slane %v179, 1
        %vm181 = vcmask 1042434
        %v182 = vsel %vm181, %v173, %v175
        %v183 = vrot.slane %v182, 2
        %187 = vst [vmem:[#allocation2] sm:$0x1] %v177
        %188 = vst [vmem:[#allocation2 + $0x4] sm:$0x1] %v180
        %189 = vst [vmem:[#allocation2 + $0x8] sm:$0x1] %v183
        %v190 = vld [vmem:[%s143 + $0x4] sm:$0x7]
        %v192 = vrot.slane %v190, 3
        %v193 = vsel %vm176, %v190, %v192
        %v194 = vsel %vm178, %v190, %v192
        %v195 = vrot.slane %v194, 1
        %v196 = vsel %vm181, %v190, %v192
        %v197 = vrot.slane %v196, 2
        %201 = vst [vmem:[#allocation2 + $0x1] sm:$0x1] %v193
        %202 = vst [vmem:[#allocation2 + $0x5] sm:$0x1] %v195
        %203 = vst [vmem:[#allocation2 + $0x9] sm:$0x1] %v197
        %v204 = vld [vmem:[%s143 + $0x8] sm:$0x7]
        %v206 = vrot.slane %v204, 3
        %v207 = vsel %vm176, %v204, %v206
        %v208 = vsel %vm178, %v204, %v206
        %v209 = vrot.slane %v208, 1
        %v210 = vsel %vm181, %v204, %v206
        %v211 = vrot.slane %v210, 2
        %215 = vst [vmem:[#allocation2 + $0x2] sm:$0x1] %v207
        %216 = vst [vmem:[#allocation2 + $0x6] sm:$0x1] %v209
        %217 = vst [vmem:[#allocation2 + $0xa] sm:$0x1] %v211
        %v218 = vld [vmem:[%s143 + $0xc] sm:$0x7]
        %v220 = vrot.slane %v218, 3
        %v221 = vsel %vm176, %v218, %v220
        %v222 = vsel %vm178, %v218, %v220
        %v223 = vrot.slane %v222, 1
        %v224 = vsel %vm181, %v218, %v220
        %v225 = vrot.slane %v224, 2
        %229 = vst [vmem:[#allocation2 + $0x3] sm:$0x1] %v221
        %230 = vst [vmem:[#allocation2 + $0x7] sm:$0x1] %v223
        %231 = vst [vmem:[#allocation2 + $0xb] sm:$0x1] %v225
        %v232 = vld [vmem:[%s143] sm:$0x77]
        %v233 = vld [vmem:[%s143 + $0x8] sm:$0x77]
        %v234 = vld [vmem:[%s0] sm:$0x77]
        %v235 = vld [vmem:[%s0 + $0x8] sm:$0x77]
        %v236 = vadd.f32 %v234, %v232
        %v237 = vadd.f32 %v235, %v233
        %v238 = vmax.f32 %v236, 0.0
        %v239 = vmax.f32 %v237, 0.0
        %v240 = vmin.f32 %v238, 7.0
        %v241 = vmin.f32 %v239, 7.0
        %v242 = vfloor.f32 %v240
        %v243 = vfloor.f32 %v241
        %v244 = vsub.f32 %v240, %v242
        %v245 = vsub.f32 %v241, %v243
        %v246 = vcvt.f32.s32.to.zero.pseudo %v242
        %v247 = vcvt.f32.s32.to.zero.pseudo %v243
        %v248 = vadd.s32 %v246, 1
        %v249 = vadd.s32 %v247, 1
        %vm250 = vcmp.lt.s32.totalorder %v248, 7
        %v251 = vsel %vm250, %v248, 7
        %vm252 = vcmp.lt.s32.totalorder %v249, 7
        %v253 = vsel %vm252, %v249, 7
        %v254 = vsub.f32 1.0, %v244
        %v255 = vsub.f32 1.0, %v245
        %v256 = vmul.u32 %v246, 64
        %v257 = vmul.u32 %v247, 64
        %v258 = vmul.u32 %v246, 8
        %v259 = vmul.u32 %v247, 8
        %v260 = vrot.slane %v258, 7
        %v261 = vrot.slane %v259, 7
        %v262 = vadd.s32 %v256, %v260
        %v263 = vadd.s32 %v257, %v261
        %v264 = vrot.slane %v246, 6
        %v265 = vrot.slane %v247, 6
        %v266 = vadd.s32 %v262, %v264
        %v267 = vadd.s32 %v263, %v265
        %v270 = vrot.slane %v254, 7
        %v271 = vrot.slane %v255, 7
        %v274 = vmul.f32 %v254, %v270
        %v275 = vmul.f32 %v255, %v271
        %v276 = vrot.slane %v254, 6
        %v277 = vrot.slane %v255, 6
        %v280 = vmul.f32 %v274, %v276
        %v281 = vmul.f32 %v275, %v277
        %v282 = vand.u32 %v266, 127
        %v283 = vand.u32 %v267, 127
        %v284 = vshra.s32 %v266, 7
        %v285 = vshra.s32 %v267, 7
        %v286 = vperm.slane %v282, 2
        %v287 = vperm.slane %v282, 6
        %v288 = vperm.slane %v283, 2
        %v289 = vperm.slane %v283, 6
        %v290 = vperm.slane %v286, 2
        %v291 = vperm.slane %v287, 2
        %v292 = vperm.slane %v288, 2
        %v293 = vperm.slane %v289, 2
        %vm294 = vcmp.eq.s32.totalorder %v151, %v290
        %vm295 = vcmp.eq.s32.totalorder %v151, %v291
        %vm296 = vcmp.eq.s32.totalorder %v151, %v292
        %vm297 = vcmp.eq.s32.totalorder %v151, %v293
        %vm298 = vcmp.eq.s32.totalorder %v152, %v290
        %vm299 = vcmp.eq.s32.totalorder %v152, %v291
        %vm300 = vcmp.eq.s32.totalorder %v152, %v292
        %vm301 = vcmp.eq.s32.totalorder %v152, %v293
        %vm302 = vcmp.eq.s32.totalorder %v153, %v290
        %vm303 = vcmp.eq.s32.totalorder %v153, %v291
        %vm304 = vcmp.eq.s32.totalorder %v153, %v292
        %vm305 = vcmp.eq.s32.totalorder %v153, %v293
        %vm306 = vcmp.eq.s32.totalorder %v154, %v290
        %vm307 = vcmp.eq.s32.totalorder %v154, %v291
        %vm308 = vcmp.eq.s32.totalorder %v154, %v292
        %vm309 = vcmp.eq.s32.totalorder %v154, %v293
        %vm310 = vcmp.eq.s32.totalorder %v155, %v290
        %vm311 = vcmp.eq.s32.totalorder %v155, %v291
        %vm312 = vcmp.eq.s32.totalorder %v155, %v292
        %vm313 = vcmp.eq.s32.totalorder %v155, %v293
        %vm314 = vcmp.eq.s32.totalorder %v156, %v290
        %vm315 = vcmp.eq.s32.totalorder %v156, %v291
        %vm316 = vcmp.eq.s32.totalorder %v156, %v292
        %vm317 = vcmp.eq.s32.totalorder %v156, %v293
        %vm318 = vcmp.eq.s32.totalorder %v157, %v290
        %vm319 = vcmp.eq.s32.totalorder %v157, %v291
        %vm320 = vcmp.eq.s32.totalorder %v157, %v292
        %vm321 = vcmp.eq.s32.totalorder %v157, %v293
        %vm322 = vcmp.eq.s32.totalorder %v158, %v290
        %vm323 = vcmp.eq.s32.totalorder %v158, %v291
        %vm324 = vcmp.eq.s32.totalorder %v158, %v292
        %vm325 = vcmp.eq.s32.totalorder %v158, %v293
        %vm326 = vcmp.eq.s32.totalorder %v159, %v290
        %vm327 = vcmp.eq.s32.totalorder %v159, %v291
        %vm328 = vcmp.eq.s32.totalorder %v159, %v292
        %vm329 = vcmp.eq.s32.totalorder %v159, %v293
        %vm330 = vcmp.eq.s32.totalorder %v160, %v290
        %vm331 = vcmp.eq.s32.totalorder %v160, %v291
        %vm332 = vcmp.eq.s32.totalorder %v160, %v292
        %vm333 = vcmp.eq.s32.totalorder %v160, %v293
        %vm334 = vcmp.eq.s32.totalorder %v161, %v290
        %vm335 = vcmp.eq.s32.totalorder %v161, %v291
        %vm336 = vcmp.eq.s32.totalorder %v161, %v292
        %vm337 = vcmp.eq.s32.totalorder %v161, %v293
        %vm338 = vcmp.eq.s32.totalorder %v162, %v290
        %vm339 = vcmp.eq.s32.totalorder %v162, %v291
        %vm340 = vcmp.eq.s32.totalorder %v162, %v292
        %vm341 = vcmp.eq.s32.totalorder %v162, %v293
        %vm342 = vcmp.eq.s32.totalorder %v163, %v290
        %vm343 = vcmp.eq.s32.totalorder %v163, %v291
        %vm344 = vcmp.eq.s32.totalorder %v163, %v292
        %vm345 = vcmp.eq.s32.totalorder %v163, %v293
        %vm346 = vcmp.eq.s32.totalorder %v164, %v290
        %vm347 = vcmp.eq.s32.totalorder %v164, %v291
        %vm348 = vcmp.eq.s32.totalorder %v164, %v292
        %vm349 = vcmp.eq.s32.totalorder %v164, %v293
        %vm350 = vcmp.eq.s32.totalorder %v165, %v290
        %vm351 = vcmp.eq.s32.totalorder %v165, %v291
        %vm352 = vcmp.eq.s32.totalorder %v165, %v292
        %vm353 = vcmp.eq.s32.totalorder %v165, %v293
        %vm354 = vcmp.eq.s32.totalorder %v166, %v290
        %vm355 = vcmp.eq.s32.totalorder %v166, %v291
        %vm356 = vcmp.eq.s32.totalorder %v166, %v292
        %vm357 = vcmp.eq.s32.totalorder %v166, %v293
        %v358 = vsel %vm294, 1, 0
        %v359 = vsel %vm295, 1, 0
        %v360 = vsel %vm296, 1, 0
        %v361 = vsel %vm297, 1, 0
        %v362 = vsel %vm298, 1, 0
        %v363 = vsel %vm299, 1, 0
        %v364 = vsel %vm300, 1, 0
        %v365 = vsel %vm301, 1, 0
        %v366 = vsel %vm302, 1, 0
        %v367 = vsel %vm303, 1, 0
        %v368 = vsel %vm304, 1, 0
        %v369 = vsel %vm305, 1, 0
        %v370 = vsel %vm306, 1, 0
        %v371 = vsel %vm307, 1, 0
        %v372 = vsel %vm308, 1, 0
        %v373 = vsel %vm309, 1, 0
        %v374 = vsel %vm310, 1, 0
        %v375 = vsel %vm311, 1, 0
        %v376 = vsel %vm312, 1, 0
        %v377 = vsel %vm313, 1, 0
        %v378 = vsel %vm314, 1, 0
        %v379 = vsel %vm315, 1, 0
        %v380 = vsel %vm316, 1, 0
        %v381 = vsel %vm317, 1, 0
        %v382 = vsel %vm318, 1, 0
        %v383 = vsel %vm319, 1, 0
        %v384 = vsel %vm320, 1, 0
        %v385 = vsel %vm321, 1, 0
        %v386 = vsel %vm322, 1, 0
        %v387 = vsel %vm323, 1, 0
        %v388 = vsel %vm324, 1, 0
        %v389 = vsel %vm325, 1, 0
        %v390 = vsel %vm326, 1, 0
        %v391 = vsel %vm327, 1, 0
        %v392 = vsel %vm328, 1, 0
        %v393 = vsel %vm329, 1, 0
        %v394 = vsel %vm330, 1, 0
        %v395 = vsel %vm331, 1, 0
        %v396 = vsel %vm332, 1, 0
        %v397 = vsel %vm333, 1, 0
        %v398 = vsel %vm334, 1, 0
        %v399 = vsel %vm335, 1, 0
        %v400 = vsel %vm336, 1, 0
        %v401 = vsel %vm337, 1, 0
        %v402 = vsel %vm338, 1, 0
        %v403 = vsel %vm339, 1, 0
        %v404 = vsel %vm340, 1, 0
        %v405 = vsel %vm341, 1, 0
        %v406 = vsel %vm342, 1, 0
        %v407 = vsel %vm343, 1, 0
        %v408 = vsel %vm344, 1, 0
        %v409 = vsel %vm345, 1, 0
        %v410 = vsel %vm346, 1, 0
        %v411 = vsel %vm347, 1, 0
        %v412 = vsel %vm348, 1, 0
        %v413 = vsel %vm349, 1, 0
        %v414 = vsel %vm350, 1, 0
        %v415 = vsel %vm351, 1, 0
        %v416 = vsel %vm352, 1, 0
        %v417 = vsel %vm353, 1, 0
        %v418 = vsel %vm354, 1, 0
        %v419 = vsel %vm355, 1, 0
        %v420 = vsel %vm356, 1, 0
        %v421 = vsel %vm357, 1, 0
        %v422 = vcvt.s32.f32 %v358
        %v423 = vcvt.s32.f32 %v359
        %v424 = vcvt.s32.f32 %v360
        %v425 = vcvt.s32.f32 %v361
        %v426 = vcvt.s32.f32 %v362
        %v427 = vcvt.s32.f32 %v363
        %v428 = vcvt.s32.f32 %v364
        %v429 = vcvt.s32.f32 %v365
        %v430 = vcvt.s32.f32 %v366
        %v431 = vcvt.s32.f32 %v367
        %v432 = vcvt.s32.f32 %v368
        %v433 = vcvt.s32.f32 %v369
        %v434 = vcvt.s32.f32 %v370
        %v435 = vcvt.s32.f32 %v371
        %v436 = vcvt.s32.f32 %v372
        %v437 = vcvt.s32.f32 %v373
        %v438 = vcvt.s32.f32 %v374
        %v439 = vcvt.s32.f32 %v375
        %v440 = vcvt.s32.f32 %v376
        %v441 = vcvt.s32.f32 %v377
        %v442 = vcvt.s32.f32 %v378
        %v443 = vcvt.s32.f32 %v379
        %v444 = vcvt.s32.f32 %v380
        %v445 = vcvt.s32.f32 %v381
        %v446 = vcvt.s32.f32 %v382
        %v447 = vcvt.s32.f32 %v383
        %v448 = vcvt.s32.f32 %v384
        %v449 = vcvt.s32.f32 %v385
        %v450 = vcvt.s32.f32 %v386
        %v451 = vcvt.s32.f32 %v387
        %v452 = vcvt.s32.f32 %v388
        %v453 = vcvt.s32.f32 %v389
        %v454 = vcvt.s32.f32 %v390
        %v455 = vcvt.s32.f32 %v391
        %v456 = vcvt.s32.f32 %v392
        %v457 = vcvt.s32.f32 %v393
        %v458 = vcvt.s32.f32 %v394
        %v459 = vcvt.s32.f32 %v395
        %v460 = vcvt.s32.f32 %v396
        %v461 = vcvt.s32.f32 %v397
        %v462 = vcvt.s32.f32 %v398
        %v463 = vcvt.s32.f32 %v399
        %v464 = vcvt.s32.f32 %v400
        %v465 = vcvt.s32.f32 %v401
        %v466 = vcvt.s32.f32 %v402
        %v467 = vcvt.s32.f32 %v403
        %v468 = vcvt.s32.f32 %v404
        %v469 = vcvt.s32.f32 %v405
        %v470 = vcvt.s32.f32 %v406
        %v471 = vcvt.s32.f32 %v407
        %v472 = vcvt.s32.f32 %v408
        %v473 = vcvt.s32.f32 %v409
        %v474 = vcvt.s32.f32 %v410
        %v475 = vcvt.s32.f32 %v411
        %v476 = vcvt.s32.f32 %v412
        %v477 = vcvt.s32.f32 %v413
        %v478 = vcvt.s32.f32 %v414
        %v479 = vcvt.s32.f32 %v415
        %v480 = vcvt.s32.f32 %v416
        %v481 = vcvt.s32.f32 %v417
        %v482 = vcvt.s32.f32 %v418
        %v483 = vcvt.s32.f32 %v419
        %v484 = vcvt.s32.f32 %v420
        %v485 = vcvt.s32.f32 %v421
        %v486 = vperm.slane %v284, 2
        %v487 = vperm.slane %v284, 6
        %v488 = vperm.slane %v285, 2
        %v489 = vperm.slane %v285, 6
        %v490 = vperm.slane %v486, 2
        %v491 = vperm.slane %v487, 2
        %v492 = vperm.slane %v488, 2
        %v493 = vperm.slane %v489, 2
        %vm494 = vcmp.eq.s32.totalorder %v151, %v490
        %vm495 = vcmp.eq.s32.totalorder %v151, %v491
        %vm496 = vcmp.eq.s32.totalorder %v151, %v492
        %vm497 = vcmp.eq.s32.totalorder %v151, %v493
        %v500 = vperm.slane %v280, 2
        %v501 = vperm.slane %v280, 6
        %v502 = vperm.slane %v281, 2
        %v503 = vperm.slane %v281, 6
        %v508 = vperm.slane %v500, 2
        %v509 = vperm.slane %v501, 2
        %v510 = vperm.slane %v502, 2
        %v511 = vperm.slane %v503, 2
        %v512 = vsel %vm494, %v508, 0.0
        %v513 = vsel %vm495, %v509, 0.0
        %v514 = vsel %vm496, %v510, 0.0
        %v515 = vsel %vm497, %v511, 0.0
        %v516 = vld [vmem:[#allocation2] sm:$0xf]
        %517 = vmatpush.msra.mxu0 %v482
        %518 = vmatpush.msra.mxu0 %v478
        %519 = vmatpush.msra.mxu0 %v474
        %520 = vmatpush.msra.mxu0 %v470
        %521 = vmatpush.msra.mxu0 %v466
        %522 = vmatpush.msra.mxu0 %v462
        %523 = vmatpush.msra.mxu0 %v458
        %524 = vmatpush.msra.mxu0 %v454
        %525 = vmatpush.msra.mxu0 %v450
        %526 = vmatpush.msra.mxu0 %v446
        %527 = vmatpush.msra.mxu0 %v442
        %528 = vmatpush.msra.mxu0 %v438
        %529 = vmatpush.msra.mxu0 %v434
        %530 = vmatpush.msra.mxu0 %v430
        %531 = vmatpush.msra.mxu0 %v426
        %532 = vmatpush.msra.mxu0 %v422
        %533 = vmatmul.f32.gmra.mxu0 %v516
        %v534 = vpop.f32.mrf.mxu0
        %v535 = vadd.f32 0.0, %v534
        %536 = vdwg.mxu0
        %537 = vmatpush.msra.mxu0 %v483
        %538 = vmatpush.msra.mxu0 %v479
        %539 = vmatpush.msra.mxu0 %v475
        %540 = vmatpush.msra.mxu0 %v471
        %541 = vmatpush.msra.mxu0 %v467
        %542 = vmatpush.msra.mxu0 %v463
        %543 = vmatpush.msra.mxu0 %v459
        %544 = vmatpush.msra.mxu0 %v455
        %545 = vmatpush.msra.mxu0 %v451
        %546 = vmatpush.msra.mxu0 %v447
        %547 = vmatpush.msra.mxu0 %v443
        %548 = vmatpush.msra.mxu0 %v439
        %549 = vmatpush.msra.mxu0 %v435
        %550 = vmatpush.msra.mxu0 %v431
        %551 = vmatpush.msra.mxu0 %v427
        %552 = vmatpush.msra.mxu0 %v423
        %553 = vmatmul.f32.gmra.mxu0 %v516
        %v554 = vpop.f32.mrf.mxu0
        %v555 = vadd.f32 0.0, %v554
        %556 = vdwg.mxu0
        %557 = vmatpush.msra.mxu0 %v484
        %558 = vmatpush.msra.mxu0 %v480
        %559 = vmatpush.msra.mxu0 %v476
        %560 = vmatpush.msra.mxu0 %v472
        %561 = vmatpush.msra.mxu0 %v468
        %562 = vmatpush.msra.mxu0 %v464
        %563 = vmatpush.msra.mxu0 %v460
        %564 = vmatpush.msra.mxu0 %v456
        %565 = vmatpush.msra.mxu0 %v452
        %566 = vmatpush.msra.mxu0 %v448
        %567 = vmatpush.msra.mxu0 %v444
        %568 = vmatpush.msra.mxu0 %v440
        %569 = vmatpush.msra.mxu0 %v436
        %570 = vmatpush.msra.mxu0 %v432
        %571 = vmatpush.msra.mxu0 %v428
        %572 = vmatpush.msra.mxu0 %v424
        %573 = vmatmul.f32.gmra.mxu0 %v516
        %v574 = vpop.f32.mrf.mxu0
        %v575 = vadd.f32 0.0, %v574
        %576 = vdwg.mxu0
        %577 = vmatpush.msra.mxu0 %v485
        %578 = vmatpush.msra.mxu0 %v481
        %579 = vmatpush.msra.mxu0 %v477
        %580 = vmatpush.msra.mxu0 %v473
        %581 = vmatpush.msra.mxu0 %v469
        %582 = vmatpush.msra.mxu0 %v465
        %583 = vmatpush.msra.mxu0 %v461
        %584 = vmatpush.msra.mxu0 %v457
        %585 = vmatpush.msra.mxu0 %v453
        %586 = vmatpush.msra.mxu0 %v449
        %587 = vmatpush.msra.mxu0 %v445
        %588 = vmatpush.msra.mxu0 %v441
        %589 = vmatpush.msra.mxu0 %v437
        %590 = vmatpush.msra.mxu0 %v433
        %591 = vmatpush.msra.mxu0 %v429
        %592 = vmatpush.msra.mxu0 %v425
        %593 = vmatmul.f32.gmra.mxu0 %v516
        %v594 = vpop.f32.mrf.mxu0
        %v595 = vadd.f32 0.0, %v594
        %596 = vdwg.mxu0
        %v597 = vmul.f32 %v535, %v512
        %v598 = vmul.f32 %v555, %v513
        %v599 = vmul.f32 %v575, %v514
        %v600 = vmul.f32 %v595, %v515
        %vm601 = vcmask 1043456
        %v602 = vsel %vm601, %v597, 0.0
        %v603 = vrot.slane %v602, 4
        %v604 = vadd.f32 %v602, %v603
        %v605 = vrot.slane %v604, 2
        %v606 = vadd.f32 %v604, %v605
        %v607 = vrot.slane %v606, 1
        %v608 = vadd.f32 %v606, %v607
        %v609 = vsel %vm601, %v598, 0.0
        %v610 = vrot.slane %v609, 4
        %v611 = vadd.f32 %v609, %v610
        %v612 = vrot.slane %v611, 2
        %v613 = vadd.f32 %v611, %v612
        %v614 = vrot.slane %v613, 1
        %v615 = vadd.f32 %v613, %v614
        %v616 = vsel %vm601, %v599, 0.0
        %v617 = vrot.slane %v616, 4
        %v618 = vadd.f32 %v616, %v617
        %v619 = vrot.slane %v618, 2
        %v620 = vadd.f32 %v618, %v619
        %v621 = vrot.slane %v620, 1
        %v622 = vadd.f32 %v620, %v621
        %v623 = vsel %vm601, %v600, 0.0
        %v624 = vrot.slane %v623, 4
        %v625 = vadd.f32 %v623, %v624
        %v626 = vrot.slane %v625, 2
        %v627 = vadd.f32 %v625, %v626
        %v628 = vrot.slane %v627, 1
        %v629 = vadd.f32 %v627, %v628
        %v630 = vadd.f32 %v608, 0.0
        %v631 = vadd.f32 %v615, 0.0
        %v632 = vadd.f32 %v622, 0.0
        %v633 = vadd.f32 %v629, 0.0
        %s634 = scalar_lea.vmem [#allocation2], 4
        %v635 = vld [vmem:[%s634] sm:$0xf]
        %636 = vmatpush.msra.mxu0 %v482
        %637 = vmatpush.msra.mxu0 %v478
        %638 = vmatpush.msra.mxu0 %v474
        %639 = vmatpush.msra.mxu0 %v470
        %640 = vmatpush.msra.mxu0 %v466
        %641 = vmatpush.msra.mxu0 %v462
        %642 = vmatpush.msra.mxu0 %v458
        %643 = vmatpush.msra.mxu0 %v454
        %644 = vmatpush.msra.mxu0 %v450
        %645 = vmatpush.msra.mxu0 %v446
        %646 = vmatpush.msra.mxu0 %v442
        %647 = vmatpush.msra.mxu0 %v438
        %648 = vmatpush.msra.mxu0 %v434
        %649 = vmatpush.msra.mxu0 %v430
        %650 = vmatpush.msra.mxu0 %v426
        %651 = vmatpush.msra.mxu0 %v422
        %652 = vmatmul.f32.gmra.mxu0 %v635
        %v653 = vpop.f32.mrf.mxu0
        %v654 = vadd.f32 0.0, %v653
        %655 = vdwg.mxu0
        %656 = vmatpush.msra.mxu0 %v483
        %657 = vmatpush.msra.mxu0 %v479
        %658 = vmatpush.msra.mxu0 %v475
        %659 = vmatpush.msra.mxu0 %v471
        %660 = vmatpush.msra.mxu0 %v467
        %661 = vmatpush.msra.mxu0 %v463
        %662 = vmatpush.msra.mxu0 %v459
        %663 = vmatpush.msra.mxu0 %v455
        %664 = vmatpush.msra.mxu0 %v451
        %665 = vmatpush.msra.mxu0 %v447
        %666 = vmatpush.msra.mxu0 %v443
        %667 = vmatpush.msra.mxu0 %v439
        %668 = vmatpush.msra.mxu0 %v435
        %669 = vmatpush.msra.mxu0 %v431
        %670 = vmatpush.msra.mxu0 %v427
        %671 = vmatpush.msra.mxu0 %v423
        %672 = vmatmul.f32.gmra.mxu0 %v635
        %v673 = vpop.f32.mrf.mxu0
        %v674 = vadd.f32 0.0, %v673
        %675 = vdwg.mxu0
        %676 = vmatpush.msra.mxu0 %v484
        %677 = vmatpush.msra.mxu0 %v480
        %678 = vmatpush.msra.mxu0 %v476
        %679 = vmatpush.msra.mxu0 %v472
        %680 = vmatpush.msra.mxu0 %v468
        %681 = vmatpush.msra.mxu0 %v464
        %682 = vmatpush.msra.mxu0 %v460
        %683 = vmatpush.msra.mxu0 %v456
        %684 = vmatpush.msra.mxu0 %v452
        %685 = vmatpush.msra.mxu0 %v448
        %686 = vmatpush.msra.mxu0 %v444
        %687 = vmatpush.msra.mxu0 %v440
        %688 = vmatpush.msra.mxu0 %v436
        %689 = vmatpush.msra.mxu0 %v432
        %690 = vmatpush.msra.mxu0 %v428
        %691 = vmatpush.msra.mxu0 %v424
        %692 = vmatmul.f32.gmra.mxu0 %v635
        %v693 = vpop.f32.mrf.mxu0
        %v694 = vadd.f32 0.0, %v693
        %695 = vdwg.mxu0
        %696 = vmatpush.msra.mxu0 %v485
        %697 = vmatpush.msra.mxu0 %v481
        %698 = vmatpush.msra.mxu0 %v477
        %699 = vmatpush.msra.mxu0 %v473
        %700 = vmatpush.msra.mxu0 %v469
        %701 = vmatpush.msra.mxu0 %v465
        %702 = vmatpush.msra.mxu0 %v461
        %703 = vmatpush.msra.mxu0 %v457
        %704 = vmatpush.msra.mxu0 %v453
        %705 = vmatpush.msra.mxu0 %v449
        %706 = vmatpush.msra.mxu0 %v445
        %707 = vmatpush.msra.mxu0 %v441
        %708 = vmatpush.msra.mxu0 %v437
        %709 = vmatpush.msra.mxu0 %v433
        %710 = vmatpush.msra.mxu0 %v429
        %711 = vmatpush.msra.mxu0 %v425
        %712 = vmatmul.f32.gmra.mxu0 %v635
        %v713 = vpop.f32.mrf.mxu0
        %v714 = vadd.f32 0.0, %v713
        %715 = vdwg.mxu0
        %v716 = vmul.f32 %v654, %v512
        %v717 = vmul.f32 %v674, %v513
        %v718 = vmul.f32 %v694, %v514
        %v719 = vmul.f32 %v714, %v515
        %v720 = vsel %vm601, %v716, 0.0
        %v721 = vrot.slane %v720, 4
        %v722 = vadd.f32 %v720, %v721
        %v723 = vrot.slane %v722, 2
        %v724 = vadd.f32 %v722, %v723
        %v725 = vrot.slane %v724, 1
        %v726 = vadd.f32 %v724, %v725
        %v727 = vsel %vm601, %v717, 0.0
        %v728 = vrot.slane %v727, 4
        %v729 = vadd.f32 %v727, %v728
        %v730 = vrot.slane %v729, 2
        %v731 = vadd.f32 %v729, %v730
        %v732 = vrot.slane %v731, 1
        %v733 = vadd.f32 %v731, %v732
        %v734 = vsel %vm601, %v718, 0.0
        %v735 = vrot.slane %v734, 4
        %v736 = vadd.f32 %v734, %v735
        %v737 = vrot.slane %v736, 2
        %v738 = vadd.f32 %v736, %v737
        %v739 = vrot.slane %v738, 1
        %v740 = vadd.f32 %v738, %v739
        %v741 = vsel %vm601, %v719, 0.0
        %v742 = vrot.slane %v741, 4
        %v743 = vadd.f32 %v741, %v742
        %v744 = vrot.slane %v743, 2
        %v745 = vadd.f32 %v743, %v744
        %v746 = vrot.slane %v745, 1
        %v747 = vadd.f32 %v745, %v746
        %v748 = vadd.f32 %v726, 0.0
        %v749 = vadd.f32 %v733, 0.0
        %v750 = vadd.f32 %v740, 0.0
        %v751 = vadd.f32 %v747, 0.0
        %s752 = scalar_lea.vmem [#allocation2], 8
        %v753 = vld [vmem:[%s752] sm:$0xf]
        %754 = vmatpush.msra.mxu0 %v482
        %755 = vmatpush.msra.mxu0 %v478
        %756 = vmatpush.msra.mxu0 %v474
        %757 = vmatpush.msra.mxu0 %v470
        %758 = vmatpush.msra.mxu0 %v466
        %759 = vmatpush.msra.mxu0 %v462
        %760 = vmatpush.msra.mxu0 %v458
        %761 = vmatpush.msra.mxu0 %v454
        %762 = vmatpush.msra.mxu0 %v450
        %763 = vmatpush.msra.mxu0 %v446
        %764 = vmatpush.msra.mxu0 %v442
        %765 = vmatpush.msra.mxu0 %v438
        %766 = vmatpush.msra.mxu0 %v434
        %767 = vmatpush.msra.mxu0 %v430
        %768 = vmatpush.msra.mxu0 %v426
        %769 = vmatpush.msra.mxu0 %v422
        %770 = vmatmul.f32.gmra.mxu0 %v753
        %v771 = vpop.f32.mrf.mxu0
        %v772 = vadd.f32 0.0, %v771
        %773 = vdwg.mxu0
        %774 = vmatpush.msra.mxu0 %v483
        %775 = vmatpush.msra.mxu0 %v479
        %776 = vmatpush.msra.mxu0 %v475
        %777 = vmatpush.msra.mxu0 %v471
        %778 = vmatpush.msra.mxu0 %v467
        %779 = vmatpush.msra.mxu0 %v463
        %780 = vmatpush.msra.mxu0 %v459
        %781 = vmatpush.msra.mxu0 %v455
        %782 = vmatpush.msra.mxu0 %v451
        %783 = vmatpush.msra.mxu0 %v447
        %784 = vmatpush.msra.mxu0 %v443
        %785 = vmatpush.msra.mxu0 %v439
        %786 = vmatpush.msra.mxu0 %v435
        %787 = vmatpush.msra.mxu0 %v431
        %788 = vmatpush.msra.mxu0 %v427
        %789 = vmatpush.msra.mxu0 %v423
        %790 = vmatmul.f32.gmra.mxu0 %v753
        %v791 = vpop.f32.mrf.mxu0
        %v792 = vadd.f32 0.0, %v791
        %793 = vdwg.mxu0
        %794 = vmatpush.msra.mxu0 %v484
        %795 = vmatpush.msra.mxu0 %v480
        %796 = vmatpush.msra.mxu0 %v476
        %797 = vmatpush.msra.mxu0 %v472
        %798 = vmatpush.msra.mxu0 %v468
        %799 = vmatpush.msra.mxu0 %v464
        %800 = vmatpush.msra.mxu0 %v460
        %801 = vmatpush.msra.mxu0 %v456
        %802 = vmatpush.msra.mxu0 %v452
        %803 = vmatpush.msra.mxu0 %v448
        %804 = vmatpush.msra.mxu0 %v444
        %805 = vmatpush.msra.mxu0 %v440
        %806 = vmatpush.msra.mxu0 %v436
        %807 = vmatpush.msra.mxu0 %v432
        %808 = vmatpush.msra.mxu0 %v428
        %809 = vmatpush.msra.mxu0 %v424
        %810 = vmatmul.f32.gmra.mxu0 %v753
        %v811 = vpop.f32.mrf.mxu0
        %v812 = vadd.f32 0.0, %v811
        %813 = vdwg.mxu0
        %814 = vmatpush.msra.mxu0 %v485
        %815 = vmatpush.msra.mxu0 %v481
        %816 = vmatpush.msra.mxu0 %v477
        %817 = vmatpush.msra.mxu0 %v473
        %818 = vmatpush.msra.mxu0 %v469
        %819 = vmatpush.msra.mxu0 %v465
        %820 = vmatpush.msra.mxu0 %v461
        %821 = vmatpush.msra.mxu0 %v457
        %822 = vmatpush.msra.mxu0 %v453
        %823 = vmatpush.msra.mxu0 %v449
        %824 = vmatpush.msra.mxu0 %v445
        %825 = vmatpush.msra.mxu0 %v441
        %826 = vmatpush.msra.mxu0 %v437
        %827 = vmatpush.msra.mxu0 %v433
        %828 = vmatpush.msra.mxu0 %v429
        %829 = vmatpush.msra.mxu0 %v425
        %830 = vmatmul.f32.gmra.mxu0 %v753
        %v831 = vpop.f32.mrf.mxu0
        %v832 = vadd.f32 0.0, %v831
        %833 = vdwg.mxu0
        %v834 = vmul.f32 %v772, %v512
        %v835 = vmul.f32 %v792, %v513
        %v836 = vmul.f32 %v812, %v514
        %v837 = vmul.f32 %v832, %v515
        %v838 = vsel %vm601, %v834, 0.0
        %v839 = vrot.slane %v838, 4
        %v840 = vadd.f32 %v838, %v839
        %v841 = vrot.slane %v840, 2
        %v842 = vadd.f32 %v840, %v841
        %v843 = vrot.slane %v842, 1
        %v844 = vadd.f32 %v842, %v843
        %v845 = vsel %vm601, %v835, 0.0
        %v846 = vrot.slane %v845, 4
        %v847 = vadd.f32 %v845, %v846
        %v848 = vrot.slane %v847, 2
        %v849 = vadd.f32 %v847, %v848
        %v850 = vrot.slane %v849, 1
        %v851 = vadd.f32 %v849, %v850
        %v852 = vsel %vm601, %v836, 0.0
        %v853 = vrot.slane %v852, 4
        %v854 = vadd.f32 %v852, %v853
        %v855 = vrot.slane %v854, 2
        %v856 = vadd.f32 %v854, %v855
        %v857 = vrot.slane %v856, 1
        %v858 = vadd.f32 %v856, %v857
        %v859 = vsel %vm601, %v837, 0.0
        %v860 = vrot.slane %v859, 4
        %v861 = vadd.f32 %v859, %v860
        %v862 = vrot.slane %v861, 2
        %v863 = vadd.f32 %v861, %v862
        %v864 = vrot.slane %v863, 1
        %v865 = vadd.f32 %v863, %v864
        %v866 = vadd.f32 %v844, 0.0
        %v867 = vadd.f32 %v851, 0.0
        %v868 = vadd.f32 %v858, 0.0
        %v869 = vadd.f32 %v865, 0.0
        %v870 = vrot.slane %v251, 6
        %v871 = vrot.slane %v253, 6
        %v872 = vadd.s32 %v262, %v870
        %v873 = vadd.s32 %v263, %v871
        %v876 = vrot.slane %v244, 6
        %v877 = vrot.slane %v245, 6
        %v880 = vmul.f32 %v274, %v876
        %v881 = vmul.f32 %v275, %v877
        %v882 = vand.u32 %v872, 127
        %v883 = vand.u32 %v873, 127
        %v884 = vshra.s32 %v872, 7
        %v885 = vshra.s32 %v873, 7
        %v886 = vperm.slane %v882, 2
        %v887 = vperm.slane %v882, 6
        %v888 = vperm.slane %v883, 2
        %v889 = vperm.slane %v883, 6
        %v890 = vperm.slane %v886, 2
        %v891 = vperm.slane %v887, 2
        %v892 = vperm.slane %v888, 2
        %v893 = vperm.slane %v889, 2
        %vm894 = vcmp.eq.s32.totalorder %v151, %v890
        %vm895 = vcmp.eq.s32.totalorder %v151, %v891
        %vm896 = vcmp.eq.s32.totalorder %v151, %v892
        %vm897 = vcmp.eq.s32.totalorder %v151, %v893
        %vm898 = vcmp.eq.s32.totalorder %v152, %v890
        %vm899 = vcmp.eq.s32.totalorder %v152, %v891
        %vm900 = vcmp.eq.s32.totalorder %v152, %v892
        %vm901 = vcmp.eq.s32.totalorder %v152, %v893
        %vm902 = vcmp.eq.s32.totalorder %v153, %v890
        %vm903 = vcmp.eq.s32.totalorder %v153, %v891
        %vm904 = vcmp.eq.s32.totalorder %v153, %v892
        %vm905 = vcmp.eq.s32.totalorder %v153, %v893
        %vm906 = vcmp.eq.s32.totalorder %v154, %v890
        %vm907 = vcmp.eq.s32.totalorder %v154, %v891
        %vm908 = vcmp.eq.s32.totalorder %v154, %v892
        %vm909 = vcmp.eq.s32.totalorder %v154, %v893
        %vm910 = vcmp.eq.s32.totalorder %v155, %v890
        %vm911 = vcmp.eq.s32.totalorder %v155, %v891
        %vm912 = vcmp.eq.s32.totalorder %v155, %v892
        %vm913 = vcmp.eq.s32.totalorder %v155, %v893
        %vm914 = vcmp.eq.s32.totalorder %v156, %v890
        %vm915 = vcmp.eq.s32.totalorder %v156, %v891
        %vm916 = vcmp.eq.s32.totalorder %v156, %v892
        %vm917 = vcmp.eq.s32.totalorder %v156, %v893
        %vm918 = vcmp.eq.s32.totalorder %v157, %v890
        %vm919 = vcmp.eq.s32.totalorder %v157, %v891
        %vm920 = vcmp.eq.s32.totalorder %v157, %v892
        %vm921 = vcmp.eq.s32.totalorder %v157, %v893
        %vm922 = vcmp.eq.s32.totalorder %v158, %v890
        %vm923 = vcmp.eq.s32.totalorder %v158, %v891
        %vm924 = vcmp.eq.s32.totalorder %v158, %v892
        %vm925 = vcmp.eq.s32.totalorder %v158, %v893
        %vm926 = vcmp.eq.s32.totalorder %v159, %v890
        %vm927 = vcmp.eq.s32.totalorder %v159, %v891
        %vm928 = vcmp.eq.s32.totalorder %v159, %v892
        %vm929 = vcmp.eq.s32.totalorder %v159, %v893
        %vm930 = vcmp.eq.s32.totalorder %v160, %v890
        %vm931 = vcmp.eq.s32.totalorder %v160, %v891
        %vm932 = vcmp.eq.s32.totalorder %v160, %v892
        %vm933 = vcmp.eq.s32.totalorder %v160, %v893
        %vm934 = vcmp.eq.s32.totalorder %v161, %v890
        %vm935 = vcmp.eq.s32.totalorder %v161, %v891
        %vm936 = vcmp.eq.s32.totalorder %v161, %v892
        %vm937 = vcmp.eq.s32.totalorder %v161, %v893
        %vm938 = vcmp.eq.s32.totalorder %v162, %v890
        %vm939 = vcmp.eq.s32.totalorder %v162, %v891
        %vm940 = vcmp.eq.s32.totalorder %v162, %v892
        %vm941 = vcmp.eq.s32.totalorder %v162, %v893
        %vm942 = vcmp.eq.s32.totalorder %v163, %v890
        %vm943 = vcmp.eq.s32.totalorder %v163, %v891
        %vm944 = vcmp.eq.s32.totalorder %v163, %v892
        %vm945 = vcmp.eq.s32.totalorder %v163, %v893
        %vm946 = vcmp.eq.s32.totalorder %v164, %v890
        %vm947 = vcmp.eq.s32.totalorder %v164, %v891
        %vm948 = vcmp.eq.s32.totalorder %v164, %v892
        %vm949 = vcmp.eq.s32.totalorder %v164, %v893
        %vm950 = vcmp.eq.s32.totalorder %v165, %v890
        %vm951 = vcmp.eq.s32.totalorder %v165, %v891
        %vm952 = vcmp.eq.s32.totalorder %v165, %v892
        %vm953 = vcmp.eq.s32.totalorder %v165, %v893
        %vm954 = vcmp.eq.s32.totalorder %v166, %v890
        %vm955 = vcmp.eq.s32.totalorder %v166, %v891
        %vm956 = vcmp.eq.s32.totalorder %v166, %v892
        %vm957 = vcmp.eq.s32.totalorder %v166, %v893
        %v958 = vsel %vm894, 1, 0
        %v959 = vsel %vm895, 1, 0
        %v960 = vsel %vm896, 1, 0
        %v961 = vsel %vm897, 1, 0
        %v962 = vsel %vm898, 1, 0
        %v963 = vsel %vm899, 1, 0
        %v964 = vsel %vm900, 1, 0
        %v965 = vsel %vm901, 1, 0
        %v966 = vsel %vm902, 1, 0
        %v967 = vsel %vm903, 1, 0
        %v968 = vsel %vm904, 1, 0
        %v969 = vsel %vm905, 1, 0
        %v970 = vsel %vm906, 1, 0
        %v971 = vsel %vm907, 1, 0
        %v972 = vsel %vm908, 1, 0
        %v973 = vsel %vm909, 1, 0
        %v974 = vsel %vm910, 1, 0
        %v975 = vsel %vm911, 1, 0
        %v976 = vsel %vm912, 1, 0
        %v977 = vsel %vm913, 1, 0
        %v978 = vsel %vm914, 1, 0
        %v979 = vsel %vm915, 1, 0
        %v980 = vsel %vm916, 1, 0
        %v981 = vsel %vm917, 1, 0
        %v982 = vsel %vm918, 1, 0
        %v983 = vsel %vm919, 1, 0
        %v984 = vsel %vm920, 1, 0
        %v985 = vsel %vm921, 1, 0
        %v986 = vsel %vm922, 1, 0
        %v987 = vsel %vm923, 1, 0
        %v988 = vsel %vm924, 1, 0
        %v989 = vsel %vm925, 1, 0
        %v990 = vsel %vm926, 1, 0
        %v991 = vsel %vm927, 1, 0
        %v992 = vsel %vm928, 1, 0
        %v993 = vsel %vm929, 1, 0
        %v994 = vsel %vm930, 1, 0
        %v995 = vsel %vm931, 1, 0
        %v996 = vsel %vm932, 1, 0
        %v997 = vsel %vm933, 1, 0
        %v998 = vsel %vm934, 1, 0
        %v999 = vsel %vm935, 1, 0
        %v1000 = vsel %vm936, 1, 0
        %v1001 = vsel %vm937, 1, 0
        %v1002 = vsel %vm938, 1, 0
        %v1003 = vsel %vm939, 1, 0
        %v1004 = vsel %vm940, 1, 0
        %v1005 = vsel %vm941, 1, 0
        %v1006 = vsel %vm942, 1, 0
        %v1007 = vsel %vm943, 1, 0
        %v1008 = vsel %vm944, 1, 0
        %v1009 = vsel %vm945, 1, 0
        %v1010 = vsel %vm946, 1, 0
        %v1011 = vsel %vm947, 1, 0
        %v1012 = vsel %vm948, 1, 0
        %v1013 = vsel %vm949, 1, 0
        %v1014 = vsel %vm950, 1, 0
        %v1015 = vsel %vm951, 1, 0
        %v1016 = vsel %vm952, 1, 0
        %v1017 = vsel %vm953, 1, 0
        %v1018 = vsel %vm954, 1, 0
        %v1019 = vsel %vm955, 1, 0
        %v1020 = vsel %vm956, 1, 0
        %v1021 = vsel %vm957, 1, 0
        %v1022 = vcvt.s32.f32 %v958
        %v1023 = vcvt.s32.f32 %v959
        %v1024 = vcvt.s32.f32 %v960
        %v1025 = vcvt.s32.f32 %v961
        %v1026 = vcvt.s32.f32 %v962
        %v1027 = vcvt.s32.f32 %v963
        %v1028 = vcvt.s32.f32 %v964
        %v1029 = vcvt.s32.f32 %v965
        %v1030 = vcvt.s32.f32 %v966
        %v1031 = vcvt.s32.f32 %v967
        %v1032 = vcvt.s32.f32 %v968
        %v1033 = vcvt.s32.f32 %v969
        %v1034 = vcvt.s32.f32 %v970
        %v1035 = vcvt.s32.f32 %v971
        %v1036 = vcvt.s32.f32 %v972
        %v1037 = vcvt.s32.f32 %v973
        %v1038 = vcvt.s32.f32 %v974
        %v1039 = vcvt.s32.f32 %v975
        %v1040 = vcvt.s32.f32 %v976
        %v1041 = vcvt.s32.f32 %v977
        %v1042 = vcvt.s32.f32 %v978
        %v1043 = vcvt.s32.f32 %v979
        %v1044 = vcvt.s32.f32 %v980
        %v1045 = vcvt.s32.f32 %v981
        %v1046 = vcvt.s32.f32 %v982
        %v1047 = vcvt.s32.f32 %v983
        %v1048 = vcvt.s32.f32 %v984
        %v1049 = vcvt.s32.f32 %v985
        %v1050 = vcvt.s32.f32 %v986
        %v1051 = vcvt.s32.f32 %v987
        %v1052 = vcvt.s32.f32 %v988
        %v1053 = vcvt.s32.f32 %v989
        %v1054 = vcvt.s32.f32 %v990
        %v1055 = vcvt.s32.f32 %v991
        %v1056 = vcvt.s32.f32 %v992
        %v1057 = vcvt.s32.f32 %v993
        %v1058 = vcvt.s32.f32 %v994
        %v1059 = vcvt.s32.f32 %v995
        %v1060 = vcvt.s32.f32 %v996
        %v1061 = vcvt.s32.f32 %v997
        %v1062 = vcvt.s32.f32 %v998
        %v1063 = vcvt.s32.f32 %v999
        %v1064 = vcvt.s32.f32 %v1000
        %v1065 = vcvt.s32.f32 %v1001
        %v1066 = vcvt.s32.f32 %v1002
        %v1067 = vcvt.s32.f32 %v1003
        %v1068 = vcvt.s32.f32 %v1004
        %v1069 = vcvt.s32.f32 %v1005
        %v1070 = vcvt.s32.f32 %v1006
        %v1071 = vcvt.s32.f32 %v1007
        %v1072 = vcvt.s32.f32 %v1008
        %v1073 = vcvt.s32.f32 %v1009
        %v1074 = vcvt.s32.f32 %v1010
        %v1075 = vcvt.s32.f32 %v1011
        %v1076 = vcvt.s32.f32 %v1012
        %v1077 = vcvt.s32.f32 %v1013
        %v1078 = vcvt.s32.f32 %v1014
        %v1079 = vcvt.s32.f32 %v1015
        %v1080 = vcvt.s32.f32 %v1016
        %v1081 = vcvt.s32.f32 %v1017
        %v1082 = vcvt.s32.f32 %v1018
        %v1083 = vcvt.s32.f32 %v1019
        %v1084 = vcvt.s32.f32 %v1020
        %v1085 = vcvt.s32.f32 %v1021
        %v1086 = vperm.slane %v884, 2
        %v1087 = vperm.slane %v884, 6
        %v1088 = vperm.slane %v885, 2
        %v1089 = vperm.slane %v885, 6
        %v1090 = vperm.slane %v1086, 2
        %v1091 = vperm.slane %v1087, 2
        %v1092 = vperm.slane %v1088, 2
        %v1093 = vperm.slane %v1089, 2
        %vm1094 = vcmp.eq.s32.totalorder %v151, %v1090
        %vm1095 = vcmp.eq.s32.totalorder %v151, %v1091
        %vm1096 = vcmp.eq.s32.totalorder %v151, %v1092
        %vm1097 = vcmp.eq.s32.totalorder %v151, %v1093
        %v1100 = vperm.slane %v880, 2
        %v1101 = vperm.slane %v880, 6
        %v1102 = vperm.slane %v881, 2
        %v1103 = vperm.slane %v881, 6
        %v1108 = vperm.slane %v1100, 2
        %v1109 = vperm.slane %v1101, 2
        %v1110 = vperm.slane %v1102, 2
        %v1111 = vperm.slane %v1103, 2
        %v1112 = vsel %vm1094, %v1108, 0.0
        %v1113 = vsel %vm1095, %v1109, 0.0
        %v1114 = vsel %vm1096, %v1110, 0.0
        %v1115 = vsel %vm1097, %v1111, 0.0
        %1116 = vmatpush.msra.mxu0 %v1082
        %1117 = vmatpush.msra.mxu0 %v1078
        %1118 = vmatpush.msra.mxu0 %v1074
        %1119 = vmatpush.msra.mxu0 %v1070
        %1120 = vmatpush.msra.mxu0 %v1066
        %1121 = vmatpush.msra.mxu0 %v1062
        %1122 = vmatpush.msra.mxu0 %v1058
        %1123 = vmatpush.msra.mxu0 %v1054
        %1124 = vmatpush.msra.mxu0 %v1050
        %1125 = vmatpush.msra.mxu0 %v1046
        %1126 = vmatpush.msra.mxu0 %v1042
        %1127 = vmatpush.msra.mxu0 %v1038
        %1128 = vmatpush.msra.mxu0 %v1034
        %1129 = vmatpush.msra.mxu0 %v1030
        %1130 = vmatpush.msra.mxu0 %v1026
        %1131 = vmatpush.msra.mxu0 %v1022
        %1132 = vmatmul.f32.gmra.mxu0 %v516
        %v1133 = vpop.f32.mrf.mxu0
        %v1134 = vadd.f32 0.0, %v1133
        %1135 = vdwg.mxu0
        %1136 = vmatpush.msra.mxu0 %v1083
        %1137 = vmatpush.msra.mxu0 %v1079
        %1138 = vmatpush.msra.mxu0 %v1075
        %1139 = vmatpush.msra.mxu0 %v1071
        %1140 = vmatpush.msra.mxu0 %v1067
        %1141 = vmatpush.msra.mxu0 %v1063
        %1142 = vmatpush.msra.mxu0 %v1059
        %1143 = vmatpush.msra.mxu0 %v1055
        %1144 = vmatpush.msra.mxu0 %v1051
        %1145 = vmatpush.msra.mxu0 %v1047
        %1146 = vmatpush.msra.mxu0 %v1043
        %1147 = vmatpush.msra.mxu0 %v1039
        %1148 = vmatpush.msra.mxu0 %v1035
        %1149 = vmatpush.msra.mxu0 %v1031
        %1150 = vmatpush.msra.mxu0 %v1027
        %1151 = vmatpush.msra.mxu0 %v1023
        %1152 = vmatmul.f32.gmra.mxu0 %v516
        %v1153 = vpop.f32.mrf.mxu0
        %v1154 = vadd.f32 0.0, %v1153
        %1155 = vdwg.mxu0
        %1156 = vmatpush.msra.mxu0 %v1084
        %1157 = vmatpush.msra.mxu0 %v1080
        %1158 = vmatpush.msra.mxu0 %v1076
        %1159 = vmatpush.msra.mxu0 %v1072
        %1160 = vmatpush.msra.mxu0 %v1068
        %1161 = vmatpush.msra.mxu0 %v1064
        %1162 = vmatpush.msra.mxu0 %v1060
        %1163 = vmatpush.msra.mxu0 %v1056
        %1164 = vmatpush.msra.mxu0 %v1052
        %1165 = vmatpush.msra.mxu0 %v1048
        %1166 = vmatpush.msra.mxu0 %v1044
        %1167 = vmatpush.msra.mxu0 %v1040
        %1168 = vmatpush.msra.mxu0 %v1036
        %1169 = vmatpush.msra.mxu0 %v1032
        %1170 = vmatpush.msra.mxu0 %v1028
        %1171 = vmatpush.msra.mxu0 %v1024
        %1172 = vmatmul.f32.gmra.mxu0 %v516
        %v1173 = vpop.f32.mrf.mxu0
        %v1174 = vadd.f32 0.0, %v1173
        %1175 = vdwg.mxu0
        %1176 = vmatpush.msra.mxu0 %v1085
        %1177 = vmatpush.msra.mxu0 %v1081
        %1178 = vmatpush.msra.mxu0 %v1077
        %1179 = vmatpush.msra.mxu0 %v1073
        %1180 = vmatpush.msra.mxu0 %v1069
        %1181 = vmatpush.msra.mxu0 %v1065
        %1182 = vmatpush.msra.mxu0 %v1061
        %1183 = vmatpush.msra.mxu0 %v1057
        %1184 = vmatpush.msra.mxu0 %v1053
        %1185 = vmatpush.msra.mxu0 %v1049
        %1186 = vmatpush.msra.mxu0 %v1045
        %1187 = vmatpush.msra.mxu0 %v1041
        %1188 = vmatpush.msra.mxu0 %v1037
        %1189 = vmatpush.msra.mxu0 %v1033
        %1190 = vmatpush.msra.mxu0 %v1029
        %1191 = vmatpush.msra.mxu0 %v1025
        %1192 = vmatmul.f32.gmra.mxu0 %v516
        %v1193 = vpop.f32.mrf.mxu0
        %v1194 = vadd.f32 0.0, %v1193
        %1195 = vdwg.mxu0
        %v1196 = vmul.f32 %v1134, %v1112
        %v1197 = vmul.f32 %v1154, %v1113
        %v1198 = vmul.f32 %v1174, %v1114
        %v1199 = vmul.f32 %v1194, %v1115
        %v1200 = vsel %vm601, %v1196, 0.0
        %v1201 = vrot.slane %v1200, 4
        %v1202 = vadd.f32 %v1200, %v1201
        %v1203 = vrot.slane %v1202, 2
        %v1204 = vadd.f32 %v1202, %v1203
        %v1205 = vrot.slane %v1204, 1
        %v1206 = vadd.f32 %v1204, %v1205
        %v1207 = vsel %vm601, %v1197, 0.0
        %v1208 = vrot.slane %v1207, 4
        %v1209 = vadd.f32 %v1207, %v1208
        %v1210 = vrot.slane %v1209, 2
        %v1211 = vadd.f32 %v1209, %v1210
        %v1212 = vrot.slane %v1211, 1
        %v1213 = vadd.f32 %v1211, %v1212
        %v1214 = vsel %vm601, %v1198, 0.0
        %v1215 = vrot.slane %v1214, 4
        %v1216 = vadd.f32 %v1214, %v1215
        %v1217 = vrot.slane %v1216, 2
        %v1218 = vadd.f32 %v1216, %v1217
        %v1219 = vrot.slane %v1218, 1
        %v1220 = vadd.f32 %v1218, %v1219
        %v1221 = vsel %vm601, %v1199, 0.0
        %v1222 = vrot.slane %v1221, 4
        %v1223 = vadd.f32 %v1221, %v1222
        %v1224 = vrot.slane %v1223, 2
        %v1225 = vadd.f32 %v1223, %v1224
        %v1226 = vrot.slane %v1225, 1
        %v1227 = vadd.f32 %v1225, %v1226
        %v1228 = vadd.f32 %v630, %v1206
        %v1229 = vadd.f32 %v631, %v1213
        %v1230 = vadd.f32 %v632, %v1220
        %v1231 = vadd.f32 %v633, %v1227
        %1232 = vmatpush.msra.mxu0 %v1082
        %1233 = vmatpush.msra.mxu0 %v1078
        %1234 = vmatpush.msra.mxu0 %v1074
        %1235 = vmatpush.msra.mxu0 %v1070
        %1236 = vmatpush.msra.mxu0 %v1066
        %1237 = vmatpush.msra.mxu0 %v1062
        %1238 = vmatpush.msra.mxu0 %v1058
        %1239 = vmatpush.msra.mxu0 %v1054
        %1240 = vmatpush.msra.mxu0 %v1050
        %1241 = vmatpush.msra.mxu0 %v1046
        %1242 = vmatpush.msra.mxu0 %v1042
        %1243 = vmatpush.msra.mxu0 %v1038
        %1244 = vmatpush.msra.mxu0 %v1034
        %1245 = vmatpush.msra.mxu0 %v1030
        %1246 = vmatpush.msra.mxu0 %v1026
        %1247 = vmatpush.msra.mxu0 %v1022
        %1248 = vmatmul.f32.gmra.mxu0 %v635
        %v1249 = vpop.f32.mrf.mxu0
        %v1250 = vadd.f32 0.0, %v1249
        %1251 = vdwg.mxu0
        %1252 = vmatpush.msra.mxu0 %v1083
        %1253 = vmatpush.msra.mxu0 %v1079
        %1254 = vmatpush.msra.mxu0 %v1075
        %1255 = vmatpush.msra.mxu0 %v1071
        %1256 = vmatpush.msra.mxu0 %v1067
        %1257 = vmatpush.msra.mxu0 %v1063
        %1258 = vmatpush.msra.mxu0 %v1059
        %1259 = vmatpush.msra.mxu0 %v1055
        %1260 = vmatpush.msra.mxu0 %v1051
        %1261 = vmatpush.msra.mxu0 %v1047
        %1262 = vmatpush.msra.mxu0 %v1043
        %1263 = vmatpush.msra.mxu0 %v1039
        %1264 = vmatpush.msra.mxu0 %v1035
        %1265 = vmatpush.msra.mxu0 %v1031
        %1266 = vmatpush.msra.mxu0 %v1027
        %1267 = vmatpush.msra.mxu0 %v1023
        %1268 = vmatmul.f32.gmra.mxu0 %v635
        %v1269 = vpop.f32.mrf.mxu0
        %v1270 = vadd.f32 0.0, %v1269
        %1271 = vdwg.mxu0
        %1272 = vmatpush.msra.mxu0 %v1084
        %1273 = vmatpush.msra.mxu0 %v1080
        %1274 = vmatpush.msra.mxu0 %v1076
        %1275 = vmatpush.msra.mxu0 %v1072
        %1276 = vmatpush.msra.mxu0 %v1068
        %1277 = vmatpush.msra.mxu0 %v1064
        %1278 = vmatpush.msra.mxu0 %v1060
        %1279 = vmatpush.msra.mxu0 %v1056
        %1280 = vmatpush.msra.mxu0 %v1052
        %1281 = vmatpush.msra.mxu0 %v1048
        %1282 = vmatpush.msra.mxu0 %v1044
        %1283 = vmatpush.msra.mxu0 %v1040
        %1284 = vmatpush.msra.mxu0 %v1036
        %1285 = vmatpush.msra.mxu0 %v1032
        %1286 = vmatpush.msra.mxu0 %v1028
        %1287 = vmatpush.msra.mxu0 %v1024
        %1288 = vmatmul.f32.gmra.mxu0 %v635
        %v1289 = vpop.f32.mrf.mxu0
        %v1290 = vadd.f32 0.0, %v1289
        %1291 = vdwg.mxu0
        %1292 = vmatpush.msra.mxu0 %v1085
        %1293 = vmatpush.msra.mxu0 %v1081
        %1294 = vmatpush.msra.mxu0 %v1077
        %1295 = vmatpush.msra.mxu0 %v1073
        %1296 = vmatpush.msra.mxu0 %v1069
        %1297 = vmatpush.msra.mxu0 %v1065
        %1298 = vmatpush.msra.mxu0 %v1061
        %1299 = vmatpush.msra.mxu0 %v1057
        %1300 = vmatpush.msra.mxu0 %v1053
        %1301 = vmatpush.msra.mxu0 %v1049
        %1302 = vmatpush.msra.mxu0 %v1045
        %1303 = vmatpush.msra.mxu0 %v1041
        %1304 = vmatpush.msra.mxu0 %v1037
        %1305 = vmatpush.msra.mxu0 %v1033
        %1306 = vmatpush.msra.mxu0 %v1029
        %1307 = vmatpush.msra.mxu0 %v1025
        %1308 = vmatmul.f32.gmra.mxu0 %v635
        %v1309 = vpop.f32.mrf.mxu0
        %v1310 = vadd.f32 0.0, %v1309
        %1311 = vdwg.mxu0
        %v1312 = vmul.f32 %v1250, %v1112
        %v1313 = vmul.f32 %v1270, %v1113
        %v1314 = vmul.f32 %v1290, %v1114
        %v1315 = vmul.f32 %v1310, %v1115
        %v1316 = vsel %vm601, %v1312, 0.0
        %v1317 = vrot.slane %v1316, 4
        %v1318 = vadd.f32 %v1316, %v1317
        %v1319 = vrot.slane %v1318, 2
        %v1320 = vadd.f32 %v1318, %v1319
        %v1321 = vrot.slane %v1320, 1
        %v1322 = vadd.f32 %v1320, %v1321
        %v1323 = vsel %vm601, %v1313, 0.0
        %v1324 = vrot.slane %v1323, 4
        %v1325 = vadd.f32 %v1323, %v1324
        %v1326 = vrot.slane %v1325, 2
        %v1327 = vadd.f32 %v1325, %v1326
        %v1328 = vrot.slane %v1327, 1
        %v1329 = vadd.f32 %v1327, %v1328
        %v1330 = vsel %vm601, %v1314, 0.0
        %v1331 = vrot.slane %v1330, 4
        %v1332 = vadd.f32 %v1330, %v1331
        %v1333 = vrot.slane %v1332, 2
        %v1334 = vadd.f32 %v1332, %v1333
        %v1335 = vrot.slane %v1334, 1
        %v1336 = vadd.f32 %v1334, %v1335
        %v1337 = vsel %vm601, %v1315, 0.0
        %v1338 = vrot.slane %v1337, 4
        %v1339 = vadd.f32 %v1337, %v1338
        %v1340 = vrot.slane %v1339, 2
        %v1341 = vadd.f32 %v1339, %v1340
        %v1342 = vrot.slane %v1341, 1
        %v1343 = vadd.f32 %v1341, %v1342
        %v1344 = vadd.f32 %v748, %v1322
        %v1345 = vadd.f32 %v749, %v1329
        %v1346 = vadd.f32 %v750, %v1336
        %v1347 = vadd.f32 %v751, %v1343
        %1348 = vmatpush.msra.mxu0 %v1082
        %1349 = vmatpush.msra.mxu0 %v1078
        %1350 = vmatpush.msra.mxu0 %v1074
        %1351 = vmatpush.msra.mxu0 %v1070
        %1352 = vmatpush.msra.mxu0 %v1066
        %1353 = vmatpush.msra.mxu0 %v1062
        %1354 = vmatpush.msra.mxu0 %v1058
        %1355 = vmatpush.msra.mxu0 %v1054
        %1356 = vmatpush.msra.mxu0 %v1050
        %1357 = vmatpush.msra.mxu0 %v1046
        %1358 = vmatpush.msra.mxu0 %v1042
        %1359 = vmatpush.msra.mxu0 %v1038
        %1360 = vmatpush.msra.mxu0 %v1034
        %1361 = vmatpush.msra.mxu0 %v1030
        %1362 = vmatpush.msra.mxu0 %v1026
        %1363 = vmatpush.msra.mxu0 %v1022
        %1364 = vmatmul.f32.gmra.mxu0 %v753
        %v1365 = vpop.f32.mrf.mxu0
        %v1366 = vadd.f32 0.0, %v1365
        %1367 = vdwg.mxu0
        %1368 = vmatpush.msra.mxu0 %v1083
        %1369 = vmatpush.msra.mxu0 %v1079
        %1370 = vmatpush.msra.mxu0 %v1075
        %1371 = vmatpush.msra.mxu0 %v1071
        %1372 = vmatpush.msra.mxu0 %v1067
        %1373 = vmatpush.msra.mxu0 %v1063
        %1374 = vmatpush.msra.mxu0 %v1059
        %1375 = vmatpush.msra.mxu0 %v1055
        %1376 = vmatpush.msra.mxu0 %v1051
        %1377 = vmatpush.msra.mxu0 %v1047
        %1378 = vmatpush.msra.mxu0 %v1043
        %1379 = vmatpush.msra.mxu0 %v1039
        %1380 = vmatpush.msra.mxu0 %v1035
        %1381 = vmatpush.msra.mxu0 %v1031
        %1382 = vmatpush.msra.mxu0 %v1027
        %1383 = vmatpush.msra.mxu0 %v1023
        %1384 = vmatmul.f32.gmra.mxu0 %v753
        %v1385 = vpop.f32.mrf.mxu0
        %v1386 = vadd.f32 0.0, %v1385
        %1387 = vdwg.mxu0
        %1388 = vmatpush.msra.mxu0 %v1084
        %1389 = vmatpush.msra.mxu0 %v1080
        %1390 = vmatpush.msra.mxu0 %v1076
        %1391 = vmatpush.msra.mxu0 %v1072
        %1392 = vmatpush.msra.mxu0 %v1068
        %1393 = vmatpush.msra.mxu0 %v1064
        %1394 = vmatpush.msra.mxu0 %v1060
        %1395 = vmatpush.msra.mxu0 %v1056
        %1396 = vmatpush.msra.mxu0 %v1052
        %1397 = vmatpush.msra.mxu0 %v1048
        %1398 = vmatpush.msra.mxu0 %v1044
        %1399 = vmatpush.msra.mxu0 %v1040
        %1400 = vmatpush.msra.mxu0 %v1036
        %1401 = vmatpush.msra.mxu0 %v1032
        %1402 = vmatpush.msra.mxu0 %v1028
        %1403 = vmatpush.msra.mxu0 %v1024
        %1404 = vmatmul.f32.gmra.mxu0 %v753
        %v1405 = vpop.f32.mrf.mxu0
        %v1406 = vadd.f32 0.0, %v1405
        %1407 = vdwg.mxu0
        %1408 = vmatpush.msra.mxu0 %v1085
        %1409 = vmatpush.msra.mxu0 %v1081
        %1410 = vmatpush.msra.mxu0 %v1077
        %1411 = vmatpush.msra.mxu0 %v1073
        %1412 = vmatpush.msra.mxu0 %v1069
        %1413 = vmatpush.msra.mxu0 %v1065
        %1414 = vmatpush.msra.mxu0 %v1061
        %1415 = vmatpush.msra.mxu0 %v1057
        %1416 = vmatpush.msra.mxu0 %v1053
        %1417 = vmatpush.msra.mxu0 %v1049
        %1418 = vmatpush.msra.mxu0 %v1045
        %1419 = vmatpush.msra.mxu0 %v1041
        %1420 = vmatpush.msra.mxu0 %v1037
        %1421 = vmatpush.msra.mxu0 %v1033
        %1422 = vmatpush.msra.mxu0 %v1029
        %1423 = vmatpush.msra.mxu0 %v1025
        %1424 = vmatmul.f32.gmra.mxu0 %v753
        %v1425 = vpop.f32.mrf.mxu0
        %v1426 = vadd.f32 0.0, %v1425
        %1427 = vdwg.mxu0
        %v1428 = vmul.f32 %v1366, %v1112
        %v1429 = vmul.f32 %v1386, %v1113
        %v1430 = vmul.f32 %v1406, %v1114
        %v1431 = vmul.f32 %v1426, %v1115
        %v1432 = vsel %vm601, %v1428, 0.0
        %v1433 = vrot.slane %v1432, 4
        %v1434 = vadd.f32 %v1432, %v1433
        %v1435 = vrot.slane %v1434, 2
        %v1436 = vadd.f32 %v1434, %v1435
        %v1437 = vrot.slane %v1436, 1
        %v1438 = vadd.f32 %v1436, %v1437
        %v1439 = vsel %vm601, %v1429, 0.0
        %v1440 = vrot.slane %v1439, 4
        %v1441 = vadd.f32 %v1439, %v1440
        %v1442 = vrot.slane %v1441, 2
        %v1443 = vadd.f32 %v1441, %v1442
        %v1444 = vrot.slane %v1443, 1
        %v1445 = vadd.f32 %v1443, %v1444
        %v1446 = vsel %vm601, %v1430, 0.0
        %v1447 = vrot.slane %v1446, 4
        %v1448 = vadd.f32 %v1446, %v1447
        %v1449 = vrot.slane %v1448, 2
        %v1450 = vadd.f32 %v1448, %v1449
        %v1451 = vrot.slane %v1450, 1
        %v1452 = vadd.f32 %v1450, %v1451
        %v1453 = vsel %vm601, %v1431, 0.0
        %v1454 = vrot.slane %v1453, 4
        %v1455 = vadd.f32 %v1453, %v1454
        %v1456 = vrot.slane %v1455, 2
        %v1457 = vadd.f32 %v1455, %v1456
        %v1458 = vrot.slane %v1457, 1
        %v1459 = vadd.f32 %v1457, %v1458
        %v1460 = vadd.f32 %v866, %v1438
        %v1461 = vadd.f32 %v867, %v1445
        %v1462 = vadd.f32 %v868, %v1452
        %v1463 = vadd.f32 %v869, %v1459
        %v1464 = vmul.u32 %v251, 8
        %v1465 = vmul.u32 %v253, 8
        %v1466 = vrot.slane %v1464, 7
        %v1467 = vrot.slane %v1465, 7
        %v1468 = vadd.s32 %v256, %v1466
        %v1469 = vadd.s32 %v257, %v1467
        %v1470 = vadd.s32 %v1468, %v264
        %v1471 = vadd.s32 %v1469, %v265
        %v1472 = vrot.slane %v244, 7
        %v1473 = vrot.slane %v245, 7
        %v1476 = vmul.f32 %v254, %v1472
        %v1477 = vmul.f32 %v255, %v1473
        %v1478 = vmul.f32 %v1476, %v276
        %v1479 = vmul.f32 %v1477, %v277
        %v1480 = vand.u32 %v1470, 127
        %v1481 = vand.u32 %v1471, 127
        %v1482 = vshra.s32 %v1470, 7
        %v1483 = vshra.s32 %v1471, 7
        %v1484 = vperm.slane %v1480, 2
        %v1485 = vperm.slane %v1480, 6
        %v1486 = vperm.slane %v1481, 2
        %v1487 = vperm.slane %v1481, 6
        %v1488 = vperm.slane %v1484, 2
        %v1489 = vperm.slane %v1485, 2
        %v1490 = vperm.slane %v1486, 2
        %v1491 = vperm.slane %v1487, 2
        %vm1492 = vcmp.eq.s32.totalorder %v151, %v1488
        %vm1493 = vcmp.eq.s32.totalorder %v151, %v1489
        %vm1494 = vcmp.eq.s32.totalorder %v151, %v1490
        %vm1495 = vcmp.eq.s32.totalorder %v151, %v1491
        %vm1496 = vcmp.eq.s32.totalorder %v152, %v1488
        %vm1497 = vcmp.eq.s32.totalorder %v152, %v1489
        %vm1498 = vcmp.eq.s32.totalorder %v152, %v1490
        %vm1499 = vcmp.eq.s32.totalorder %v152, %v1491
        %vm1500 = vcmp.eq.s32.totalorder %v153, %v1488
        %vm1501 = vcmp.eq.s32.totalorder %v153, %v1489
        %vm1502 = vcmp.eq.s32.totalorder %v153, %v1490
        %vm1503 = vcmp.eq.s32.totalorder %v153, %v1491
        %vm1504 = vcmp.eq.s32.totalorder %v154, %v1488
        %vm1505 = vcmp.eq.s32.totalorder %v154, %v1489
        %vm1506 = vcmp.eq.s32.totalorder %v154, %v1490
        %vm1507 = vcmp.eq.s32.totalorder %v154, %v1491
        %vm1508 = vcmp.eq.s32.totalorder %v155, %v1488
        %vm1509 = vcmp.eq.s32.totalorder %v155, %v1489
        %vm1510 = vcmp.eq.s32.totalorder %v155, %v1490
        %vm1511 = vcmp.eq.s32.totalorder %v155, %v1491
        %vm1512 = vcmp.eq.s32.totalorder %v156, %v1488
        %vm1513 = vcmp.eq.s32.totalorder %v156, %v1489
        %vm1514 = vcmp.eq.s32.totalorder %v156, %v1490
        %vm1515 = vcmp.eq.s32.totalorder %v156, %v1491
        %vm1516 = vcmp.eq.s32.totalorder %v157, %v1488
        %vm1517 = vcmp.eq.s32.totalorder %v157, %v1489
        %vm1518 = vcmp.eq.s32.totalorder %v157, %v1490
        %vm1519 = vcmp.eq.s32.totalorder %v157, %v1491
        %vm1520 = vcmp.eq.s32.totalorder %v158, %v1488
        %vm1521 = vcmp.eq.s32.totalorder %v158, %v1489
        %vm1522 = vcmp.eq.s32.totalorder %v158, %v1490
        %vm1523 = vcmp.eq.s32.totalorder %v158, %v1491
        %vm1524 = vcmp.eq.s32.totalorder %v159, %v1488
        %vm1525 = vcmp.eq.s32.totalorder %v159, %v1489
        %vm1526 = vcmp.eq.s32.totalorder %v159, %v1490
        %vm1527 = vcmp.eq.s32.totalorder %v159, %v1491
        %vm1528 = vcmp.eq.s32.totalorder %v160, %v1488
        %vm1529 = vcmp.eq.s32.totalorder %v160, %v1489
        %vm1530 = vcmp.eq.s32.totalorder %v160, %v1490
        %vm1531 = vcmp.eq.s32.totalorder %v160, %v1491
        %vm1532 = vcmp.eq.s32.totalorder %v161, %v1488
        %vm1533 = vcmp.eq.s32.totalorder %v161, %v1489
        %vm1534 = vcmp.eq.s32.totalorder %v161, %v1490
        %vm1535 = vcmp.eq.s32.totalorder %v161, %v1491
        %vm1536 = vcmp.eq.s32.totalorder %v162, %v1488
        %vm1537 = vcmp.eq.s32.totalorder %v162, %v1489
        %vm1538 = vcmp.eq.s32.totalorder %v162, %v1490
        %vm1539 = vcmp.eq.s32.totalorder %v162, %v1491
        %vm1540 = vcmp.eq.s32.totalorder %v163, %v1488
        %vm1541 = vcmp.eq.s32.totalorder %v163, %v1489
        %vm1542 = vcmp.eq.s32.totalorder %v163, %v1490
        %vm1543 = vcmp.eq.s32.totalorder %v163, %v1491
        %vm1544 = vcmp.eq.s32.totalorder %v164, %v1488
        %vm1545 = vcmp.eq.s32.totalorder %v164, %v1489
        %vm1546 = vcmp.eq.s32.totalorder %v164, %v1490
        %vm1547 = vcmp.eq.s32.totalorder %v164, %v1491
        %vm1548 = vcmp.eq.s32.totalorder %v165, %v1488
        %vm1549 = vcmp.eq.s32.totalorder %v165, %v1489
        %vm1550 = vcmp.eq.s32.totalorder %v165, %v1490
        %vm1551 = vcmp.eq.s32.totalorder %v165, %v1491
        %vm1552 = vcmp.eq.s32.totalorder %v166, %v1488
        %vm1553 = vcmp.eq.s32.totalorder %v166, %v1489
        %vm1554 = vcmp.eq.s32.totalorder %v166, %v1490
        %vm1555 = vcmp.eq.s32.totalorder %v166, %v1491
        %v1556 = vsel %vm1492, 1, 0
        %v1557 = vsel %vm1493, 1, 0
        %v1558 = vsel %vm1494, 1, 0
        %v1559 = vsel %vm1495, 1, 0
        %v1560 = vsel %vm1496, 1, 0
        %v1561 = vsel %vm1497, 1, 0
        %v1562 = vsel %vm1498, 1, 0
        %v1563 = vsel %vm1499, 1, 0
        %v1564 = vsel %vm1500, 1, 0
        %v1565 = vsel %vm1501, 1, 0
        %v1566 = vsel %vm1502, 1, 0
        %v1567 = vsel %vm1503, 1, 0
        %v1568 = vsel %vm1504, 1, 0
        %v1569 = vsel %vm1505, 1, 0
        %v1570 = vsel %vm1506, 1, 0
        %v1571 = vsel %vm1507, 1, 0
        %v1572 = vsel %vm1508, 1, 0
        %v1573 = vsel %vm1509, 1, 0
        %v1574 = vsel %vm1510, 1, 0
        %v1575 = vsel %vm1511, 1, 0
        %v1576 = vsel %vm1512, 1, 0
        %v1577 = vsel %vm1513, 1, 0
        %v1578 = vsel %vm1514, 1, 0
        %v1579 = vsel %vm1515, 1, 0
        %v1580 = vsel %vm1516, 1, 0
        %v1581 = vsel %vm1517, 1, 0
        %v1582 = vsel %vm1518, 1, 0
        %v1583 = vsel %vm1519, 1, 0
        %v1584 = vsel %vm1520, 1, 0
        %v1585 = vsel %vm1521, 1, 0
        %v1586 = vsel %vm1522, 1, 0
        %v1587 = vsel %vm1523, 1, 0
        %v1588 = vsel %vm1524, 1, 0
        %v1589 = vsel %vm1525, 1, 0
        %v1590 = vsel %vm1526, 1, 0
        %v1591 = vsel %vm1527, 1, 0
        %v1592 = vsel %vm1528, 1, 0
        %v1593 = vsel %vm1529, 1, 0
        %v1594 = vsel %vm1530, 1, 0
        %v1595 = vsel %vm1531, 1, 0
        %v1596 = vsel %vm1532, 1, 0
        %v1597 = vsel %vm1533, 1, 0
        %v1598 = vsel %vm1534, 1, 0
        %v1599 = vsel %vm1535, 1, 0
        %v1600 = vsel %vm1536, 1, 0
        %v1601 = vsel %vm1537, 1, 0
        %v1602 = vsel %vm1538, 1, 0
        %v1603 = vsel %vm1539, 1, 0
        %v1604 = vsel %vm1540, 1, 0
        %v1605 = vsel %vm1541, 1, 0
        %v1606 = vsel %vm1542, 1, 0
        %v1607 = vsel %vm1543, 1, 0
        %v1608 = vsel %vm1544, 1, 0
        %v1609 = vsel %vm1545, 1, 0
        %v1610 = vsel %vm1546, 1, 0
        %v1611 = vsel %vm1547, 1, 0
        %v1612 = vsel %vm1548, 1, 0
        %v1613 = vsel %vm1549, 1, 0
        %v1614 = vsel %vm1550, 1, 0
        %v1615 = vsel %vm1551, 1, 0
        %v1616 = vsel %vm1552, 1, 0
        %v1617 = vsel %vm1553, 1, 0
        %v1618 = vsel %vm1554, 1, 0
        %v1619 = vsel %vm1555, 1, 0
        %v1620 = vcvt.s32.f32 %v1556
        %v1621 = vcvt.s32.f32 %v1557
        %v1622 = vcvt.s32.f32 %v1558
        %v1623 = vcvt.s32.f32 %v1559
        %v1624 = vcvt.s32.f32 %v1560
        %v1625 = vcvt.s32.f32 %v1561
        %v1626 = vcvt.s32.f32 %v1562
        %v1627 = vcvt.s32.f32 %v1563
        %v1628 = vcvt.s32.f32 %v1564
        %v1629 = vcvt.s32.f32 %v1565
        %v1630 = vcvt.s32.f32 %v1566
        %v1631 = vcvt.s32.f32 %v1567
        %v1632 = vcvt.s32.f32 %v1568
        %v1633 = vcvt.s32.f32 %v1569
        %v1634 = vcvt.s32.f32 %v1570
        %v1635 = vcvt.s32.f32 %v1571
        %v1636 = vcvt.s32.f32 %v1572
        %v1637 = vcvt.s32.f32 %v1573
        %v1638 = vcvt.s32.f32 %v1574
        %v1639 = vcvt.s32.f32 %v1575
        %v1640 = vcvt.s32.f32 %v1576
        %v1641 = vcvt.s32.f32 %v1577
        %v1642 = vcvt.s32.f32 %v1578
        %v1643 = vcvt.s32.f32 %v1579
        %v1644 = vcvt.s32.f32 %v1580
        %v1645 = vcvt.s32.f32 %v1581
        %v1646 = vcvt.s32.f32 %v1582
        %v1647 = vcvt.s32.f32 %v1583
        %v1648 = vcvt.s32.f32 %v1584
        %v1649 = vcvt.s32.f32 %v1585
        %v1650 = vcvt.s32.f32 %v1586
        %v1651 = vcvt.s32.f32 %v1587
        %v1652 = vcvt.s32.f32 %v1588
        %v1653 = vcvt.s32.f32 %v1589
        %v1654 = vcvt.s32.f32 %v1590
        %v1655 = vcvt.s32.f32 %v1591
        %v1656 = vcvt.s32.f32 %v1592
        %v1657 = vcvt.s32.f32 %v1593
        %v1658 = vcvt.s32.f32 %v1594
        %v1659 = vcvt.s32.f32 %v1595
        %v1660 = vcvt.s32.f32 %v1596
        %v1661 = vcvt.s32.f32 %v1597
        %v1662 = vcvt.s32.f32 %v1598
        %v1663 = vcvt.s32.f32 %v1599
        %v1664 = vcvt.s32.f32 %v1600
        %v1665 = vcvt.s32.f32 %v1601
        %v1666 = vcvt.s32.f32 %v1602
        %v1667 = vcvt.s32.f32 %v1603
        %v1668 = vcvt.s32.f32 %v1604
        %v1669 = vcvt.s32.f32 %v1605
        %v1670 = vcvt.s32.f32 %v1606
        %v1671 = vcvt.s32.f32 %v1607
        %v1672 = vcvt.s32.f32 %v1608
        %v1673 = vcvt.s32.f32 %v1609
        %v1674 = vcvt.s32.f32 %v1610
        %v1675 = vcvt.s32.f32 %v1611
        %v1676 = vcvt.s32.f32 %v1612
        %v1677 = vcvt.s32.f32 %v1613
        %v1678 = vcvt.s32.f32 %v1614
        %v1679 = vcvt.s32.f32 %v1615
        %v1680 = vcvt.s32.f32 %v1616
        %v1681 = vcvt.s32.f32 %v1617
        %v1682 = vcvt.s32.f32 %v1618
        %v1683 = vcvt.s32.f32 %v1619
        %v1684 = vperm.slane %v1482, 2
        %v1685 = vperm.slane %v1482, 6
        %v1686 = vperm.slane %v1483, 2
        %v1687 = vperm.slane %v1483, 6
        %v1688 = vperm.slane %v1684, 2
        %v1689 = vperm.slane %v1685, 2
        %v1690 = vperm.slane %v1686, 2
        %v1691 = vperm.slane %v1687, 2
        %vm1692 = vcmp.eq.s32.totalorder %v151, %v1688
        %vm1693 = vcmp.eq.s32.totalorder %v151, %v1689
        %vm1694 = vcmp.eq.s32.totalorder %v151, %v1690
        %vm1695 = vcmp.eq.s32.totalorder %v151, %v1691
        %v1698 = vperm.slane %v1478, 2
        %v1699 = vperm.slane %v1478, 6
        %v1700 = vperm.slane %v1479, 2
        %v1701 = vperm.slane %v1479, 6
        %v1706 = vperm.slane %v1698, 2
        %v1707 = vperm.slane %v1699, 2
        %v1708 = vperm.slane %v1700, 2
        %v1709 = vperm.slane %v1701, 2
        %v1710 = vsel %vm1692, %v1706, 0.0
        %v1711 = vsel %vm1693, %v1707, 0.0
        %v1712 = vsel %vm1694, %v1708, 0.0
        %v1713 = vsel %vm1695, %v1709, 0.0
        %1714 = vmatpush.msra.mxu0 %v1680
        %1715 = vmatpush.msra.mxu0 %v1676
        %1716 = vmatpush.msra.mxu0 %v1672
        %1717 = vmatpush.msra.mxu0 %v1668
        %1718 = vmatpush.msra.mxu0 %v1664
        %1719 = vmatpush.msra.mxu0 %v1660
        %1720 = vmatpush.msra.mxu0 %v1656
        %1721 = vmatpush.msra.mxu0 %v1652
        %1722 = vmatpush.msra.mxu0 %v1648
        %1723 = vmatpush.msra.mxu0 %v1644
        %1724 = vmatpush.msra.mxu0 %v1640
        %1725 = vmatpush.msra.mxu0 %v1636
        %1726 = vmatpush.msra.mxu0 %v1632
        %1727 = vmatpush.msra.mxu0 %v1628
        %1728 = vmatpush.msra.mxu0 %v1624
        %1729 = vmatpush.msra.mxu0 %v1620
        %1730 = vmatmul.f32.gmra.mxu0 %v516
        %v1731 = vpop.f32.mrf.mxu0
        %v1732 = vadd.f32 0.0, %v1731
        %1733 = vdwg.mxu0
        %1734 = vmatpush.msra.mxu0 %v1681
        %1735 = vmatpush.msra.mxu0 %v1677
        %1736 = vmatpush.msra.mxu0 %v1673
        %1737 = vmatpush.msra.mxu0 %v1669
        %1738 = vmatpush.msra.mxu0 %v1665
        %1739 = vmatpush.msra.mxu0 %v1661
        %1740 = vmatpush.msra.mxu0 %v1657
        %1741 = vmatpush.msra.mxu0 %v1653
        %1742 = vmatpush.msra.mxu0 %v1649
        %1743 = vmatpush.msra.mxu0 %v1645
        %1744 = vmatpush.msra.mxu0 %v1641
        %1745 = vmatpush.msra.mxu0 %v1637
        %1746 = vmatpush.msra.mxu0 %v1633
        %1747 = vmatpush.msra.mxu0 %v1629
        %1748 = vmatpush.msra.mxu0 %v1625
        %1749 = vmatpush.msra.mxu0 %v1621
        %1750 = vmatmul.f32.gmra.mxu0 %v516
        %v1751 = vpop.f32.mrf.mxu0
        %v1752 = vadd.f32 0.0, %v1751
        %1753 = vdwg.mxu0
        %1754 = vmatpush.msra.mxu0 %v1682
        %1755 = vmatpush.msra.mxu0 %v1678
        %1756 = vmatpush.msra.mxu0 %v1674
        %1757 = vmatpush.msra.mxu0 %v1670
        %1758 = vmatpush.msra.mxu0 %v1666
        %1759 = vmatpush.msra.mxu0 %v1662
        %1760 = vmatpush.msra.mxu0 %v1658
        %1761 = vmatpush.msra.mxu0 %v1654
        %1762 = vmatpush.msra.mxu0 %v1650
        %1763 = vmatpush.msra.mxu0 %v1646
        %1764 = vmatpush.msra.mxu0 %v1642
        %1765 = vmatpush.msra.mxu0 %v1638
        %1766 = vmatpush.msra.mxu0 %v1634
        %1767 = vmatpush.msra.mxu0 %v1630
        %1768 = vmatpush.msra.mxu0 %v1626
        %1769 = vmatpush.msra.mxu0 %v1622
        %1770 = vmatmul.f32.gmra.mxu0 %v516
        %v1771 = vpop.f32.mrf.mxu0
        %v1772 = vadd.f32 0.0, %v1771
        %1773 = vdwg.mxu0
        %1774 = vmatpush.msra.mxu0 %v1683
        %1775 = vmatpush.msra.mxu0 %v1679
        %1776 = vmatpush.msra.mxu0 %v1675
        %1777 = vmatpush.msra.mxu0 %v1671
        %1778 = vmatpush.msra.mxu0 %v1667
        %1779 = vmatpush.msra.mxu0 %v1663
        %1780 = vmatpush.msra.mxu0 %v1659
        %1781 = vmatpush.msra.mxu0 %v1655
        %1782 = vmatpush.msra.mxu0 %v1651
        %1783 = vmatpush.msra.mxu0 %v1647
        %1784 = vmatpush.msra.mxu0 %v1643
        %1785 = vmatpush.msra.mxu0 %v1639
        %1786 = vmatpush.msra.mxu0 %v1635
        %1787 = vmatpush.msra.mxu0 %v1631
        %1788 = vmatpush.msra.mxu0 %v1627
        %1789 = vmatpush.msra.mxu0 %v1623
        %1790 = vmatmul.f32.gmra.mxu0 %v516
        %v1791 = vpop.f32.mrf.mxu0
        %v1792 = vadd.f32 0.0, %v1791
        %1793 = vdwg.mxu0
        %v1794 = vmul.f32 %v1732, %v1710
        %v1795 = vmul.f32 %v1752, %v1711
        %v1796 = vmul.f32 %v1772, %v1712
        %v1797 = vmul.f32 %v1792, %v1713
        %v1798 = vsel %vm601, %v1794, 0.0
        %v1799 = vrot.slane %v1798, 4
        %v1800 = vadd.f32 %v1798, %v1799
        %v1801 = vrot.slane %v1800, 2
        %v1802 = vadd.f32 %v1800, %v1801
        %v1803 = vrot.slane %v1802, 1
        %v1804 = vadd.f32 %v1802, %v1803
        %v1805 = vsel %vm601, %v1795, 0.0
        %v1806 = vrot.slane %v1805, 4
        %v1807 = vadd.f32 %v1805, %v1806
        %v1808 = vrot.slane %v1807, 2
        %v1809 = vadd.f32 %v1807, %v1808
        %v1810 = vrot.slane %v1809, 1
        %v1811 = vadd.f32 %v1809, %v1810
        %v1812 = vsel %vm601, %v1796, 0.0
        %v1813 = vrot.slane %v1812, 4
        %v1814 = vadd.f32 %v1812, %v1813
        %v1815 = vrot.slane %v1814, 2
        %v1816 = vadd.f32 %v1814, %v1815
        %v1817 = vrot.slane %v1816, 1
        %v1818 = vadd.f32 %v1816, %v1817
        %v1819 = vsel %vm601, %v1797, 0.0
        %v1820 = vrot.slane %v1819, 4
        %v1821 = vadd.f32 %v1819, %v1820
        %v1822 = vrot.slane %v1821, 2
        %v1823 = vadd.f32 %v1821, %v1822
        %v1824 = vrot.slane %v1823, 1
        %v1825 = vadd.f32 %v1823, %v1824
        %v1826 = vadd.f32 %v1228, %v1804
        %v1827 = vadd.f32 %v1229, %v1811
        %v1828 = vadd.f32 %v1230, %v1818
        %v1829 = vadd.f32 %v1231, %v1825
        %1830 = vmatpush.msra.mxu0 %v1680
        %1831 = vmatpush.msra.mxu0 %v1676
        %1832 = vmatpush.msra.mxu0 %v1672
        %1833 = vmatpush.msra.mxu0 %v1668
        %1834 = vmatpush.msra.mxu0 %v1664
        %1835 = vmatpush.msra.mxu0 %v1660
        %1836 = vmatpush.msra.mxu0 %v1656
        %1837 = vmatpush.msra.mxu0 %v1652
        %1838 = vmatpush.msra.mxu0 %v1648
        %1839 = vmatpush.msra.mxu0 %v1644
        %1840 = vmatpush.msra.mxu0 %v1640
        %1841 = vmatpush.msra.mxu0 %v1636
        %1842 = vmatpush.msra.mxu0 %v1632
        %1843 = vmatpush.msra.mxu0 %v1628
        %1844 = vmatpush.msra.mxu0 %v1624
        %1845 = vmatpush.msra.mxu0 %v1620
        %1846 = vmatmul.f32.gmra.mxu0 %v635
        %v1847 = vpop.f32.mrf.mxu0
        %v1848 = vadd.f32 0.0, %v1847
        %1849 = vdwg.mxu0
        %1850 = vmatpush.msra.mxu0 %v1681
        %1851 = vmatpush.msra.mxu0 %v1677
        %1852 = vmatpush.msra.mxu0 %v1673
        %1853 = vmatpush.msra.mxu0 %v1669
        %1854 = vmatpush.msra.mxu0 %v1665
        %1855 = vmatpush.msra.mxu0 %v1661
        %1856 = vmatpush.msra.mxu0 %v1657
        %1857 = vmatpush.msra.mxu0 %v1653
        %1858 = vmatpush.msra.mxu0 %v1649
        %1859 = vmatpush.msra.mxu0 %v1645
        %1860 = vmatpush.msra.mxu0 %v1641
        %1861 = vmatpush.msra.mxu0 %v1637
        %1862 = vmatpush.msra.mxu0 %v1633
        %1863 = vmatpush.msra.mxu0 %v1629
        %1864 = vmatpush.msra.mxu0 %v1625
        %1865 = vmatpush.msra.mxu0 %v1621
        %1866 = vmatmul.f32.gmra.mxu0 %v635
        %v1867 = vpop.f32.mrf.mxu0
        %v1868 = vadd.f32 0.0, %v1867
        %1869 = vdwg.mxu0
        %1870 = vmatpush.msra.mxu0 %v1682
        %1871 = vmatpush.msra.mxu0 %v1678
        %1872 = vmatpush.msra.mxu0 %v1674
        %1873 = vmatpush.msra.mxu0 %v1670
        %1874 = vmatpush.msra.mxu0 %v1666
        %1875 = vmatpush.msra.mxu0 %v1662
        %1876 = vmatpush.msra.mxu0 %v1658
        %1877 = vmatpush.msra.mxu0 %v1654
        %1878 = vmatpush.msra.mxu0 %v1650
        %1879 = vmatpush.msra.mxu0 %v1646
        %1880 = vmatpush.msra.mxu0 %v1642
        %1881 = vmatpush.msra.mxu0 %v1638
        %1882 = vmatpush.msra.mxu0 %v1634
        %1883 = vmatpush.msra.mxu0 %v1630
        %1884 = vmatpush.msra.mxu0 %v1626
        %1885 = vmatpush.msra.mxu0 %v1622
        %1886 = vmatmul.f32.gmra.mxu0 %v635
        %v1887 = vpop.f32.mrf.mxu0
        %v1888 = vadd.f32 0.0, %v1887
        %1889 = vdwg.mxu0
        %1890 = vmatpush.msra.mxu0 %v1683
        %1891 = vmatpush.msra.mxu0 %v1679
        %1892 = vmatpush.msra.mxu0 %v1675
        %1893 = vmatpush.msra.mxu0 %v1671
        %1894 = vmatpush.msra.mxu0 %v1667
        %1895 = vmatpush.msra.mxu0 %v1663
        %1896 = vmatpush.msra.mxu0 %v1659
        %1897 = vmatpush.msra.mxu0 %v1655
        %1898 = vmatpush.msra.mxu0 %v1651
        %1899 = vmatpush.msra.mxu0 %v1647
        %1900 = vmatpush.msra.mxu0 %v1643
        %1901 = vmatpush.msra.mxu0 %v1639
        %1902 = vmatpush.msra.mxu0 %v1635
        %1903 = vmatpush.msra.mxu0 %v1631
        %1904 = vmatpush.msra.mxu0 %v1627
        %1905 = vmatpush.msra.mxu0 %v1623
        %1906 = vmatmul.f32.gmra.mxu0 %v635
        %v1907 = vpop.f32.mrf.mxu0
        %v1908 = vadd.f32 0.0, %v1907
        %1909 = vdwg.mxu0
        %v1910 = vmul.f32 %v1848, %v1710
        %v1911 = vmul.f32 %v1868, %v1711
        %v1912 = vmul.f32 %v1888, %v1712
        %v1913 = vmul.f32 %v1908, %v1713
        %v1914 = vsel %vm601, %v1910, 0.0
        %v1915 = vrot.slane %v1914, 4
        %v1916 = vadd.f32 %v1914, %v1915
        %v1917 = vrot.slane %v1916, 2
        %v1918 = vadd.f32 %v1916, %v1917
        %v1919 = vrot.slane %v1918, 1
        %v1920 = vadd.f32 %v1918, %v1919
        %v1921 = vsel %vm601, %v1911, 0.0
        %v1922 = vrot.slane %v1921, 4
        %v1923 = vadd.f32 %v1921, %v1922
        %v1924 = vrot.slane %v1923, 2
        %v1925 = vadd.f32 %v1923, %v1924
        %v1926 = vrot.slane %v1925, 1
        %v1927 = vadd.f32 %v1925, %v1926
        %v1928 = vsel %vm601, %v1912, 0.0
        %v1929 = vrot.slane %v1928, 4
        %v1930 = vadd.f32 %v1928, %v1929
        %v1931 = vrot.slane %v1930, 2
        %v1932 = vadd.f32 %v1930, %v1931
        %v1933 = vrot.slane %v1932, 1
        %v1934 = vadd.f32 %v1932, %v1933
        %v1935 = vsel %vm601, %v1913, 0.0
        %v1936 = vrot.slane %v1935, 4
        %v1937 = vadd.f32 %v1935, %v1936
        %v1938 = vrot.slane %v1937, 2
        %v1939 = vadd.f32 %v1937, %v1938
        %v1940 = vrot.slane %v1939, 1
        %v1941 = vadd.f32 %v1939, %v1940
        %v1942 = vadd.f32 %v1344, %v1920
        %v1943 = vadd.f32 %v1345, %v1927
        %v1944 = vadd.f32 %v1346, %v1934
        %v1945 = vadd.f32 %v1347, %v1941
        %1946 = vmatpush.msra.mxu0 %v1680
        %1947 = vmatpush.msra.mxu0 %v1676
        %1948 = vmatpush.msra.mxu0 %v1672
        %1949 = vmatpush.msra.mxu0 %v1668
        %1950 = vmatpush.msra.mxu0 %v1664
        %1951 = vmatpush.msra.mxu0 %v1660
        %1952 = vmatpush.msra.mxu0 %v1656
        %1953 = vmatpush.msra.mxu0 %v1652
        %1954 = vmatpush.msra.mxu0 %v1648
        %1955 = vmatpush.msra.mxu0 %v1644
        %1956 = vmatpush.msra.mxu0 %v1640
        %1957 = vmatpush.msra.mxu0 %v1636
        %1958 = vmatpush.msra.mxu0 %v1632
        %1959 = vmatpush.msra.mxu0 %v1628
        %1960 = vmatpush.msra.mxu0 %v1624
        %1961 = vmatpush.msra.mxu0 %v1620
        %1962 = vmatmul.f32.gmra.mxu0 %v753
        %v1963 = vpop.f32.mrf.mxu0
        %v1964 = vadd.f32 0.0, %v1963
        %1965 = vdwg.mxu0
        %1966 = vmatpush.msra.mxu0 %v1681
        %1967 = vmatpush.msra.mxu0 %v1677
        %1968 = vmatpush.msra.mxu0 %v1673
        %1969 = vmatpush.msra.mxu0 %v1669
        %1970 = vmatpush.msra.mxu0 %v1665
        %1971 = vmatpush.msra.mxu0 %v1661
        %1972 = vmatpush.msra.mxu0 %v1657
        %1973 = vmatpush.msra.mxu0 %v1653
        %1974 = vmatpush.msra.mxu0 %v1649
        %1975 = vmatpush.msra.mxu0 %v1645
        %1976 = vmatpush.msra.mxu0 %v1641
        %1977 = vmatpush.msra.mxu0 %v1637
        %1978 = vmatpush.msra.mxu0 %v1633
        %1979 = vmatpush.msra.mxu0 %v1629
        %1980 = vmatpush.msra.mxu0 %v1625
        %1981 = vmatpush.msra.mxu0 %v1621
        %1982 = vmatmul.f32.gmra.mxu0 %v753
        %v1983 = vpop.f32.mrf.mxu0
        %v1984 = vadd.f32 0.0, %v1983
        %1985 = vdwg.mxu0
        %1986 = vmatpush.msra.mxu0 %v1682
        %1987 = vmatpush.msra.mxu0 %v1678
        %1988 = vmatpush.msra.mxu0 %v1674
        %1989 = vmatpush.msra.mxu0 %v1670
        %1990 = vmatpush.msra.mxu0 %v1666
        %1991 = vmatpush.msra.mxu0 %v1662
        %1992 = vmatpush.msra.mxu0 %v1658
        %1993 = vmatpush.msra.mxu0 %v1654
        %1994 = vmatpush.msra.mxu0 %v1650
        %1995 = vmatpush.msra.mxu0 %v1646
        %1996 = vmatpush.msra.mxu0 %v1642
        %1997 = vmatpush.msra.mxu0 %v1638
        %1998 = vmatpush.msra.mxu0 %v1634
        %1999 = vmatpush.msra.mxu0 %v1630
        %2000 = vmatpush.msra.mxu0 %v1626
        %2001 = vmatpush.msra.mxu0 %v1622
        %2002 = vmatmul.f32.gmra.mxu0 %v753
        %v2003 = vpop.f32.mrf.mxu0
        %v2004 = vadd.f32 0.0, %v2003
        %2005 = vdwg.mxu0
        %2006 = vmatpush.msra.mxu0 %v1683
        %2007 = vmatpush.msra.mxu0 %v1679
        %2008 = vmatpush.msra.mxu0 %v1675
        %2009 = vmatpush.msra.mxu0 %v1671
        %2010 = vmatpush.msra.mxu0 %v1667
        %2011 = vmatpush.msra.mxu0 %v1663
        %2012 = vmatpush.msra.mxu0 %v1659
        %2013 = vmatpush.msra.mxu0 %v1655
        %2014 = vmatpush.msra.mxu0 %v1651
        %2015 = vmatpush.msra.mxu0 %v1647
        %2016 = vmatpush.msra.mxu0 %v1643
        %2017 = vmatpush.msra.mxu0 %v1639
        %2018 = vmatpush.msra.mxu0 %v1635
        %2019 = vmatpush.msra.mxu0 %v1631
        %2020 = vmatpush.msra.mxu0 %v1627
        %2021 = vmatpush.msra.mxu0 %v1623
        %2022 = vmatmul.f32.gmra.mxu0 %v753
        %v2023 = vpop.f32.mrf.mxu0
        %v2024 = vadd.f32 0.0, %v2023
        %2025 = vdwg.mxu0
        %v2026 = vmul.f32 %v1964, %v1710
        %v2027 = vmul.f32 %v1984, %v1711
        %v2028 = vmul.f32 %v2004, %v1712
        %v2029 = vmul.f32 %v2024, %v1713
        %v2030 = vsel %vm601, %v2026, 0.0
        %v2031 = vrot.slane %v2030, 4
        %v2032 = vadd.f32 %v2030, %v2031
        %v2033 = vrot.slane %v2032, 2
        %v2034 = vadd.f32 %v2032, %v2033
        %v2035 = vrot.slane %v2034, 1
        %v2036 = vadd.f32 %v2034, %v2035
        %v2037 = vsel %vm601, %v2027, 0.0
        %v2038 = vrot.slane %v2037, 4
        %v2039 = vadd.f32 %v2037, %v2038
        %v2040 = vrot.slane %v2039, 2
        %v2041 = vadd.f32 %v2039, %v2040
        %v2042 = vrot.slane %v2041, 1
        %v2043 = vadd.f32 %v2041, %v2042
        %v2044 = vsel %vm601, %v2028, 0.0
        %v2045 = vrot.slane %v2044, 4
        %v2046 = vadd.f32 %v2044, %v2045
        %v2047 = vrot.slane %v2046, 2
        %v2048 = vadd.f32 %v2046, %v2047
        %v2049 = vrot.slane %v2048, 1
        %v2050 = vadd.f32 %v2048, %v2049
        %v2051 = vsel %vm601, %v2029, 0.0
        %v2052 = vrot.slane %v2051, 4
        %v2053 = vadd.f32 %v2051, %v2052
        %v2054 = vrot.slane %v2053, 2
        %v2055 = vadd.f32 %v2053, %v2054
        %v2056 = vrot.slane %v2055, 1
        %v2057 = vadd.f32 %v2055, %v2056
        %v2058 = vadd.f32 %v1460, %v2036
        %v2059 = vadd.f32 %v1461, %v2043
        %v2060 = vadd.f32 %v1462, %v2050
        %v2061 = vadd.f32 %v1463, %v2057
        %v2062 = vadd.s32 %v1468, %v870
        %v2063 = vadd.s32 %v1469, %v871
        %v2064 = vmul.f32 %v1476, %v876
        %v2065 = vmul.f32 %v1477, %v877
        %v2066 = vand.u32 %v2062, 127
        %v2067 = vand.u32 %v2063, 127
        %v2068 = vshra.s32 %v2062, 7
        %v2069 = vshra.s32 %v2063, 7
        %v2070 = vperm.slane %v2066, 2
        %v2071 = vperm.slane %v2066, 6
        %v2072 = vperm.slane %v2067, 2
        %v2073 = vperm.slane %v2067, 6
        %v2074 = vperm.slane %v2070, 2
        %v2075 = vperm.slane %v2071, 2
        %v2076 = vperm.slane %v2072, 2
        %v2077 = vperm.slane %v2073, 2
        %vm2078 = vcmp.eq.s32.totalorder %v151, %v2074
        %vm2079 = vcmp.eq.s32.totalorder %v151, %v2075
        %vm2080 = vcmp.eq.s32.totalorder %v151, %v2076
        %vm2081 = vcmp.eq.s32.totalorder %v151, %v2077
        %vm2082 = vcmp.eq.s32.totalorder %v152, %v2074
        %vm2083 = vcmp.eq.s32.totalorder %v152, %v2075
        %vm2084 = vcmp.eq.s32.totalorder %v152, %v2076
        %vm2085 = vcmp.eq.s32.totalorder %v152, %v2077
        %vm2086 = vcmp.eq.s32.totalorder %v153, %v2074
        %vm2087 = vcmp.eq.s32.totalorder %v153, %v2075
        %vm2088 = vcmp.eq.s32.totalorder %v153, %v2076
        %vm2089 = vcmp.eq.s32.totalorder %v153, %v2077
        %vm2090 = vcmp.eq.s32.totalorder %v154, %v2074
        %vm2091 = vcmp.eq.s32.totalorder %v154, %v2075
        %vm2092 = vcmp.eq.s32.totalorder %v154, %v2076
        %vm2093 = vcmp.eq.s32.totalorder %v154, %v2077
        %vm2094 = vcmp.eq.s32.totalorder %v155, %v2074
        %vm2095 = vcmp.eq.s32.totalorder %v155, %v2075
        %vm2096 = vcmp.eq.s32.totalorder %v155, %v2076
        %vm2097 = vcmp.eq.s32.totalorder %v155, %v2077
        %vm2098 = vcmp.eq.s32.totalorder %v156, %v2074
        %vm2099 = vcmp.eq.s32.totalorder %v156, %v2075
        %vm2100 = vcmp.eq.s32.totalorder %v156, %v2076
        %vm2101 = vcmp.eq.s32.totalorder %v156, %v2077
        %vm2102 = vcmp.eq.s32.totalorder %v157, %v2074
        %vm2103 = vcmp.eq.s32.totalorder %v157, %v2075
        %vm2104 = vcmp.eq.s32.totalorder %v157, %v2076
        %vm2105 = vcmp.eq.s32.totalorder %v157, %v2077
        %vm2106 = vcmp.eq.s32.totalorder %v158, %v2074
        %vm2107 = vcmp.eq.s32.totalorder %v158, %v2075
        %vm2108 = vcmp.eq.s32.totalorder %v158, %v2076
        %vm2109 = vcmp.eq.s32.totalorder %v158, %v2077
        %vm2110 = vcmp.eq.s32.totalorder %v159, %v2074
        %vm2111 = vcmp.eq.s32.totalorder %v159, %v2075
        %vm2112 = vcmp.eq.s32.totalorder %v159, %v2076
        %vm2113 = vcmp.eq.s32.totalorder %v159, %v2077
        %vm2114 = vcmp.eq.s32.totalorder %v160, %v2074
        %vm2115 = vcmp.eq.s32.totalorder %v160, %v2075
        %vm2116 = vcmp.eq.s32.totalorder %v160, %v2076
        %vm2117 = vcmp.eq.s32.totalorder %v160, %v2077
        %vm2118 = vcmp.eq.s32.totalorder %v161, %v2074
        %vm2119 = vcmp.eq.s32.totalorder %v161, %v2075
        %vm2120 = vcmp.eq.s32.totalorder %v161, %v2076
        %vm2121 = vcmp.eq.s32.totalorder %v161, %v2077
        %vm2122 = vcmp.eq.s32.totalorder %v162, %v2074
        %vm2123 = vcmp.eq.s32.totalorder %v162, %v2075
        %vm2124 = vcmp.eq.s32.totalorder %v162, %v2076
        %vm2125 = vcmp.eq.s32.totalorder %v162, %v2077
        %vm2126 = vcmp.eq.s32.totalorder %v163, %v2074
        %vm2127 = vcmp.eq.s32.totalorder %v163, %v2075
        %vm2128 = vcmp.eq.s32.totalorder %v163, %v2076
        %vm2129 = vcmp.eq.s32.totalorder %v163, %v2077
        %vm2130 = vcmp.eq.s32.totalorder %v164, %v2074
        %vm2131 = vcmp.eq.s32.totalorder %v164, %v2075
        %vm2132 = vcmp.eq.s32.totalorder %v164, %v2076
        %vm2133 = vcmp.eq.s32.totalorder %v164, %v2077
        %vm2134 = vcmp.eq.s32.totalorder %v165, %v2074
        %vm2135 = vcmp.eq.s32.totalorder %v165, %v2075
        %vm2136 = vcmp.eq.s32.totalorder %v165, %v2076
        %vm2137 = vcmp.eq.s32.totalorder %v165, %v2077
        %vm2138 = vcmp.eq.s32.totalorder %v166, %v2074
        %vm2139 = vcmp.eq.s32.totalorder %v166, %v2075
        %vm2140 = vcmp.eq.s32.totalorder %v166, %v2076
        %vm2141 = vcmp.eq.s32.totalorder %v166, %v2077
        %v2142 = vsel %vm2078, 1, 0
        %v2143 = vsel %vm2079, 1, 0
        %v2144 = vsel %vm2080, 1, 0
        %v2145 = vsel %vm2081, 1, 0
        %v2146 = vsel %vm2082, 1, 0
        %v2147 = vsel %vm2083, 1, 0
        %v2148 = vsel %vm2084, 1, 0
        %v2149 = vsel %vm2085, 1, 0
        %v2150 = vsel %vm2086, 1, 0
        %v2151 = vsel %vm2087, 1, 0
        %v2152 = vsel %vm2088, 1, 0
        %v2153 = vsel %vm2089, 1, 0
        %v2154 = vsel %vm2090, 1, 0
        %v2155 = vsel %vm2091, 1, 0
        %v2156 = vsel %vm2092, 1, 0
        %v2157 = vsel %vm2093, 1, 0
        %v2158 = vsel %vm2094, 1, 0
        %v2159 = vsel %vm2095, 1, 0
        %v2160 = vsel %vm2096, 1, 0
        %v2161 = vsel %vm2097, 1, 0
        %v2162 = vsel %vm2098, 1, 0
        %v2163 = vsel %vm2099, 1, 0
        %v2164 = vsel %vm2100, 1, 0
        %v2165 = vsel %vm2101, 1, 0
        %v2166 = vsel %vm2102, 1, 0
        %v2167 = vsel %vm2103, 1, 0
        %v2168 = vsel %vm2104, 1, 0
        %v2169 = vsel %vm2105, 1, 0
        %v2170 = vsel %vm2106, 1, 0
        %v2171 = vsel %vm2107, 1, 0
        %v2172 = vsel %vm2108, 1, 0
        %v2173 = vsel %vm2109, 1, 0
        %v2174 = vsel %vm2110, 1, 0
        %v2175 = vsel %vm2111, 1, 0
        %v2176 = vsel %vm2112, 1, 0
        %v2177 = vsel %vm2113, 1, 0
        %v2178 = vsel %vm2114, 1, 0
        %v2179 = vsel %vm2115, 1, 0
        %v2180 = vsel %vm2116, 1, 0
        %v2181 = vsel %vm2117, 1, 0
        %v2182 = vsel %vm2118, 1, 0
        %v2183 = vsel %vm2119, 1, 0
        %v2184 = vsel %vm2120, 1, 0
        %v2185 = vsel %vm2121, 1, 0
        %v2186 = vsel %vm2122, 1, 0
        %v2187 = vsel %vm2123, 1, 0
        %v2188 = vsel %vm2124, 1, 0
        %v2189 = vsel %vm2125, 1, 0
        %v2190 = vsel %vm2126, 1, 0
        %v2191 = vsel %vm2127, 1, 0
        %v2192 = vsel %vm2128, 1, 0
        %v2193 = vsel %vm2129, 1, 0
        %v2194 = vsel %vm2130, 1, 0
        %v2195 = vsel %vm2131, 1, 0
        %v2196 = vsel %vm2132, 1, 0
        %v2197 = vsel %vm2133, 1, 0
        %v2198 = vsel %vm2134, 1, 0
        %v2199 = vsel %vm2135, 1, 0
        %v2200 = vsel %vm2136, 1, 0
        %v2201 = vsel %vm2137, 1, 0
        %v2202 = vsel %vm2138, 1, 0
        %v2203 = vsel %vm2139, 1, 0
        %v2204 = vsel %vm2140, 1, 0
        %v2205 = vsel %vm2141, 1, 0
        %v2206 = vcvt.s32.f32 %v2142
        %v2207 = vcvt.s32.f32 %v2143
        %v2208 = vcvt.s32.f32 %v2144
        %v2209 = vcvt.s32.f32 %v2145
        %v2210 = vcvt.s32.f32 %v2146
        %v2211 = vcvt.s32.f32 %v2147
        %v2212 = vcvt.s32.f32 %v2148
        %v2213 = vcvt.s32.f32 %v2149
        %v2214 = vcvt.s32.f32 %v2150
        %v2215 = vcvt.s32.f32 %v2151
        %v2216 = vcvt.s32.f32 %v2152
        %v2217 = vcvt.s32.f32 %v2153
        %v2218 = vcvt.s32.f32 %v2154
        %v2219 = vcvt.s32.f32 %v2155
        %v2220 = vcvt.s32.f32 %v2156
        %v2221 = vcvt.s32.f32 %v2157
        %v2222 = vcvt.s32.f32 %v2158
        %v2223 = vcvt.s32.f32 %v2159
        %v2224 = vcvt.s32.f32 %v2160
        %v2225 = vcvt.s32.f32 %v2161
        %v2226 = vcvt.s32.f32 %v2162
        %v2227 = vcvt.s32.f32 %v2163
        %v2228 = vcvt.s32.f32 %v2164
        %v2229 = vcvt.s32.f32 %v2165
        %v2230 = vcvt.s32.f32 %v2166
        %v2231 = vcvt.s32.f32 %v2167
        %v2232 = vcvt.s32.f32 %v2168
        %v2233 = vcvt.s32.f32 %v2169
        %v2234 = vcvt.s32.f32 %v2170
        %v2235 = vcvt.s32.f32 %v2171
        %v2236 = vcvt.s32.f32 %v2172
        %v2237 = vcvt.s32.f32 %v2173
        %v2238 = vcvt.s32.f32 %v2174
        %v2239 = vcvt.s32.f32 %v2175
        %v2240 = vcvt.s32.f32 %v2176
        %v2241 = vcvt.s32.f32 %v2177
        %v2242 = vcvt.s32.f32 %v2178
        %v2243 = vcvt.s32.f32 %v2179
        %v2244 = vcvt.s32.f32 %v2180
        %v2245 = vcvt.s32.f32 %v2181
        %v2246 = vcvt.s32.f32 %v2182
        %v2247 = vcvt.s32.f32 %v2183
        %v2248 = vcvt.s32.f32 %v2184
        %v2249 = vcvt.s32.f32 %v2185
        %v2250 = vcvt.s32.f32 %v2186
        %v2251 = vcvt.s32.f32 %v2187
        %v2252 = vcvt.s32.f32 %v2188
        %v2253 = vcvt.s32.f32 %v2189
        %v2254 = vcvt.s32.f32 %v2190
        %v2255 = vcvt.s32.f32 %v2191
        %v2256 = vcvt.s32.f32 %v2192
        %v2257 = vcvt.s32.f32 %v2193
        %v2258 = vcvt.s32.f32 %v2194
        %v2259 = vcvt.s32.f32 %v2195
        %v2260 = vcvt.s32.f32 %v2196
        %v2261 = vcvt.s32.f32 %v2197
        %v2262 = vcvt.s32.f32 %v2198
        %v2263 = vcvt.s32.f32 %v2199
        %v2264 = vcvt.s32.f32 %v2200
        %v2265 = vcvt.s32.f32 %v2201
        %v2266 = vcvt.s32.f32 %v2202
        %v2267 = vcvt.s32.f32 %v2203
        %v2268 = vcvt.s32.f32 %v2204
        %v2269 = vcvt.s32.f32 %v2205
        %v2270 = vperm.slane %v2068, 2
        %v2271 = vperm.slane %v2068, 6
        %v2272 = vperm.slane %v2069, 2
        %v2273 = vperm.slane %v2069, 6
        %v2274 = vperm.slane %v2270, 2
        %v2275 = vperm.slane %v2271, 2
        %v2276 = vperm.slane %v2272, 2
        %v2277 = vperm.slane %v2273, 2
        %vm2278 = vcmp.eq.s32.totalorder %v151, %v2274
        %vm2279 = vcmp.eq.s32.totalorder %v151, %v2275
        %vm2280 = vcmp.eq.s32.totalorder %v151, %v2276
        %vm2281 = vcmp.eq.s32.totalorder %v151, %v2277
        %v2284 = vperm.slane %v2064, 2
        %v2285 = vperm.slane %v2064, 6
        %v2286 = vperm.slane %v2065, 2
        %v2287 = vperm.slane %v2065, 6
        %v2292 = vperm.slane %v2284, 2
        %v2293 = vperm.slane %v2285, 2
        %v2294 = vperm.slane %v2286, 2
        %v2295 = vperm.slane %v2287, 2
        %v2296 = vsel %vm2278, %v2292, 0.0
        %v2297 = vsel %vm2279, %v2293, 0.0
        %v2298 = vsel %vm2280, %v2294, 0.0
        %v2299 = vsel %vm2281, %v2295, 0.0
        %2300 = vmatpush.msra.mxu0 %v2266
        %2301 = vmatpush.msra.mxu0 %v2262
        %2302 = vmatpush.msra.mxu0 %v2258
        %2303 = vmatpush.msra.mxu0 %v2254
        %2304 = vmatpush.msra.mxu0 %v2250
        %2305 = vmatpush.msra.mxu0 %v2246
        %2306 = vmatpush.msra.mxu0 %v2242
        %2307 = vmatpush.msra.mxu0 %v2238
        %2308 = vmatpush.msra.mxu0 %v2234
        %2309 = vmatpush.msra.mxu0 %v2230
        %2310 = vmatpush.msra.mxu0 %v2226
        %2311 = vmatpush.msra.mxu0 %v2222
        %2312 = vmatpush.msra.mxu0 %v2218
        %2313 = vmatpush.msra.mxu0 %v2214
        %2314 = vmatpush.msra.mxu0 %v2210
        %2315 = vmatpush.msra.mxu0 %v2206
        %2316 = vmatmul.f32.gmra.mxu0 %v516
        %v2317 = vpop.f32.mrf.mxu0
        %v2318 = vadd.f32 0.0, %v2317
        %2319 = vdwg.mxu0
        %2320 = vmatpush.msra.mxu0 %v2267
        %2321 = vmatpush.msra.mxu0 %v2263
        %2322 = vmatpush.msra.mxu0 %v2259
        %2323 = vmatpush.msra.mxu0 %v2255
        %2324 = vmatpush.msra.mxu0 %v2251
        %2325 = vmatpush.msra.mxu0 %v2247
        %2326 = vmatpush.msra.mxu0 %v2243
        %2327 = vmatpush.msra.mxu0 %v2239
        %2328 = vmatpush.msra.mxu0 %v2235
        %2329 = vmatpush.msra.mxu0 %v2231
        %2330 = vmatpush.msra.mxu0 %v2227
        %2331 = vmatpush.msra.mxu0 %v2223
        %2332 = vmatpush.msra.mxu0 %v2219
        %2333 = vmatpush.msra.mxu0 %v2215
        %2334 = vmatpush.msra.mxu0 %v2211
        %2335 = vmatpush.msra.mxu0 %v2207
        %2336 = vmatmul.f32.gmra.mxu0 %v516
        %v2337 = vpop.f32.mrf.mxu0
        %v2338 = vadd.f32 0.0, %v2337
        %2339 = vdwg.mxu0
        %2340 = vmatpush.msra.mxu0 %v2268
        %2341 = vmatpush.msra.mxu0 %v2264
        %2342 = vmatpush.msra.mxu0 %v2260
        %2343 = vmatpush.msra.mxu0 %v2256
        %2344 = vmatpush.msra.mxu0 %v2252
        %2345 = vmatpush.msra.mxu0 %v2248
        %2346 = vmatpush.msra.mxu0 %v2244
        %2347 = vmatpush.msra.mxu0 %v2240
        %2348 = vmatpush.msra.mxu0 %v2236
        %2349 = vmatpush.msra.mxu0 %v2232
        %2350 = vmatpush.msra.mxu0 %v2228
        %2351 = vmatpush.msra.mxu0 %v2224
        %2352 = vmatpush.msra.mxu0 %v2220
        %2353 = vmatpush.msra.mxu0 %v2216
        %2354 = vmatpush.msra.mxu0 %v2212
        %2355 = vmatpush.msra.mxu0 %v2208
        %2356 = vmatmul.f32.gmra.mxu0 %v516
        %v2357 = vpop.f32.mrf.mxu0
        %v2358 = vadd.f32 0.0, %v2357
        %2359 = vdwg.mxu0
        %2360 = vmatpush.msra.mxu0 %v2269
        %2361 = vmatpush.msra.mxu0 %v2265
        %2362 = vmatpush.msra.mxu0 %v2261
        %2363 = vmatpush.msra.mxu0 %v2257
        %2364 = vmatpush.msra.mxu0 %v2253
        %2365 = vmatpush.msra.mxu0 %v2249
        %2366 = vmatpush.msra.mxu0 %v2245
        %2367 = vmatpush.msra.mxu0 %v2241
        %2368 = vmatpush.msra.mxu0 %v2237
        %2369 = vmatpush.msra.mxu0 %v2233
        %2370 = vmatpush.msra.mxu0 %v2229
        %2371 = vmatpush.msra.mxu0 %v2225
        %2372 = vmatpush.msra.mxu0 %v2221
        %2373 = vmatpush.msra.mxu0 %v2217
        %2374 = vmatpush.msra.mxu0 %v2213
        %2375 = vmatpush.msra.mxu0 %v2209
        %2376 = vmatmul.f32.gmra.mxu0 %v516
        %v2377 = vpop.f32.mrf.mxu0
        %v2378 = vadd.f32 0.0, %v2377
        %2379 = vdwg.mxu0
        %v2380 = vmul.f32 %v2318, %v2296
        %v2381 = vmul.f32 %v2338, %v2297
        %v2382 = vmul.f32 %v2358, %v2298
        %v2383 = vmul.f32 %v2378, %v2299
        %v2384 = vsel %vm601, %v2380, 0.0
        %v2385 = vrot.slane %v2384, 4
        %v2386 = vadd.f32 %v2384, %v2385
        %v2387 = vrot.slane %v2386, 2
        %v2388 = vadd.f32 %v2386, %v2387
        %v2389 = vrot.slane %v2388, 1
        %v2390 = vadd.f32 %v2388, %v2389
        %v2391 = vsel %vm601, %v2381, 0.0
        %v2392 = vrot.slane %v2391, 4
        %v2393 = vadd.f32 %v2391, %v2392
        %v2394 = vrot.slane %v2393, 2
        %v2395 = vadd.f32 %v2393, %v2394
        %v2396 = vrot.slane %v2395, 1
        %v2397 = vadd.f32 %v2395, %v2396
        %v2398 = vsel %vm601, %v2382, 0.0
        %v2399 = vrot.slane %v2398, 4
        %v2400 = vadd.f32 %v2398, %v2399
        %v2401 = vrot.slane %v2400, 2
        %v2402 = vadd.f32 %v2400, %v2401
        %v2403 = vrot.slane %v2402, 1
        %v2404 = vadd.f32 %v2402, %v2403
        %v2405 = vsel %vm601, %v2383, 0.0
        %v2406 = vrot.slane %v2405, 4
        %v2407 = vadd.f32 %v2405, %v2406
        %v2408 = vrot.slane %v2407, 2
        %v2409 = vadd.f32 %v2407, %v2408
        %v2410 = vrot.slane %v2409, 1
        %v2411 = vadd.f32 %v2409, %v2410
        %v2412 = vadd.f32 %v1826, %v2390
        %v2413 = vadd.f32 %v1827, %v2397
        %v2414 = vadd.f32 %v1828, %v2404
        %v2415 = vadd.f32 %v1829, %v2411
        %2416 = vmatpush.msra.mxu0 %v2266
        %2417 = vmatpush.msra.mxu0 %v2262
        %2418 = vmatpush.msra.mxu0 %v2258
        %2419 = vmatpush.msra.mxu0 %v2254
        %2420 = vmatpush.msra.mxu0 %v2250
        %2421 = vmatpush.msra.mxu0 %v2246
        %2422 = vmatpush.msra.mxu0 %v2242
        %2423 = vmatpush.msra.mxu0 %v2238
        %2424 = vmatpush.msra.mxu0 %v2234
        %2425 = vmatpush.msra.mxu0 %v2230
        %2426 = vmatpush.msra.mxu0 %v2226
        %2427 = vmatpush.msra.mxu0 %v2222
        %2428 = vmatpush.msra.mxu0 %v2218
        %2429 = vmatpush.msra.mxu0 %v2214
        %2430 = vmatpush.msra.mxu0 %v2210
        %2431 = vmatpush.msra.mxu0 %v2206
        %2432 = vmatmul.f32.gmra.mxu0 %v635
        %v2433 = vpop.f32.mrf.mxu0
        %v2434 = vadd.f32 0.0, %v2433
        %2435 = vdwg.mxu0
        %2436 = vmatpush.msra.mxu0 %v2267
        %2437 = vmatpush.msra.mxu0 %v2263
        %2438 = vmatpush.msra.mxu0 %v2259
        %2439 = vmatpush.msra.mxu0 %v2255
        %2440 = vmatpush.msra.mxu0 %v2251
        %2441 = vmatpush.msra.mxu0 %v2247
        %2442 = vmatpush.msra.mxu0 %v2243
        %2443 = vmatpush.msra.mxu0 %v2239
        %2444 = vmatpush.msra.mxu0 %v2235
        %2445 = vmatpush.msra.mxu0 %v2231
        %2446 = vmatpush.msra.mxu0 %v2227
        %2447 = vmatpush.msra.mxu0 %v2223
        %2448 = vmatpush.msra.mxu0 %v2219
        %2449 = vmatpush.msra.mxu0 %v2215
        %2450 = vmatpush.msra.mxu0 %v2211
        %2451 = vmatpush.msra.mxu0 %v2207
        %2452 = vmatmul.f32.gmra.mxu0 %v635
        %v2453 = vpop.f32.mrf.mxu0
        %v2454 = vadd.f32 0.0, %v2453
        %2455 = vdwg.mxu0
        %2456 = vmatpush.msra.mxu0 %v2268
        %2457 = vmatpush.msra.mxu0 %v2264
        %2458 = vmatpush.msra.mxu0 %v2260
        %2459 = vmatpush.msra.mxu0 %v2256
        %2460 = vmatpush.msra.mxu0 %v2252
        %2461 = vmatpush.msra.mxu0 %v2248
        %2462 = vmatpush.msra.mxu0 %v2244
        %2463 = vmatpush.msra.mxu0 %v2240
        %2464 = vmatpush.msra.mxu0 %v2236
        %2465 = vmatpush.msra.mxu0 %v2232
        %2466 = vmatpush.msra.mxu0 %v2228
        %2467 = vmatpush.msra.mxu0 %v2224
        %2468 = vmatpush.msra.mxu0 %v2220
        %2469 = vmatpush.msra.mxu0 %v2216
        %2470 = vmatpush.msra.mxu0 %v2212
        %2471 = vmatpush.msra.mxu0 %v2208
        %2472 = vmatmul.f32.gmra.mxu0 %v635
        %v2473 = vpop.f32.mrf.mxu0
        %v2474 = vadd.f32 0.0, %v2473
        %2475 = vdwg.mxu0
        %2476 = vmatpush.msra.mxu0 %v2269
        %2477 = vmatpush.msra.mxu0 %v2265
        %2478 = vmatpush.msra.mxu0 %v2261
        %2479 = vmatpush.msra.mxu0 %v2257
        %2480 = vmatpush.msra.mxu0 %v2253
        %2481 = vmatpush.msra.mxu0 %v2249
        %2482 = vmatpush.msra.mxu0 %v2245
        %2483 = vmatpush.msra.mxu0 %v2241
        %2484 = vmatpush.msra.mxu0 %v2237
        %2485 = vmatpush.msra.mxu0 %v2233
        %2486 = vmatpush.msra.mxu0 %v2229
        %2487 = vmatpush.msra.mxu0 %v2225
        %2488 = vmatpush.msra.mxu0 %v2221
        %2489 = vmatpush.msra.mxu0 %v2217
        %2490 = vmatpush.msra.mxu0 %v2213
        %2491 = vmatpush.msra.mxu0 %v2209
        %2492 = vmatmul.f32.gmra.mxu0 %v635
        %v2493 = vpop.f32.mrf.mxu0
        %v2494 = vadd.f32 0.0, %v2493
        %2495 = vdwg.mxu0
        %v2496 = vmul.f32 %v2434, %v2296
        %v2497 = vmul.f32 %v2454, %v2297
        %v2498 = vmul.f32 %v2474, %v2298
        %v2499 = vmul.f32 %v2494, %v2299
        %v2500 = vsel %vm601, %v2496, 0.0
        %v2501 = vrot.slane %v2500, 4
        %v2502 = vadd.f32 %v2500, %v2501
        %v2503 = vrot.slane %v2502, 2
        %v2504 = vadd.f32 %v2502, %v2503
        %v2505 = vrot.slane %v2504, 1
        %v2506 = vadd.f32 %v2504, %v2505
        %v2507 = vsel %vm601, %v2497, 0.0
        %v2508 = vrot.slane %v2507, 4
        %v2509 = vadd.f32 %v2507, %v2508
        %v2510 = vrot.slane %v2509, 2
        %v2511 = vadd.f32 %v2509, %v2510
        %v2512 = vrot.slane %v2511, 1
        %v2513 = vadd.f32 %v2511, %v2512
        %v2514 = vsel %vm601, %v2498, 0.0
        %v2515 = vrot.slane %v2514, 4
        %v2516 = vadd.f32 %v2514, %v2515
        %v2517 = vrot.slane %v2516, 2
        %v2518 = vadd.f32 %v2516, %v2517
        %v2519 = vrot.slane %v2518, 1
        %v2520 = vadd.f32 %v2518, %v2519
        %v2521 = vsel %vm601, %v2499, 0.0
        %v2522 = vrot.slane %v2521, 4
        %v2523 = vadd.f32 %v2521, %v2522
        %v2524 = vrot.slane %v2523, 2
        %v2525 = vadd.f32 %v2523, %v2524
        %v2526 = vrot.slane %v2525, 1
        %v2527 = vadd.f32 %v2525, %v2526
        %v2528 = vadd.f32 %v1942, %v2506
        %v2529 = vadd.f32 %v1943, %v2513
        %v2530 = vadd.f32 %v1944, %v2520
        %v2531 = vadd.f32 %v1945, %v2527
        %2532 = vmatpush.msra.mxu0 %v2266
        %2533 = vmatpush.msra.mxu0 %v2262
        %2534 = vmatpush.msra.mxu0 %v2258
        %2535 = vmatpush.msra.mxu0 %v2254
        %2536 = vmatpush.msra.mxu0 %v2250
        %2537 = vmatpush.msra.mxu0 %v2246
        %2538 = vmatpush.msra.mxu0 %v2242
        %2539 = vmatpush.msra.mxu0 %v2238
        %2540 = vmatpush.msra.mxu0 %v2234
        %2541 = vmatpush.msra.mxu0 %v2230
        %2542 = vmatpush.msra.mxu0 %v2226
        %2543 = vmatpush.msra.mxu0 %v2222
        %2544 = vmatpush.msra.mxu0 %v2218
        %2545 = vmatpush.msra.mxu0 %v2214
        %2546 = vmatpush.msra.mxu0 %v2210
        %2547 = vmatpush.msra.mxu0 %v2206
        %2548 = vmatmul.f32.gmra.mxu0 %v753
        %v2549 = vpop.f32.mrf.mxu0
        %v2550 = vadd.f32 0.0, %v2549
        %2551 = vdwg.mxu0
        %2552 = vmatpush.msra.mxu0 %v2267
        %2553 = vmatpush.msra.mxu0 %v2263
        %2554 = vmatpush.msra.mxu0 %v2259
        %2555 = vmatpush.msra.mxu0 %v2255
        %2556 = vmatpush.msra.mxu0 %v2251
        %2557 = vmatpush.msra.mxu0 %v2247
        %2558 = vmatpush.msra.mxu0 %v2243
        %2559 = vmatpush.msra.mxu0 %v2239
        %2560 = vmatpush.msra.mxu0 %v2235
        %2561 = vmatpush.msra.mxu0 %v2231
        %2562 = vmatpush.msra.mxu0 %v2227
        %2563 = vmatpush.msra.mxu0 %v2223
        %2564 = vmatpush.msra.mxu0 %v2219
        %2565 = vmatpush.msra.mxu0 %v2215
        %2566 = vmatpush.msra.mxu0 %v2211
        %2567 = vmatpush.msra.mxu0 %v2207
        %2568 = vmatmul.f32.gmra.mxu0 %v753
        %v2569 = vpop.f32.mrf.mxu0
        %v2570 = vadd.f32 0.0, %v2569
        %2571 = vdwg.mxu0
        %2572 = vmatpush.msra.mxu0 %v2268
        %2573 = vmatpush.msra.mxu0 %v2264
        %2574 = vmatpush.msra.mxu0 %v2260
        %2575 = vmatpush.msra.mxu0 %v2256
        %2576 = vmatpush.msra.mxu0 %v2252
        %2577 = vmatpush.msra.mxu0 %v2248
        %2578 = vmatpush.msra.mxu0 %v2244
        %2579 = vmatpush.msra.mxu0 %v2240
        %2580 = vmatpush.msra.mxu0 %v2236
        %2581 = vmatpush.msra.mxu0 %v2232
        %2582 = vmatpush.msra.mxu0 %v2228
        %2583 = vmatpush.msra.mxu0 %v2224
        %2584 = vmatpush.msra.mxu0 %v2220
        %2585 = vmatpush.msra.mxu0 %v2216
        %2586 = vmatpush.msra.mxu0 %v2212
        %2587 = vmatpush.msra.mxu0 %v2208
        %2588 = vmatmul.f32.gmra.mxu0 %v753
        %v2589 = vpop.f32.mrf.mxu0
        %v2590 = vadd.f32 0.0, %v2589
        %2591 = vdwg.mxu0
        %2592 = vmatpush.msra.mxu0 %v2269
        %2593 = vmatpush.msra.mxu0 %v2265
        %2594 = vmatpush.msra.mxu0 %v2261
        %2595 = vmatpush.msra.mxu0 %v2257
        %2596 = vmatpush.msra.mxu0 %v2253
        %2597 = vmatpush.msra.mxu0 %v2249
        %2598 = vmatpush.msra.mxu0 %v2245
        %2599 = vmatpush.msra.mxu0 %v2241
        %2600 = vmatpush.msra.mxu0 %v2237
        %2601 = vmatpush.msra.mxu0 %v2233
        %2602 = vmatpush.msra.mxu0 %v2229
        %2603 = vmatpush.msra.mxu0 %v2225
        %2604 = vmatpush.msra.mxu0 %v2221
        %2605 = vmatpush.msra.mxu0 %v2217
        %2606 = vmatpush.msra.mxu0 %v2213
        %2607 = vmatpush.msra.mxu0 %v2209
        %2608 = vmatmul.f32.gmra.mxu0 %v753
        %v2609 = vpop.f32.mrf.mxu0
        %v2610 = vadd.f32 0.0, %v2609
        %2611 = vdwg.mxu0
        %v2612 = vmul.f32 %v2550, %v2296
        %v2613 = vmul.f32 %v2570, %v2297
        %v2614 = vmul.f32 %v2590, %v2298
        %v2615 = vmul.f32 %v2610, %v2299
        %v2616 = vsel %vm601, %v2612, 0.0
        %v2617 = vrot.slane %v2616, 4
        %v2618 = vadd.f32 %v2616, %v2617
        %v2619 = vrot.slane %v2618, 2
        %v2620 = vadd.f32 %v2618, %v2619
        %v2621 = vrot.slane %v2620, 1
        %v2622 = vadd.f32 %v2620, %v2621
        %v2623 = vsel %vm601, %v2613, 0.0
        %v2624 = vrot.slane %v2623, 4
        %v2625 = vadd.f32 %v2623, %v2624
        %v2626 = vrot.slane %v2625, 2
        %v2627 = vadd.f32 %v2625, %v2626
        %v2628 = vrot.slane %v2627, 1
        %v2629 = vadd.f32 %v2627, %v2628
        %v2630 = vsel %vm601, %v2614, 0.0
        %v2631 = vrot.slane %v2630, 4
        %v2632 = vadd.f32 %v2630, %v2631
        %v2633 = vrot.slane %v2632, 2
        %v2634 = vadd.f32 %v2632, %v2633
        %v2635 = vrot.slane %v2634, 1
        %v2636 = vadd.f32 %v2634, %v2635
        %v2637 = vsel %vm601, %v2615, 0.0
        %v2638 = vrot.slane %v2637, 4
        %v2639 = vadd.f32 %v2637, %v2638
        %v2640 = vrot.slane %v2639, 2
        %v2641 = vadd.f32 %v2639, %v2640
        %v2642 = vrot.slane %v2641, 1
        %v2643 = vadd.f32 %v2641, %v2642
        %v2644 = vadd.f32 %v2058, %v2622
        %v2645 = vadd.f32 %v2059, %v2629
        %v2646 = vadd.f32 %v2060, %v2636
        %v2647 = vadd.f32 %v2061, %v2643
        %v2648 = vmul.u32 %v251, 64
        %v2649 = vmul.u32 %v253, 64
        %v2650 = vadd.s32 %v2648, %v260
        %v2651 = vadd.s32 %v2649, %v261
        %v2652 = vadd.s32 %v2650, %v264
        %v2653 = vadd.s32 %v2651, %v265
        %v2654 = vmul.f32 %v244, %v270
        %v2655 = vmul.f32 %v245, %v271
        %v2656 = vmul.f32 %v2654, %v276
        %v2657 = vmul.f32 %v2655, %v277
        %v2658 = vand.u32 %v2652, 127
        %v2659 = vand.u32 %v2653, 127
        %v2660 = vshra.s32 %v2652, 7
        %v2661 = vshra.s32 %v2653, 7
        %v2662 = vperm.slane %v2658, 2
        %v2663 = vperm.slane %v2658, 6
        %v2664 = vperm.slane %v2659, 2
        %v2665 = vperm.slane %v2659, 6
        %v2666 = vperm.slane %v2662, 2
        %v2667 = vperm.slane %v2663, 2
        %v2668 = vperm.slane %v2664, 2
        %v2669 = vperm.slane %v2665, 2
        %vm2670 = vcmp.eq.s32.totalorder %v151, %v2666
        %vm2671 = vcmp.eq.s32.totalorder %v151, %v2667
        %vm2672 = vcmp.eq.s32.totalorder %v151, %v2668
        %vm2673 = vcmp.eq.s32.totalorder %v151, %v2669
        %vm2674 = vcmp.eq.s32.totalorder %v152, %v2666
        %vm2675 = vcmp.eq.s32.totalorder %v152, %v2667
        %vm2676 = vcmp.eq.s32.totalorder %v152, %v2668
        %vm2677 = vcmp.eq.s32.totalorder %v152, %v2669
        %vm2678 = vcmp.eq.s32.totalorder %v153, %v2666
        %vm2679 = vcmp.eq.s32.totalorder %v153, %v2667
        %vm2680 = vcmp.eq.s32.totalorder %v153, %v2668
        %vm2681 = vcmp.eq.s32.totalorder %v153, %v2669
        %vm2682 = vcmp.eq.s32.totalorder %v154, %v2666
        %vm2683 = vcmp.eq.s32.totalorder %v154, %v2667
        %vm2684 = vcmp.eq.s32.totalorder %v154, %v2668
        %vm2685 = vcmp.eq.s32.totalorder %v154, %v2669
        %vm2686 = vcmp.eq.s32.totalorder %v155, %v2666
        %vm2687 = vcmp.eq.s32.totalorder %v155, %v2667
        %vm2688 = vcmp.eq.s32.totalorder %v155, %v2668
        %vm2689 = vcmp.eq.s32.totalorder %v155, %v2669
        %vm2690 = vcmp.eq.s32.totalorder %v156, %v2666
        %vm2691 = vcmp.eq.s32.totalorder %v156, %v2667
        %vm2692 = vcmp.eq.s32.totalorder %v156, %v2668
        %vm2693 = vcmp.eq.s32.totalorder %v156, %v2669
        %vm2694 = vcmp.eq.s32.totalorder %v157, %v2666
        %vm2695 = vcmp.eq.s32.totalorder %v157, %v2667
        %vm2696 = vcmp.eq.s32.totalorder %v157, %v2668
        %vm2697 = vcmp.eq.s32.totalorder %v157, %v2669
        %vm2698 = vcmp.eq.s32.totalorder %v158, %v2666
        %vm2699 = vcmp.eq.s32.totalorder %v158, %v2667
        %vm2700 = vcmp.eq.s32.totalorder %v158, %v2668
        %vm2701 = vcmp.eq.s32.totalorder %v158, %v2669
        %vm2702 = vcmp.eq.s32.totalorder %v159, %v2666
        %vm2703 = vcmp.eq.s32.totalorder %v159, %v2667
        %vm2704 = vcmp.eq.s32.totalorder %v159, %v2668
        %vm2705 = vcmp.eq.s32.totalorder %v159, %v2669
        %vm2706 = vcmp.eq.s32.totalorder %v160, %v2666
        %vm2707 = vcmp.eq.s32.totalorder %v160, %v2667
        %vm2708 = vcmp.eq.s32.totalorder %v160, %v2668
        %vm2709 = vcmp.eq.s32.totalorder %v160, %v2669
        %vm2710 = vcmp.eq.s32.totalorder %v161, %v2666
        %vm2711 = vcmp.eq.s32.totalorder %v161, %v2667
        %vm2712 = vcmp.eq.s32.totalorder %v161, %v2668
        %vm2713 = vcmp.eq.s32.totalorder %v161, %v2669
        %vm2714 = vcmp.eq.s32.totalorder %v162, %v2666
        %vm2715 = vcmp.eq.s32.totalorder %v162, %v2667
        %vm2716 = vcmp.eq.s32.totalorder %v162, %v2668
        %vm2717 = vcmp.eq.s32.totalorder %v162, %v2669
        %vm2718 = vcmp.eq.s32.totalorder %v163, %v2666
        %vm2719 = vcmp.eq.s32.totalorder %v163, %v2667
        %vm2720 = vcmp.eq.s32.totalorder %v163, %v2668
        %vm2721 = vcmp.eq.s32.totalorder %v163, %v2669
        %vm2722 = vcmp.eq.s32.totalorder %v164, %v2666
        %vm2723 = vcmp.eq.s32.totalorder %v164, %v2667
        %vm2724 = vcmp.eq.s32.totalorder %v164, %v2668
        %vm2725 = vcmp.eq.s32.totalorder %v164, %v2669
        %vm2726 = vcmp.eq.s32.totalorder %v165, %v2666
        %vm2727 = vcmp.eq.s32.totalorder %v165, %v2667
        %vm2728 = vcmp.eq.s32.totalorder %v165, %v2668
        %vm2729 = vcmp.eq.s32.totalorder %v165, %v2669
        %vm2730 = vcmp.eq.s32.totalorder %v166, %v2666
        %vm2731 = vcmp.eq.s32.totalorder %v166, %v2667
        %vm2732 = vcmp.eq.s32.totalorder %v166, %v2668
        %vm2733 = vcmp.eq.s32.totalorder %v166, %v2669
        %v2734 = vsel %vm2670, 1, 0
        %v2735 = vsel %vm2671, 1, 0
        %v2736 = vsel %vm2672, 1, 0
        %v2737 = vsel %vm2673, 1, 0
        %v2738 = vsel %vm2674, 1, 0
        %v2739 = vsel %vm2675, 1, 0
        %v2740 = vsel %vm2676, 1, 0
        %v2741 = vsel %vm2677, 1, 0
        %v2742 = vsel %vm2678, 1, 0
        %v2743 = vsel %vm2679, 1, 0
        %v2744 = vsel %vm2680, 1, 0
        %v2745 = vsel %vm2681, 1, 0
        %v2746 = vsel %vm2682, 1, 0
        %v2747 = vsel %vm2683, 1, 0
        %v2748 = vsel %vm2684, 1, 0
        %v2749 = vsel %vm2685, 1, 0
        %v2750 = vsel %vm2686, 1, 0
        %v2751 = vsel %vm2687, 1, 0
        %v2752 = vsel %vm2688, 1, 0
        %v2753 = vsel %vm2689, 1, 0
        %v2754 = vsel %vm2690, 1, 0
        %v2755 = vsel %vm2691, 1, 0
        %v2756 = vsel %vm2692, 1, 0
        %v2757 = vsel %vm2693, 1, 0
        %v2758 = vsel %vm2694, 1, 0
        %v2759 = vsel %vm2695, 1, 0
        %v2760 = vsel %vm2696, 1, 0
        %v2761 = vsel %vm2697, 1, 0
        %v2762 = vsel %vm2698, 1, 0
        %v2763 = vsel %vm2699, 1, 0
        %v2764 = vsel %vm2700, 1, 0
        %v2765 = vsel %vm2701, 1, 0
        %v2766 = vsel %vm2702, 1, 0
        %v2767 = vsel %vm2703, 1, 0
        %v2768 = vsel %vm2704, 1, 0
        %v2769 = vsel %vm2705, 1, 0
        %v2770 = vsel %vm2706, 1, 0
        %v2771 = vsel %vm2707, 1, 0
        %v2772 = vsel %vm2708, 1, 0
        %v2773 = vsel %vm2709, 1, 0
        %v2774 = vsel %vm2710, 1, 0
        %v2775 = vsel %vm2711, 1, 0
        %v2776 = vsel %vm2712, 1, 0
        %v2777 = vsel %vm2713, 1, 0
        %v2778 = vsel %vm2714, 1, 0
        %v2779 = vsel %vm2715, 1, 0
        %v2780 = vsel %vm2716, 1, 0
        %v2781 = vsel %vm2717, 1, 0
        %v2782 = vsel %vm2718, 1, 0
        %v2783 = vsel %vm2719, 1, 0
        %v2784 = vsel %vm2720, 1, 0
        %v2785 = vsel %vm2721, 1, 0
        %v2786 = vsel %vm2722, 1, 0
        %v2787 = vsel %vm2723, 1, 0
        %v2788 = vsel %vm2724, 1, 0
        %v2789 = vsel %vm2725, 1, 0
        %v2790 = vsel %vm2726, 1, 0
        %v2791 = vsel %vm2727, 1, 0
        %v2792 = vsel %vm2728, 1, 0
        %v2793 = vsel %vm2729, 1, 0
        %v2794 = vsel %vm2730, 1, 0
        %v2795 = vsel %vm2731, 1, 0
        %v2796 = vsel %vm2732, 1, 0
        %v2797 = vsel %vm2733, 1, 0
        %v2798 = vcvt.s32.f32 %v2734
        %v2799 = vcvt.s32.f32 %v2735
        %v2800 = vcvt.s32.f32 %v2736
        %v2801 = vcvt.s32.f32 %v2737
        %v2802 = vcvt.s32.f32 %v2738
        %v2803 = vcvt.s32.f32 %v2739
        %v2804 = vcvt.s32.f32 %v2740
        %v2805 = vcvt.s32.f32 %v2741
        %v2806 = vcvt.s32.f32 %v2742
        %v2807 = vcvt.s32.f32 %v2743
        %v2808 = vcvt.s32.f32 %v2744
        %v2809 = vcvt.s32.f32 %v2745
        %v2810 = vcvt.s32.f32 %v2746
        %v2811 = vcvt.s32.f32 %v2747
        %v2812 = vcvt.s32.f32 %v2748
        %v2813 = vcvt.s32.f32 %v2749
        %v2814 = vcvt.s32.f32 %v2750
        %v2815 = vcvt.s32.f32 %v2751
        %v2816 = vcvt.s32.f32 %v2752
        %v2817 = vcvt.s32.f32 %v2753
        %v2818 = vcvt.s32.f32 %v2754
        %v2819 = vcvt.s32.f32 %v2755
        %v2820 = vcvt.s32.f32 %v2756
        %v2821 = vcvt.s32.f32 %v2757
        %v2822 = vcvt.s32.f32 %v2758
        %v2823 = vcvt.s32.f32 %v2759
        %v2824 = vcvt.s32.f32 %v2760
        %v2825 = vcvt.s32.f32 %v2761
        %v2826 = vcvt.s32.f32 %v2762
        %v2827 = vcvt.s32.f32 %v2763
        %v2828 = vcvt.s32.f32 %v2764
        %v2829 = vcvt.s32.f32 %v2765
        %v2830 = vcvt.s32.f32 %v2766
        %v2831 = vcvt.s32.f32 %v2767
        %v2832 = vcvt.s32.f32 %v2768
        %v2833 = vcvt.s32.f32 %v2769
        %v2834 = vcvt.s32.f32 %v2770
        %v2835 = vcvt.s32.f32 %v2771
        %v2836 = vcvt.s32.f32 %v2772
        %v2837 = vcvt.s32.f32 %v2773
        %v2838 = vcvt.s32.f32 %v2774
        %v2839 = vcvt.s32.f32 %v2775
        %v2840 = vcvt.s32.f32 %v2776
        %v2841 = vcvt.s32.f32 %v2777
        %v2842 = vcvt.s32.f32 %v2778
        %v2843 = vcvt.s32.f32 %v2779
        %v2844 = vcvt.s32.f32 %v2780
        %v2845 = vcvt.s32.f32 %v2781
        %v2846 = vcvt.s32.f32 %v2782
        %v2847 = vcvt.s32.f32 %v2783
        %v2848 = vcvt.s32.f32 %v2784
        %v2849 = vcvt.s32.f32 %v2785
        %v2850 = vcvt.s32.f32 %v2786
        %v2851 = vcvt.s32.f32 %v2787
        %v2852 = vcvt.s32.f32 %v2788
        %v2853 = vcvt.s32.f32 %v2789
        %v2854 = vcvt.s32.f32 %v2790
        %v2855 = vcvt.s32.f32 %v2791
        %v2856 = vcvt.s32.f32 %v2792
        %v2857 = vcvt.s32.f32 %v2793
        %v2858 = vcvt.s32.f32 %v2794
        %v2859 = vcvt.s32.f32 %v2795
        %v2860 = vcvt.s32.f32 %v2796
        %v2861 = vcvt.s32.f32 %v2797
        %v2862 = vperm.slane %v2660, 2
        %v2863 = vperm.slane %v2660, 6
        %v2864 = vperm.slane %v2661, 2
        %v2865 = vperm.slane %v2661, 6
        %v2866 = vperm.slane %v2862, 2
        %v2867 = vperm.slane %v2863, 2
        %v2868 = vperm.slane %v2864, 2
        %v2869 = vperm.slane %v2865, 2
        %vm2870 = vcmp.eq.s32.totalorder %v151, %v2866
        %vm2871 = vcmp.eq.s32.totalorder %v151, %v2867
        %vm2872 = vcmp.eq.s32.totalorder %v151, %v2868
        %vm2873 = vcmp.eq.s32.totalorder %v151, %v2869
        %v2876 = vperm.slane %v2656, 2
        %v2877 = vperm.slane %v2656, 6
        %v2878 = vperm.slane %v2657, 2
        %v2879 = vperm.slane %v2657, 6
        %v2884 = vperm.slane %v2876, 2
        %v2885 = vperm.slane %v2877, 2
        %v2886 = vperm.slane %v2878, 2
        %v2887 = vperm.slane %v2879, 2
        %v2888 = vsel %vm2870, %v2884, 0.0
        %v2889 = vsel %vm2871, %v2885, 0.0
        %v2890 = vsel %vm2872, %v2886, 0.0
        %v2891 = vsel %vm2873, %v2887, 0.0
        %2892 = vmatpush.msra.mxu0 %v2858
        %2893 = vmatpush.msra.mxu0 %v2854
        %2894 = vmatpush.msra.mxu0 %v2850
        %2895 = vmatpush.msra.mxu0 %v2846
        %2896 = vmatpush.msra.mxu0 %v2842
        %2897 = vmatpush.msra.mxu0 %v2838
        %2898 = vmatpush.msra.mxu0 %v2834
        %2899 = vmatpush.msra.mxu0 %v2830
        %2900 = vmatpush.msra.mxu0 %v2826
        %2901 = vmatpush.msra.mxu0 %v2822
        %2902 = vmatpush.msra.mxu0 %v2818
        %2903 = vmatpush.msra.mxu0 %v2814
        %2904 = vmatpush.msra.mxu0 %v2810
        %2905 = vmatpush.msra.mxu0 %v2806
        %2906 = vmatpush.msra.mxu0 %v2802
        %2907 = vmatpush.msra.mxu0 %v2798
        %2908 = vmatmul.f32.gmra.mxu0 %v516
        %v2909 = vpop.f32.mrf.mxu0
        %v2910 = vadd.f32 0.0, %v2909
        %2911 = vdwg.mxu0
        %2912 = vmatpush.msra.mxu0 %v2859
        %2913 = vmatpush.msra.mxu0 %v2855
        %2914 = vmatpush.msra.mxu0 %v2851
        %2915 = vmatpush.msra.mxu0 %v2847
        %2916 = vmatpush.msra.mxu0 %v2843
        %2917 = vmatpush.msra.mxu0 %v2839
        %2918 = vmatpush.msra.mxu0 %v2835
        %2919 = vmatpush.msra.mxu0 %v2831
        %2920 = vmatpush.msra.mxu0 %v2827
        %2921 = vmatpush.msra.mxu0 %v2823
        %2922 = vmatpush.msra.mxu0 %v2819
        %2923 = vmatpush.msra.mxu0 %v2815
        %2924 = vmatpush.msra.mxu0 %v2811
        %2925 = vmatpush.msra.mxu0 %v2807
        %2926 = vmatpush.msra.mxu0 %v2803
        %2927 = vmatpush.msra.mxu0 %v2799
        %2928 = vmatmul.f32.gmra.mxu0 %v516
        %v2929 = vpop.f32.mrf.mxu0
        %v2930 = vadd.f32 0.0, %v2929
        %2931 = vdwg.mxu0
        %2932 = vmatpush.msra.mxu0 %v2860
        %2933 = vmatpush.msra.mxu0 %v2856
        %2934 = vmatpush.msra.mxu0 %v2852
        %2935 = vmatpush.msra.mxu0 %v2848
        %2936 = vmatpush.msra.mxu0 %v2844
        %2937 = vmatpush.msra.mxu0 %v2840
        %2938 = vmatpush.msra.mxu0 %v2836
        %2939 = vmatpush.msra.mxu0 %v2832
        %2940 = vmatpush.msra.mxu0 %v2828
        %2941 = vmatpush.msra.mxu0 %v2824
        %2942 = vmatpush.msra.mxu0 %v2820
        %2943 = vmatpush.msra.mxu0 %v2816
        %2944 = vmatpush.msra.mxu0 %v2812
        %2945 = vmatpush.msra.mxu0 %v2808
        %2946 = vmatpush.msra.mxu0 %v2804
        %2947 = vmatpush.msra.mxu0 %v2800
        %2948 = vmatmul.f32.gmra.mxu0 %v516
        %v2949 = vpop.f32.mrf.mxu0
        %v2950 = vadd.f32 0.0, %v2949
        %2951 = vdwg.mxu0
        %2952 = vmatpush.msra.mxu0 %v2861
        %2953 = vmatpush.msra.mxu0 %v2857
        %2954 = vmatpush.msra.mxu0 %v2853
        %2955 = vmatpush.msra.mxu0 %v2849
        %2956 = vmatpush.msra.mxu0 %v2845
        %2957 = vmatpush.msra.mxu0 %v2841
        %2958 = vmatpush.msra.mxu0 %v2837
        %2959 = vmatpush.msra.mxu0 %v2833
        %2960 = vmatpush.msra.mxu0 %v2829
        %2961 = vmatpush.msra.mxu0 %v2825
        %2962 = vmatpush.msra.mxu0 %v2821
        %2963 = vmatpush.msra.mxu0 %v2817
        %2964 = vmatpush.msra.mxu0 %v2813
        %2965 = vmatpush.msra.mxu0 %v2809
        %2966 = vmatpush.msra.mxu0 %v2805
        %2967 = vmatpush.msra.mxu0 %v2801
        %2968 = vmatmul.f32.gmra.mxu0 %v516
        %v2969 = vpop.f32.mrf.mxu0
        %v2970 = vadd.f32 0.0, %v2969
        %2971 = vdwg.mxu0
        %v2972 = vmul.f32 %v2910, %v2888
        %v2973 = vmul.f32 %v2930, %v2889
        %v2974 = vmul.f32 %v2950, %v2890
        %v2975 = vmul.f32 %v2970, %v2891
        %v2976 = vsel %vm601, %v2972, 0.0
        %v2977 = vrot.slane %v2976, 4
        %v2978 = vadd.f32 %v2976, %v2977
        %v2979 = vrot.slane %v2978, 2
        %v2980 = vadd.f32 %v2978, %v2979
        %v2981 = vrot.slane %v2980, 1
        %v2982 = vadd.f32 %v2980, %v2981
        %v2983 = vsel %vm601, %v2973, 0.0
        %v2984 = vrot.slane %v2983, 4
        %v2985 = vadd.f32 %v2983, %v2984
        %v2986 = vrot.slane %v2985, 2
        %v2987 = vadd.f32 %v2985, %v2986
        %v2988 = vrot.slane %v2987, 1
        %v2989 = vadd.f32 %v2987, %v2988
        %v2990 = vsel %vm601, %v2974, 0.0
        %v2991 = vrot.slane %v2990, 4
        %v2992 = vadd.f32 %v2990, %v2991
        %v2993 = vrot.slane %v2992, 2
        %v2994 = vadd.f32 %v2992, %v2993
        %v2995 = vrot.slane %v2994, 1
        %v2996 = vadd.f32 %v2994, %v2995
        %v2997 = vsel %vm601, %v2975, 0.0
        %v2998 = vrot.slane %v2997, 4
        %v2999 = vadd.f32 %v2997, %v2998
        %v3000 = vrot.slane %v2999, 2
        %v3001 = vadd.f32 %v2999, %v3000
        %v3002 = vrot.slane %v3001, 1
        %v3003 = vadd.f32 %v3001, %v3002
        %v3004 = vadd.f32 %v2412, %v2982
        %v3005 = vadd.f32 %v2413, %v2989
        %v3006 = vadd.f32 %v2414, %v2996
        %v3007 = vadd.f32 %v2415, %v3003
        %3008 = vmatpush.msra.mxu0 %v2858
        %3009 = vmatpush.msra.mxu0 %v2854
        %3010 = vmatpush.msra.mxu0 %v2850
        %3011 = vmatpush.msra.mxu0 %v2846
        %3012 = vmatpush.msra.mxu0 %v2842
        %3013 = vmatpush.msra.mxu0 %v2838
        %3014 = vmatpush.msra.mxu0 %v2834
        %3015 = vmatpush.msra.mxu0 %v2830
        %3016 = vmatpush.msra.mxu0 %v2826
        %3017 = vmatpush.msra.mxu0 %v2822
        %3018 = vmatpush.msra.mxu0 %v2818
        %3019 = vmatpush.msra.mxu0 %v2814
        %3020 = vmatpush.msra.mxu0 %v2810
        %3021 = vmatpush.msra.mxu0 %v2806
        %3022 = vmatpush.msra.mxu0 %v2802
        %3023 = vmatpush.msra.mxu0 %v2798
        %3024 = vmatmul.f32.gmra.mxu0 %v635
        %v3025 = vpop.f32.mrf.mxu0
        %v3026 = vadd.f32 0.0, %v3025
        %3027 = vdwg.mxu0
        %3028 = vmatpush.msra.mxu0 %v2859
        %3029 = vmatpush.msra.mxu0 %v2855
        %3030 = vmatpush.msra.mxu0 %v2851
        %3031 = vmatpush.msra.mxu0 %v2847
        %3032 = vmatpush.msra.mxu0 %v2843
        %3033 = vmatpush.msra.mxu0 %v2839
        %3034 = vmatpush.msra.mxu0 %v2835
        %3035 = vmatpush.msra.mxu0 %v2831
        %3036 = vmatpush.msra.mxu0 %v2827
        %3037 = vmatpush.msra.mxu0 %v2823
        %3038 = vmatpush.msra.mxu0 %v2819
        %3039 = vmatpush.msra.mxu0 %v2815
        %3040 = vmatpush.msra.mxu0 %v2811
        %3041 = vmatpush.msra.mxu0 %v2807
        %3042 = vmatpush.msra.mxu0 %v2803
        %3043 = vmatpush.msra.mxu0 %v2799
        %3044 = vmatmul.f32.gmra.mxu0 %v635
        %v3045 = vpop.f32.mrf.mxu0
        %v3046 = vadd.f32 0.0, %v3045
        %3047 = vdwg.mxu0
        %3048 = vmatpush.msra.mxu0 %v2860
        %3049 = vmatpush.msra.mxu0 %v2856
        %3050 = vmatpush.msra.mxu0 %v2852
        %3051 = vmatpush.msra.mxu0 %v2848
        %3052 = vmatpush.msra.mxu0 %v2844
        %3053 = vmatpush.msra.mxu0 %v2840
        %3054 = vmatpush.msra.mxu0 %v2836
        %3055 = vmatpush.msra.mxu0 %v2832
        %3056 = vmatpush.msra.mxu0 %v2828
        %3057 = vmatpush.msra.mxu0 %v2824
        %3058 = vmatpush.msra.mxu0 %v2820
        %3059 = vmatpush.msra.mxu0 %v2816
        %3060 = vmatpush.msra.mxu0 %v2812
        %3061 = vmatpush.msra.mxu0 %v2808
        %3062 = vmatpush.msra.mxu0 %v2804
        %3063 = vmatpush.msra.mxu0 %v2800
        %3064 = vmatmul.f32.gmra.mxu0 %v635
        %v3065 = vpop.f32.mrf.mxu0
        %v3066 = vadd.f32 0.0, %v3065
        %3067 = vdwg.mxu0
        %3068 = vmatpush.msra.mxu0 %v2861
        %3069 = vmatpush.msra.mxu0 %v2857
        %3070 = vmatpush.msra.mxu0 %v2853
        %3071 = vmatpush.msra.mxu0 %v2849
        %3072 = vmatpush.msra.mxu0 %v2845
        %3073 = vmatpush.msra.mxu0 %v2841
        %3074 = vmatpush.msra.mxu0 %v2837
        %3075 = vmatpush.msra.mxu0 %v2833
        %3076 = vmatpush.msra.mxu0 %v2829
        %3077 = vmatpush.msra.mxu0 %v2825
        %3078 = vmatpush.msra.mxu0 %v2821
        %3079 = vmatpush.msra.mxu0 %v2817
        %3080 = vmatpush.msra.mxu0 %v2813
        %3081 = vmatpush.msra.mxu0 %v2809
        %3082 = vmatpush.msra.mxu0 %v2805
        %3083 = vmatpush.msra.mxu0 %v2801
        %3084 = vmatmul.f32.gmra.mxu0 %v635
        %v3085 = vpop.f32.mrf.mxu0
        %v3086 = vadd.f32 0.0, %v3085
        %3087 = vdwg.mxu0
        %v3088 = vmul.f32 %v3026, %v2888
        %v3089 = vmul.f32 %v3046, %v2889
        %v3090 = vmul.f32 %v3066, %v2890
        %v3091 = vmul.f32 %v3086, %v2891
        %v3092 = vsel %vm601, %v3088, 0.0
        %v3093 = vrot.slane %v3092, 4
        %v3094 = vadd.f32 %v3092, %v3093
        %v3095 = vrot.slane %v3094, 2
        %v3096 = vadd.f32 %v3094, %v3095
        %v3097 = vrot.slane %v3096, 1
        %v3098 = vadd.f32 %v3096, %v3097
        %v3099 = vsel %vm601, %v3089, 0.0
        %v3100 = vrot.slane %v3099, 4
        %v3101 = vadd.f32 %v3099, %v3100
        %v3102 = vrot.slane %v3101, 2
        %v3103 = vadd.f32 %v3101, %v3102
        %v3104 = vrot.slane %v3103, 1
        %v3105 = vadd.f32 %v3103, %v3104
        %v3106 = vsel %vm601, %v3090, 0.0
        %v3107 = vrot.slane %v3106, 4
        %v3108 = vadd.f32 %v3106, %v3107
        %v3109 = vrot.slane %v3108, 2
        %v3110 = vadd.f32 %v3108, %v3109
        %v3111 = vrot.slane %v3110, 1
        %v3112 = vadd.f32 %v3110, %v3111
        %v3113 = vsel %vm601, %v3091, 0.0
        %v3114 = vrot.slane %v3113, 4
        %v3115 = vadd.f32 %v3113, %v3114
        %v3116 = vrot.slane %v3115, 2
        %v3117 = vadd.f32 %v3115, %v3116
        %v3118 = vrot.slane %v3117, 1
        %v3119 = vadd.f32 %v3117, %v3118
        %v3120 = vadd.f32 %v2528, %v3098
        %v3121 = vadd.f32 %v2529, %v3105
        %v3122 = vadd.f32 %v2530, %v3112
        %v3123 = vadd.f32 %v2531, %v3119
        %3124 = vmatpush.msra.mxu0 %v2858
        %3125 = vmatpush.msra.mxu0 %v2854
        %3126 = vmatpush.msra.mxu0 %v2850
        %3127 = vmatpush.msra.mxu0 %v2846
        %3128 = vmatpush.msra.mxu0 %v2842
        %3129 = vmatpush.msra.mxu0 %v2838
        %3130 = vmatpush.msra.mxu0 %v2834
        %3131 = vmatpush.msra.mxu0 %v2830
        %3132 = vmatpush.msra.mxu0 %v2826
        %3133 = vmatpush.msra.mxu0 %v2822
        %3134 = vmatpush.msra.mxu0 %v2818
        %3135 = vmatpush.msra.mxu0 %v2814
        %3136 = vmatpush.msra.mxu0 %v2810
        %3137 = vmatpush.msra.mxu0 %v2806
        %3138 = vmatpush.msra.mxu0 %v2802
        %3139 = vmatpush.msra.mxu0 %v2798
        %3140 = vmatmul.f32.gmra.mxu0 %v753
        %v3141 = vpop.f32.mrf.mxu0
        %v3142 = vadd.f32 0.0, %v3141
        %3143 = vdwg.mxu0
        %3144 = vmatpush.msra.mxu0 %v2859
        %3145 = vmatpush.msra.mxu0 %v2855
        %3146 = vmatpush.msra.mxu0 %v2851
        %3147 = vmatpush.msra.mxu0 %v2847
        %3148 = vmatpush.msra.mxu0 %v2843
        %3149 = vmatpush.msra.mxu0 %v2839
        %3150 = vmatpush.msra.mxu0 %v2835
        %3151 = vmatpush.msra.mxu0 %v2831
        %3152 = vmatpush.msra.mxu0 %v2827
        %3153 = vmatpush.msra.mxu0 %v2823
        %3154 = vmatpush.msra.mxu0 %v2819
        %3155 = vmatpush.msra.mxu0 %v2815
        %3156 = vmatpush.msra.mxu0 %v2811
        %3157 = vmatpush.msra.mxu0 %v2807
        %3158 = vmatpush.msra.mxu0 %v2803
        %3159 = vmatpush.msra.mxu0 %v2799
        %3160 = vmatmul.f32.gmra.mxu0 %v753
        %v3161 = vpop.f32.mrf.mxu0
        %v3162 = vadd.f32 0.0, %v3161
        %3163 = vdwg.mxu0
        %3164 = vmatpush.msra.mxu0 %v2860
        %3165 = vmatpush.msra.mxu0 %v2856
        %3166 = vmatpush.msra.mxu0 %v2852
        %3167 = vmatpush.msra.mxu0 %v2848
        %3168 = vmatpush.msra.mxu0 %v2844
        %3169 = vmatpush.msra.mxu0 %v2840
        %3170 = vmatpush.msra.mxu0 %v2836
        %3171 = vmatpush.msra.mxu0 %v2832
        %3172 = vmatpush.msra.mxu0 %v2828
        %3173 = vmatpush.msra.mxu0 %v2824
        %3174 = vmatpush.msra.mxu0 %v2820
        %3175 = vmatpush.msra.mxu0 %v2816
        %3176 = vmatpush.msra.mxu0 %v2812
        %3177 = vmatpush.msra.mxu0 %v2808
        %3178 = vmatpush.msra.mxu0 %v2804
        %3179 = vmatpush.msra.mxu0 %v2800
        %3180 = vmatmul.f32.gmra.mxu0 %v753
        %v3181 = vpop.f32.mrf.mxu0
        %v3182 = vadd.f32 0.0, %v3181
        %3183 = vdwg.mxu0
        %3184 = vmatpush.msra.mxu0 %v2861
        %3185 = vmatpush.msra.mxu0 %v2857
        %3186 = vmatpush.msra.mxu0 %v2853
        %3187 = vmatpush.msra.mxu0 %v2849
        %3188 = vmatpush.msra.mxu0 %v2845
        %3189 = vmatpush.msra.mxu0 %v2841
        %3190 = vmatpush.msra.mxu0 %v2837
        %3191 = vmatpush.msra.mxu0 %v2833
        %3192 = vmatpush.msra.mxu0 %v2829
        %3193 = vmatpush.msra.mxu0 %v2825
        %3194 = vmatpush.msra.mxu0 %v2821
        %3195 = vmatpush.msra.mxu0 %v2817
        %3196 = vmatpush.msra.mxu0 %v2813
        %3197 = vmatpush.msra.mxu0 %v2809
        %3198 = vmatpush.msra.mxu0 %v2805
        %3199 = vmatpush.msra.mxu0 %v2801
        %3200 = vmatmul.f32.gmra.mxu0 %v753
        %v3201 = vpop.f32.mrf.mxu0
        %v3202 = vadd.f32 0.0, %v3201
        %3203 = vdwg.mxu0
        %v3204 = vmul.f32 %v3142, %v2888
        %v3205 = vmul.f32 %v3162, %v2889
        %v3206 = vmul.f32 %v3182, %v2890
        %v3207 = vmul.f32 %v3202, %v2891
        %v3208 = vsel %vm601, %v3204, 0.0
        %v3209 = vrot.slane %v3208, 4
        %v3210 = vadd.f32 %v3208, %v3209
        %v3211 = vrot.slane %v3210, 2
        %v3212 = vadd.f32 %v3210, %v3211
        %v3213 = vrot.slane %v3212, 1
        %v3214 = vadd.f32 %v3212, %v3213
        %v3215 = vsel %vm601, %v3205, 0.0
        %v3216 = vrot.slane %v3215, 4
        %v3217 = vadd.f32 %v3215, %v3216
        %v3218 = vrot.slane %v3217, 2
        %v3219 = vadd.f32 %v3217, %v3218
        %v3220 = vrot.slane %v3219, 1
        %v3221 = vadd.f32 %v3219, %v3220
        %v3222 = vsel %vm601, %v3206, 0.0
        %v3223 = vrot.slane %v3222, 4
        %v3224 = vadd.f32 %v3222, %v3223
        %v3225 = vrot.slane %v3224, 2
        %v3226 = vadd.f32 %v3224, %v3225
        %v3227 = vrot.slane %v3226, 1
        %v3228 = vadd.f32 %v3226, %v3227
        %v3229 = vsel %vm601, %v3207, 0.0
        %v3230 = vrot.slane %v3229, 4
        %v3231 = vadd.f32 %v3229, %v3230
        %v3232 = vrot.slane %v3231, 2
        %v3233 = vadd.f32 %v3231, %v3232
        %v3234 = vrot.slane %v3233, 1
        %v3235 = vadd.f32 %v3233, %v3234
        %v3236 = vadd.f32 %v2644, %v3214
        %v3237 = vadd.f32 %v2645, %v3221
        %v3238 = vadd.f32 %v2646, %v3228
        %v3239 = vadd.f32 %v2647, %v3235
        %v3240 = vadd.s32 %v2650, %v870
        %v3241 = vadd.s32 %v2651, %v871
        %v3242 = vmul.f32 %v2654, %v876
        %v3243 = vmul.f32 %v2655, %v877
        %v3244 = vand.u32 %v3240, 127
        %v3245 = vand.u32 %v3241, 127
        %v3246 = vshra.s32 %v3240, 7
        %v3247 = vshra.s32 %v3241, 7
        %v3248 = vperm.slane %v3244, 2
        %v3249 = vperm.slane %v3244, 6
        %v3250 = vperm.slane %v3245, 2
        %v3251 = vperm.slane %v3245, 6
        %v3252 = vperm.slane %v3248, 2
        %v3253 = vperm.slane %v3249, 2
        %v3254 = vperm.slane %v3250, 2
        %v3255 = vperm.slane %v3251, 2
        %vm3256 = vcmp.eq.s32.totalorder %v151, %v3252
        %vm3257 = vcmp.eq.s32.totalorder %v151, %v3253
        %vm3258 = vcmp.eq.s32.totalorder %v151, %v3254
        %vm3259 = vcmp.eq.s32.totalorder %v151, %v3255
        %vm3260 = vcmp.eq.s32.totalorder %v152, %v3252
        %vm3261 = vcmp.eq.s32.totalorder %v152, %v3253
        %vm3262 = vcmp.eq.s32.totalorder %v152, %v3254
        %vm3263 = vcmp.eq.s32.totalorder %v152, %v3255
        %vm3264 = vcmp.eq.s32.totalorder %v153, %v3252
        %vm3265 = vcmp.eq.s32.totalorder %v153, %v3253
        %vm3266 = vcmp.eq.s32.totalorder %v153, %v3254
        %vm3267 = vcmp.eq.s32.totalorder %v153, %v3255
        %vm3268 = vcmp.eq.s32.totalorder %v154, %v3252
        %vm3269 = vcmp.eq.s32.totalorder %v154, %v3253
        %vm3270 = vcmp.eq.s32.totalorder %v154, %v3254
        %vm3271 = vcmp.eq.s32.totalorder %v154, %v3255
        %vm3272 = vcmp.eq.s32.totalorder %v155, %v3252
        %vm3273 = vcmp.eq.s32.totalorder %v155, %v3253
        %vm3274 = vcmp.eq.s32.totalorder %v155, %v3254
        %vm3275 = vcmp.eq.s32.totalorder %v155, %v3255
        %vm3276 = vcmp.eq.s32.totalorder %v156, %v3252
        %vm3277 = vcmp.eq.s32.totalorder %v156, %v3253
        %vm3278 = vcmp.eq.s32.totalorder %v156, %v3254
        %vm3279 = vcmp.eq.s32.totalorder %v156, %v3255
        %vm3280 = vcmp.eq.s32.totalorder %v157, %v3252
        %vm3281 = vcmp.eq.s32.totalorder %v157, %v3253
        %vm3282 = vcmp.eq.s32.totalorder %v157, %v3254
        %vm3283 = vcmp.eq.s32.totalorder %v157, %v3255
        %vm3284 = vcmp.eq.s32.totalorder %v158, %v3252
        %vm3285 = vcmp.eq.s32.totalorder %v158, %v3253
        %vm3286 = vcmp.eq.s32.totalorder %v158, %v3254
        %vm3287 = vcmp.eq.s32.totalorder %v158, %v3255
        %vm3288 = vcmp.eq.s32.totalorder %v159, %v3252
        %vm3289 = vcmp.eq.s32.totalorder %v159, %v3253
        %vm3290 = vcmp.eq.s32.totalorder %v159, %v3254
        %vm3291 = vcmp.eq.s32.totalorder %v159, %v3255
        %vm3292 = vcmp.eq.s32.totalorder %v160, %v3252
        %vm3293 = vcmp.eq.s32.totalorder %v160, %v3253
        %vm3294 = vcmp.eq.s32.totalorder %v160, %v3254
        %vm3295 = vcmp.eq.s32.totalorder %v160, %v3255
        %vm3296 = vcmp.eq.s32.totalorder %v161, %v3252
        %vm3297 = vcmp.eq.s32.totalorder %v161, %v3253
        %vm3298 = vcmp.eq.s32.totalorder %v161, %v3254
        %vm3299 = vcmp.eq.s32.totalorder %v161, %v3255
        %vm3300 = vcmp.eq.s32.totalorder %v162, %v3252
        %vm3301 = vcmp.eq.s32.totalorder %v162, %v3253
        %vm3302 = vcmp.eq.s32.totalorder %v162, %v3254
        %vm3303 = vcmp.eq.s32.totalorder %v162, %v3255
        %vm3304 = vcmp.eq.s32.totalorder %v163, %v3252
        %vm3305 = vcmp.eq.s32.totalorder %v163, %v3253
        %vm3306 = vcmp.eq.s32.totalorder %v163, %v3254
        %vm3307 = vcmp.eq.s32.totalorder %v163, %v3255
        %vm3308 = vcmp.eq.s32.totalorder %v164, %v3252
        %vm3309 = vcmp.eq.s32.totalorder %v164, %v3253
        %vm3310 = vcmp.eq.s32.totalorder %v164, %v3254
        %vm3311 = vcmp.eq.s32.totalorder %v164, %v3255
        %vm3312 = vcmp.eq.s32.totalorder %v165, %v3252
        %vm3313 = vcmp.eq.s32.totalorder %v165, %v3253
        %vm3314 = vcmp.eq.s32.totalorder %v165, %v3254
        %vm3315 = vcmp.eq.s32.totalorder %v165, %v3255
        %vm3316 = vcmp.eq.s32.totalorder %v166, %v3252
        %vm3317 = vcmp.eq.s32.totalorder %v166, %v3253
        %vm3318 = vcmp.eq.s32.totalorder %v166, %v3254
        %vm3319 = vcmp.eq.s32.totalorder %v166, %v3255
        %v3320 = vsel %vm3256, 1, 0
        %v3321 = vsel %vm3257, 1, 0
        %v3322 = vsel %vm3258, 1, 0
        %v3323 = vsel %vm3259, 1, 0
        %v3324 = vsel %vm3260, 1, 0
        %v3325 = vsel %vm3261, 1, 0
        %v3326 = vsel %vm3262, 1, 0
        %v3327 = vsel %vm3263, 1, 0
        %v3328 = vsel %vm3264, 1, 0
        %v3329 = vsel %vm3265, 1, 0
        %v3330 = vsel %vm3266, 1, 0
        %v3331 = vsel %vm3267, 1, 0
        %v3332 = vsel %vm3268, 1, 0
        %v3333 = vsel %vm3269, 1, 0
        %v3334 = vsel %vm3270, 1, 0
        %v3335 = vsel %vm3271, 1, 0
        %v3336 = vsel %vm3272, 1, 0
        %v3337 = vsel %vm3273, 1, 0
        %v3338 = vsel %vm3274, 1, 0
        %v3339 = vsel %vm3275, 1, 0
        %v3340 = vsel %vm3276, 1, 0
        %v3341 = vsel %vm3277, 1, 0
        %v3342 = vsel %vm3278, 1, 0
        %v3343 = vsel %vm3279, 1, 0
        %v3344 = vsel %vm3280, 1, 0
        %v3345 = vsel %vm3281, 1, 0
        %v3346 = vsel %vm3282, 1, 0
        %v3347 = vsel %vm3283, 1, 0
        %v3348 = vsel %vm3284, 1, 0
        %v3349 = vsel %vm3285, 1, 0
        %v3350 = vsel %vm3286, 1, 0
        %v3351 = vsel %vm3287, 1, 0
        %v3352 = vsel %vm3288, 1, 0
        %v3353 = vsel %vm3289, 1, 0
        %v3354 = vsel %vm3290, 1, 0
        %v3355 = vsel %vm3291, 1, 0
        %v3356 = vsel %vm3292, 1, 0
        %v3357 = vsel %vm3293, 1, 0
        %v3358 = vsel %vm3294, 1, 0
        %v3359 = vsel %vm3295, 1, 0
        %v3360 = vsel %vm3296, 1, 0
        %v3361 = vsel %vm3297, 1, 0
        %v3362 = vsel %vm3298, 1, 0
        %v3363 = vsel %vm3299, 1, 0
        %v3364 = vsel %vm3300, 1, 0
        %v3365 = vsel %vm3301, 1, 0
        %v3366 = vsel %vm3302, 1, 0
        %v3367 = vsel %vm3303, 1, 0
        %v3368 = vsel %vm3304, 1, 0
        %v3369 = vsel %vm3305, 1, 0
        %v3370 = vsel %vm3306, 1, 0
        %v3371 = vsel %vm3307, 1, 0
        %v3372 = vsel %vm3308, 1, 0
        %v3373 = vsel %vm3309, 1, 0
        %v3374 = vsel %vm3310, 1, 0
        %v3375 = vsel %vm3311, 1, 0
        %v3376 = vsel %vm3312, 1, 0
        %v3377 = vsel %vm3313, 1, 0
        %v3378 = vsel %vm3314, 1, 0
        %v3379 = vsel %vm3315, 1, 0
        %v3380 = vsel %vm3316, 1, 0
        %v3381 = vsel %vm3317, 1, 0
        %v3382 = vsel %vm3318, 1, 0
        %v3383 = vsel %vm3319, 1, 0
        %v3384 = vcvt.s32.f32 %v3320
        %v3385 = vcvt.s32.f32 %v3321
        %v3386 = vcvt.s32.f32 %v3322
        %v3387 = vcvt.s32.f32 %v3323
        %v3388 = vcvt.s32.f32 %v3324
        %v3389 = vcvt.s32.f32 %v3325
        %v3390 = vcvt.s32.f32 %v3326
        %v3391 = vcvt.s32.f32 %v3327
        %v3392 = vcvt.s32.f32 %v3328
        %v3393 = vcvt.s32.f32 %v3329
        %v3394 = vcvt.s32.f32 %v3330
        %v3395 = vcvt.s32.f32 %v3331
        %v3396 = vcvt.s32.f32 %v3332
        %v3397 = vcvt.s32.f32 %v3333
        %v3398 = vcvt.s32.f32 %v3334
        %v3399 = vcvt.s32.f32 %v3335
        %v3400 = vcvt.s32.f32 %v3336
        %v3401 = vcvt.s32.f32 %v3337
        %v3402 = vcvt.s32.f32 %v3338
        %v3403 = vcvt.s32.f32 %v3339
        %v3404 = vcvt.s32.f32 %v3340
        %v3405 = vcvt.s32.f32 %v3341
        %v3406 = vcvt.s32.f32 %v3342
        %v3407 = vcvt.s32.f32 %v3343
        %v3408 = vcvt.s32.f32 %v3344
        %v3409 = vcvt.s32.f32 %v3345
        %v3410 = vcvt.s32.f32 %v3346
        %v3411 = vcvt.s32.f32 %v3347
        %v3412 = vcvt.s32.f32 %v3348
        %v3413 = vcvt.s32.f32 %v3349
        %v3414 = vcvt.s32.f32 %v3350
        %v3415 = vcvt.s32.f32 %v3351
        %v3416 = vcvt.s32.f32 %v3352
        %v3417 = vcvt.s32.f32 %v3353
        %v3418 = vcvt.s32.f32 %v3354
        %v3419 = vcvt.s32.f32 %v3355
        %v3420 = vcvt.s32.f32 %v3356
        %v3421 = vcvt.s32.f32 %v3357
        %v3422 = vcvt.s32.f32 %v3358
        %v3423 = vcvt.s32.f32 %v3359
        %v3424 = vcvt.s32.f32 %v3360
        %v3425 = vcvt.s32.f32 %v3361
        %v3426 = vcvt.s32.f32 %v3362
        %v3427 = vcvt.s32.f32 %v3363
        %v3428 = vcvt.s32.f32 %v3364
        %v3429 = vcvt.s32.f32 %v3365
        %v3430 = vcvt.s32.f32 %v3366
        %v3431 = vcvt.s32.f32 %v3367
        %v3432 = vcvt.s32.f32 %v3368
        %v3433 = vcvt.s32.f32 %v3369
        %v3434 = vcvt.s32.f32 %v3370
        %v3435 = vcvt.s32.f32 %v3371
        %v3436 = vcvt.s32.f32 %v3372
        %v3437 = vcvt.s32.f32 %v3373
        %v3438 = vcvt.s32.f32 %v3374
        %v3439 = vcvt.s32.f32 %v3375
        %v3440 = vcvt.s32.f32 %v3376
        %v3441 = vcvt.s32.f32 %v3377
        %v3442 = vcvt.s32.f32 %v3378
        %v3443 = vcvt.s32.f32 %v3379
        %v3444 = vcvt.s32.f32 %v3380
        %v3445 = vcvt.s32.f32 %v3381
        %v3446 = vcvt.s32.f32 %v3382
        %v3447 = vcvt.s32.f32 %v3383
        %v3448 = vperm.slane %v3246, 2
        %v3449 = vperm.slane %v3246, 6
        %v3450 = vperm.slane %v3247, 2
        %v3451 = vperm.slane %v3247, 6
        %v3452 = vperm.slane %v3448, 2
        %v3453 = vperm.slane %v3449, 2
        %v3454 = vperm.slane %v3450, 2
        %v3455 = vperm.slane %v3451, 2
        %vm3456 = vcmp.eq.s32.totalorder %v151, %v3452
        %vm3457 = vcmp.eq.s32.totalorder %v151, %v3453
        %vm3458 = vcmp.eq.s32.totalorder %v151, %v3454
        %vm3459 = vcmp.eq.s32.totalorder %v151, %v3455
        %v3462 = vperm.slane %v3242, 2
        %v3463 = vperm.slane %v3242, 6
        %v3464 = vperm.slane %v3243, 2
        %v3465 = vperm.slane %v3243, 6
        %v3470 = vperm.slane %v3462, 2
        %v3471 = vperm.slane %v3463, 2
        %v3472 = vperm.slane %v3464, 2
        %v3473 = vperm.slane %v3465, 2
        %v3474 = vsel %vm3456, %v3470, 0.0
        %v3475 = vsel %vm3457, %v3471, 0.0
        %v3476 = vsel %vm3458, %v3472, 0.0
        %v3477 = vsel %vm3459, %v3473, 0.0
        %3478 = vmatpush.msra.mxu0 %v3444
        %3479 = vmatpush.msra.mxu0 %v3440
        %3480 = vmatpush.msra.mxu0 %v3436
        %3481 = vmatpush.msra.mxu0 %v3432
        %3482 = vmatpush.msra.mxu0 %v3428
        %3483 = vmatpush.msra.mxu0 %v3424
        %3484 = vmatpush.msra.mxu0 %v3420
        %3485 = vmatpush.msra.mxu0 %v3416
        %3486 = vmatpush.msra.mxu0 %v3412
        %3487 = vmatpush.msra.mxu0 %v3408
        %3488 = vmatpush.msra.mxu0 %v3404
        %3489 = vmatpush.msra.mxu0 %v3400
        %3490 = vmatpush.msra.mxu0 %v3396
        %3491 = vmatpush.msra.mxu0 %v3392
        %3492 = vmatpush.msra.mxu0 %v3388
        %3493 = vmatpush.msra.mxu0 %v3384
        %3494 = vmatmul.f32.gmra.mxu0 %v516
        %v3495 = vpop.f32.mrf.mxu0
        %v3496 = vadd.f32 0.0, %v3495
        %3497 = vdwg.mxu0
        %3498 = vmatpush.msra.mxu0 %v3445
        %3499 = vmatpush.msra.mxu0 %v3441
        %3500 = vmatpush.msra.mxu0 %v3437
        %3501 = vmatpush.msra.mxu0 %v3433
        %3502 = vmatpush.msra.mxu0 %v3429
        %3503 = vmatpush.msra.mxu0 %v3425
        %3504 = vmatpush.msra.mxu0 %v3421
        %3505 = vmatpush.msra.mxu0 %v3417
        %3506 = vmatpush.msra.mxu0 %v3413
        %3507 = vmatpush.msra.mxu0 %v3409
        %3508 = vmatpush.msra.mxu0 %v3405
        %3509 = vmatpush.msra.mxu0 %v3401
        %3510 = vmatpush.msra.mxu0 %v3397
        %3511 = vmatpush.msra.mxu0 %v3393
        %3512 = vmatpush.msra.mxu0 %v3389
        %3513 = vmatpush.msra.mxu0 %v3385
        %3514 = vmatmul.f32.gmra.mxu0 %v516
        %v3515 = vpop.f32.mrf.mxu0
        %v3516 = vadd.f32 0.0, %v3515
        %3517 = vdwg.mxu0
        %3518 = vmatpush.msra.mxu0 %v3446
        %3519 = vmatpush.msra.mxu0 %v3442
        %3520 = vmatpush.msra.mxu0 %v3438
        %3521 = vmatpush.msra.mxu0 %v3434
        %3522 = vmatpush.msra.mxu0 %v3430
        %3523 = vmatpush.msra.mxu0 %v3426
        %3524 = vmatpush.msra.mxu0 %v3422
        %3525 = vmatpush.msra.mxu0 %v3418
        %3526 = vmatpush.msra.mxu0 %v3414
        %3527 = vmatpush.msra.mxu0 %v3410
        %3528 = vmatpush.msra.mxu0 %v3406
        %3529 = vmatpush.msra.mxu0 %v3402
        %3530 = vmatpush.msra.mxu0 %v3398
        %3531 = vmatpush.msra.mxu0 %v3394
        %3532 = vmatpush.msra.mxu0 %v3390
        %3533 = vmatpush.msra.mxu0 %v3386
        %3534 = vmatmul.f32.gmra.mxu0 %v516
        %v3535 = vpop.f32.mrf.mxu0
        %v3536 = vadd.f32 0.0, %v3535
        %3537 = vdwg.mxu0
        %3538 = vmatpush.msra.mxu0 %v3447
        %3539 = vmatpush.msra.mxu0 %v3443
        %3540 = vmatpush.msra.mxu0 %v3439
        %3541 = vmatpush.msra.mxu0 %v3435
        %3542 = vmatpush.msra.mxu0 %v3431
        %3543 = vmatpush.msra.mxu0 %v3427
        %3544 = vmatpush.msra.mxu0 %v3423
        %3545 = vmatpush.msra.mxu0 %v3419
        %3546 = vmatpush.msra.mxu0 %v3415
        %3547 = vmatpush.msra.mxu0 %v3411
        %3548 = vmatpush.msra.mxu0 %v3407
        %3549 = vmatpush.msra.mxu0 %v3403
        %3550 = vmatpush.msra.mxu0 %v3399
        %3551 = vmatpush.msra.mxu0 %v3395
        %3552 = vmatpush.msra.mxu0 %v3391
        %3553 = vmatpush.msra.mxu0 %v3387
        %3554 = vmatmul.f32.gmra.mxu0 %v516
        %v3555 = vpop.f32.mrf.mxu0
        %v3556 = vadd.f32 0.0, %v3555
        %3557 = vdwg.mxu0
        %v3558 = vmul.f32 %v3496, %v3474
        %v3559 = vmul.f32 %v3516, %v3475
        %v3560 = vmul.f32 %v3536, %v3476
        %v3561 = vmul.f32 %v3556, %v3477
        %v3562 = vsel %vm601, %v3558, 0.0
        %v3563 = vrot.slane %v3562, 4
        %v3564 = vadd.f32 %v3562, %v3563
        %v3565 = vrot.slane %v3564, 2
        %v3566 = vadd.f32 %v3564, %v3565
        %v3567 = vrot.slane %v3566, 1
        %v3568 = vadd.f32 %v3566, %v3567
        %v3569 = vsel %vm601, %v3559, 0.0
        %v3570 = vrot.slane %v3569, 4
        %v3571 = vadd.f32 %v3569, %v3570
        %v3572 = vrot.slane %v3571, 2
        %v3573 = vadd.f32 %v3571, %v3572
        %v3574 = vrot.slane %v3573, 1
        %v3575 = vadd.f32 %v3573, %v3574
        %v3576 = vsel %vm601, %v3560, 0.0
        %v3577 = vrot.slane %v3576, 4
        %v3578 = vadd.f32 %v3576, %v3577
        %v3579 = vrot.slane %v3578, 2
        %v3580 = vadd.f32 %v3578, %v3579
        %v3581 = vrot.slane %v3580, 1
        %v3582 = vadd.f32 %v3580, %v3581
        %v3583 = vsel %vm601, %v3561, 0.0
        %v3584 = vrot.slane %v3583, 4
        %v3585 = vadd.f32 %v3583, %v3584
        %v3586 = vrot.slane %v3585, 2
        %v3587 = vadd.f32 %v3585, %v3586
        %v3588 = vrot.slane %v3587, 1
        %v3589 = vadd.f32 %v3587, %v3588
        %v3590 = vadd.f32 %v3004, %v3568
        %v3591 = vadd.f32 %v3005, %v3575
        %v3592 = vadd.f32 %v3006, %v3582
        %v3593 = vadd.f32 %v3007, %v3589
        %3594 = vmatpush.msra.mxu0 %v3444
        %3595 = vmatpush.msra.mxu0 %v3440
        %3596 = vmatpush.msra.mxu0 %v3436
        %3597 = vmatpush.msra.mxu0 %v3432
        %3598 = vmatpush.msra.mxu0 %v3428
        %3599 = vmatpush.msra.mxu0 %v3424
        %3600 = vmatpush.msra.mxu0 %v3420
        %3601 = vmatpush.msra.mxu0 %v3416
        %3602 = vmatpush.msra.mxu0 %v3412
        %3603 = vmatpush.msra.mxu0 %v3408
        %3604 = vmatpush.msra.mxu0 %v3404
        %3605 = vmatpush.msra.mxu0 %v3400
        %3606 = vmatpush.msra.mxu0 %v3396
        %3607 = vmatpush.msra.mxu0 %v3392
        %3608 = vmatpush.msra.mxu0 %v3388
        %3609 = vmatpush.msra.mxu0 %v3384
        %3610 = vmatmul.f32.gmra.mxu0 %v635
        %v3611 = vpop.f32.mrf.mxu0
        %v3612 = vadd.f32 0.0, %v3611
        %3613 = vdwg.mxu0
        %3614 = vmatpush.msra.mxu0 %v3445
        %3615 = vmatpush.msra.mxu0 %v3441
        %3616 = vmatpush.msra.mxu0 %v3437
        %3617 = vmatpush.msra.mxu0 %v3433
        %3618 = vmatpush.msra.mxu0 %v3429
        %3619 = vmatpush.msra.mxu0 %v3425
        %3620 = vmatpush.msra.mxu0 %v3421
        %3621 = vmatpush.msra.mxu0 %v3417
        %3622 = vmatpush.msra.mxu0 %v3413
        %3623 = vmatpush.msra.mxu0 %v3409
        %3624 = vmatpush.msra.mxu0 %v3405
        %3625 = vmatpush.msra.mxu0 %v3401
        %3626 = vmatpush.msra.mxu0 %v3397
        %3627 = vmatpush.msra.mxu0 %v3393
        %3628 = vmatpush.msra.mxu0 %v3389
        %3629 = vmatpush.msra.mxu0 %v3385
        %3630 = vmatmul.f32.gmra.mxu0 %v635
        %v3631 = vpop.f32.mrf.mxu0
        %v3632 = vadd.f32 0.0, %v3631
        %3633 = vdwg.mxu0
        %3634 = vmatpush.msra.mxu0 %v3446
        %3635 = vmatpush.msra.mxu0 %v3442
        %3636 = vmatpush.msra.mxu0 %v3438
        %3637 = vmatpush.msra.mxu0 %v3434
        %3638 = vmatpush.msra.mxu0 %v3430
        %3639 = vmatpush.msra.mxu0 %v3426
        %3640 = vmatpush.msra.mxu0 %v3422
        %3641 = vmatpush.msra.mxu0 %v3418
        %3642 = vmatpush.msra.mxu0 %v3414
        %3643 = vmatpush.msra.mxu0 %v3410
        %3644 = vmatpush.msra.mxu0 %v3406
        %3645 = vmatpush.msra.mxu0 %v3402
        %3646 = vmatpush.msra.mxu0 %v3398
        %3647 = vmatpush.msra.mxu0 %v3394
        %3648 = vmatpush.msra.mxu0 %v3390
        %3649 = vmatpush.msra.mxu0 %v3386
        %3650 = vmatmul.f32.gmra.mxu0 %v635
        %v3651 = vpop.f32.mrf.mxu0
        %v3652 = vadd.f32 0.0, %v3651
        %3653 = vdwg.mxu0
        %3654 = vmatpush.msra.mxu0 %v3447
        %3655 = vmatpush.msra.mxu0 %v3443
        %3656 = vmatpush.msra.mxu0 %v3439
        %3657 = vmatpush.msra.mxu0 %v3435
        %3658 = vmatpush.msra.mxu0 %v3431
        %3659 = vmatpush.msra.mxu0 %v3427
        %3660 = vmatpush.msra.mxu0 %v3423
        %3661 = vmatpush.msra.mxu0 %v3419
        %3662 = vmatpush.msra.mxu0 %v3415
        %3663 = vmatpush.msra.mxu0 %v3411
        %3664 = vmatpush.msra.mxu0 %v3407
        %3665 = vmatpush.msra.mxu0 %v3403
        %3666 = vmatpush.msra.mxu0 %v3399
        %3667 = vmatpush.msra.mxu0 %v3395
        %3668 = vmatpush.msra.mxu0 %v3391
        %3669 = vmatpush.msra.mxu0 %v3387
        %3670 = vmatmul.f32.gmra.mxu0 %v635
        %v3671 = vpop.f32.mrf.mxu0
        %v3672 = vadd.f32 0.0, %v3671
        %3673 = vdwg.mxu0
        %v3674 = vmul.f32 %v3612, %v3474
        %v3675 = vmul.f32 %v3632, %v3475
        %v3676 = vmul.f32 %v3652, %v3476
        %v3677 = vmul.f32 %v3672, %v3477
        %v3678 = vsel %vm601, %v3674, 0.0
        %v3679 = vrot.slane %v3678, 4
        %v3680 = vadd.f32 %v3678, %v3679
        %v3681 = vrot.slane %v3680, 2
        %v3682 = vadd.f32 %v3680, %v3681
        %v3683 = vrot.slane %v3682, 1
        %v3684 = vadd.f32 %v3682, %v3683
        %v3685 = vsel %vm601, %v3675, 0.0
        %v3686 = vrot.slane %v3685, 4
        %v3687 = vadd.f32 %v3685, %v3686
        %v3688 = vrot.slane %v3687, 2
        %v3689 = vadd.f32 %v3687, %v3688
        %v3690 = vrot.slane %v3689, 1
        %v3691 = vadd.f32 %v3689, %v3690
        %v3692 = vsel %vm601, %v3676, 0.0
        %v3693 = vrot.slane %v3692, 4
        %v3694 = vadd.f32 %v3692, %v3693
        %v3695 = vrot.slane %v3694, 2
        %v3696 = vadd.f32 %v3694, %v3695
        %v3697 = vrot.slane %v3696, 1
        %v3698 = vadd.f32 %v3696, %v3697
        %v3699 = vsel %vm601, %v3677, 0.0
        %v3700 = vrot.slane %v3699, 4
        %v3701 = vadd.f32 %v3699, %v3700
        %v3702 = vrot.slane %v3701, 2
        %v3703 = vadd.f32 %v3701, %v3702
        %v3704 = vrot.slane %v3703, 1
        %v3705 = vadd.f32 %v3703, %v3704
        %v3706 = vadd.f32 %v3120, %v3684
        %v3707 = vadd.f32 %v3121, %v3691
        %v3708 = vadd.f32 %v3122, %v3698
        %v3709 = vadd.f32 %v3123, %v3705
        %3710 = vmatpush.msra.mxu0 %v3444
        %3711 = vmatpush.msra.mxu0 %v3440
        %3712 = vmatpush.msra.mxu0 %v3436
        %3713 = vmatpush.msra.mxu0 %v3432
        %3714 = vmatpush.msra.mxu0 %v3428
        %3715 = vmatpush.msra.mxu0 %v3424
        %3716 = vmatpush.msra.mxu0 %v3420
        %3717 = vmatpush.msra.mxu0 %v3416
        %3718 = vmatpush.msra.mxu0 %v3412
        %3719 = vmatpush.msra.mxu0 %v3408
        %3720 = vmatpush.msra.mxu0 %v3404
        %3721 = vmatpush.msra.mxu0 %v3400
        %3722 = vmatpush.msra.mxu0 %v3396
        %3723 = vmatpush.msra.mxu0 %v3392
        %3724 = vmatpush.msra.mxu0 %v3388
        %3725 = vmatpush.msra.mxu0 %v3384
        %3726 = vmatmul.f32.gmra.mxu0 %v753
        %v3727 = vpop.f32.mrf.mxu0
        %v3728 = vadd.f32 0.0, %v3727
        %3729 = vdwg.mxu0
        %3730 = vmatpush.msra.mxu0 %v3445
        %3731 = vmatpush.msra.mxu0 %v3441
        %3732 = vmatpush.msra.mxu0 %v3437
        %3733 = vmatpush.msra.mxu0 %v3433
        %3734 = vmatpush.msra.mxu0 %v3429
        %3735 = vmatpush.msra.mxu0 %v3425
        %3736 = vmatpush.msra.mxu0 %v3421
        %3737 = vmatpush.msra.mxu0 %v3417
        %3738 = vmatpush.msra.mxu0 %v3413
        %3739 = vmatpush.msra.mxu0 %v3409
        %3740 = vmatpush.msra.mxu0 %v3405
        %3741 = vmatpush.msra.mxu0 %v3401
        %3742 = vmatpush.msra.mxu0 %v3397
        %3743 = vmatpush.msra.mxu0 %v3393
        %3744 = vmatpush.msra.mxu0 %v3389
        %3745 = vmatpush.msra.mxu0 %v3385
        %3746 = vmatmul.f32.gmra.mxu0 %v753
        %v3747 = vpop.f32.mrf.mxu0
        %v3748 = vadd.f32 0.0, %v3747
        %3749 = vdwg.mxu0
        %3750 = vmatpush.msra.mxu0 %v3446
        %3751 = vmatpush.msra.mxu0 %v3442
        %3752 = vmatpush.msra.mxu0 %v3438
        %3753 = vmatpush.msra.mxu0 %v3434
        %3754 = vmatpush.msra.mxu0 %v3430
        %3755 = vmatpush.msra.mxu0 %v3426
        %3756 = vmatpush.msra.mxu0 %v3422
        %3757 = vmatpush.msra.mxu0 %v3418
        %3758 = vmatpush.msra.mxu0 %v3414
        %3759 = vmatpush.msra.mxu0 %v3410
        %3760 = vmatpush.msra.mxu0 %v3406
        %3761 = vmatpush.msra.mxu0 %v3402
        %3762 = vmatpush.msra.mxu0 %v3398
        %3763 = vmatpush.msra.mxu0 %v3394
        %3764 = vmatpush.msra.mxu0 %v3390
        %3765 = vmatpush.msra.mxu0 %v3386
        %3766 = vmatmul.f32.gmra.mxu0 %v753
        %v3767 = vpop.f32.mrf.mxu0
        %v3768 = vadd.f32 0.0, %v3767
        %3769 = vdwg.mxu0
        %3770 = vmatpush.msra.mxu0 %v3447
        %3771 = vmatpush.msra.mxu0 %v3443
        %3772 = vmatpush.msra.mxu0 %v3439
        %3773 = vmatpush.msra.mxu0 %v3435
        %3774 = vmatpush.msra.mxu0 %v3431
        %3775 = vmatpush.msra.mxu0 %v3427
        %3776 = vmatpush.msra.mxu0 %v3423
        %3777 = vmatpush.msra.mxu0 %v3419
        %3778 = vmatpush.msra.mxu0 %v3415
        %3779 = vmatpush.msra.mxu0 %v3411
        %3780 = vmatpush.msra.mxu0 %v3407
        %3781 = vmatpush.msra.mxu0 %v3403
        %3782 = vmatpush.msra.mxu0 %v3399
        %3783 = vmatpush.msra.mxu0 %v3395
        %3784 = vmatpush.msra.mxu0 %v3391
        %3785 = vmatpush.msra.mxu0 %v3387
        %3786 = vmatmul.f32.gmra.mxu0 %v753
        %v3787 = vpop.f32.mrf.mxu0
        %v3788 = vadd.f32 0.0, %v3787
        %3789 = vdwg.mxu0
        %v3790 = vmul.f32 %v3728, %v3474
        %v3791 = vmul.f32 %v3748, %v3475
        %v3792 = vmul.f32 %v3768, %v3476
        %v3793 = vmul.f32 %v3788, %v3477
        %v3794 = vsel %vm601, %v3790, 0.0
        %v3795 = vrot.slane %v3794, 4
        %v3796 = vadd.f32 %v3794, %v3795
        %v3797 = vrot.slane %v3796, 2
        %v3798 = vadd.f32 %v3796, %v3797
        %v3799 = vrot.slane %v3798, 1
        %v3800 = vadd.f32 %v3798, %v3799
        %v3801 = vsel %vm601, %v3791, 0.0
        %v3802 = vrot.slane %v3801, 4
        %v3803 = vadd.f32 %v3801, %v3802
        %v3804 = vrot.slane %v3803, 2
        %v3805 = vadd.f32 %v3803, %v3804
        %v3806 = vrot.slane %v3805, 1
        %v3807 = vadd.f32 %v3805, %v3806
        %v3808 = vsel %vm601, %v3792, 0.0
        %v3809 = vrot.slane %v3808, 4
        %v3810 = vadd.f32 %v3808, %v3809
        %v3811 = vrot.slane %v3810, 2
        %v3812 = vadd.f32 %v3810, %v3811
        %v3813 = vrot.slane %v3812, 1
        %v3814 = vadd.f32 %v3812, %v3813
        %v3815 = vsel %vm601, %v3793, 0.0
        %v3816 = vrot.slane %v3815, 4
        %v3817 = vadd.f32 %v3815, %v3816
        %v3818 = vrot.slane %v3817, 2
        %v3819 = vadd.f32 %v3817, %v3818
        %v3820 = vrot.slane %v3819, 1
        %v3821 = vadd.f32 %v3819, %v3820
        %v3822 = vadd.f32 %v3236, %v3800
        %v3823 = vadd.f32 %v3237, %v3807
        %v3824 = vadd.f32 %v3238, %v3814
        %v3825 = vadd.f32 %v3239, %v3821
        %v3826 = vadd.s32 %v2648, %v1466
        %v3827 = vadd.s32 %v2649, %v1467
        %v3828 = vadd.s32 %v3826, %v264
        %v3829 = vadd.s32 %v3827, %v265
        %v3830 = vmul.f32 %v244, %v1472
        %v3831 = vmul.f32 %v245, %v1473
        %v3832 = vmul.f32 %v3830, %v276
        %v3833 = vmul.f32 %v3831, %v277
        %v3834 = vand.u32 %v3828, 127
        %v3835 = vand.u32 %v3829, 127
        %v3836 = vshra.s32 %v3828, 7
        %v3837 = vshra.s32 %v3829, 7
        %v3838 = vperm.slane %v3834, 2
        %v3839 = vperm.slane %v3834, 6
        %v3840 = vperm.slane %v3835, 2
        %v3841 = vperm.slane %v3835, 6
        %v3842 = vperm.slane %v3838, 2
        %v3843 = vperm.slane %v3839, 2
        %v3844 = vperm.slane %v3840, 2
        %v3845 = vperm.slane %v3841, 2
        %vm3846 = vcmp.eq.s32.totalorder %v151, %v3842
        %vm3847 = vcmp.eq.s32.totalorder %v151, %v3843
        %vm3848 = vcmp.eq.s32.totalorder %v151, %v3844
        %vm3849 = vcmp.eq.s32.totalorder %v151, %v3845
        %vm3850 = vcmp.eq.s32.totalorder %v152, %v3842
        %vm3851 = vcmp.eq.s32.totalorder %v152, %v3843
        %vm3852 = vcmp.eq.s32.totalorder %v152, %v3844
        %vm3853 = vcmp.eq.s32.totalorder %v152, %v3845
        %vm3854 = vcmp.eq.s32.totalorder %v153, %v3842
        %vm3855 = vcmp.eq.s32.totalorder %v153, %v3843
        %vm3856 = vcmp.eq.s32.totalorder %v153, %v3844
        %vm3857 = vcmp.eq.s32.totalorder %v153, %v3845
        %vm3858 = vcmp.eq.s32.totalorder %v154, %v3842
        %vm3859 = vcmp.eq.s32.totalorder %v154, %v3843
        %vm3860 = vcmp.eq.s32.totalorder %v154, %v3844
        %vm3861 = vcmp.eq.s32.totalorder %v154, %v3845
        %vm3862 = vcmp.eq.s32.totalorder %v155, %v3842
        %vm3863 = vcmp.eq.s32.totalorder %v155, %v3843
        %vm3864 = vcmp.eq.s32.totalorder %v155, %v3844
        %vm3865 = vcmp.eq.s32.totalorder %v155, %v3845
        %vm3866 = vcmp.eq.s32.totalorder %v156, %v3842
        %vm3867 = vcmp.eq.s32.totalorder %v156, %v3843
        %vm3868 = vcmp.eq.s32.totalorder %v156, %v3844
        %vm3869 = vcmp.eq.s32.totalorder %v156, %v3845
        %vm3870 = vcmp.eq.s32.totalorder %v157, %v3842
        %vm3871 = vcmp.eq.s32.totalorder %v157, %v3843
        %vm3872 = vcmp.eq.s32.totalorder %v157, %v3844
        %vm3873 = vcmp.eq.s32.totalorder %v157, %v3845
        %vm3874 = vcmp.eq.s32.totalorder %v158, %v3842
        %vm3875 = vcmp.eq.s32.totalorder %v158, %v3843
        %vm3876 = vcmp.eq.s32.totalorder %v158, %v3844
        %vm3877 = vcmp.eq.s32.totalorder %v158, %v3845
        %vm3878 = vcmp.eq.s32.totalorder %v159, %v3842
        %vm3879 = vcmp.eq.s32.totalorder %v159, %v3843
        %vm3880 = vcmp.eq.s32.totalorder %v159, %v3844
        %vm3881 = vcmp.eq.s32.totalorder %v159, %v3845
        %vm3882 = vcmp.eq.s32.totalorder %v160, %v3842
        %vm3883 = vcmp.eq.s32.totalorder %v160, %v3843
        %vm3884 = vcmp.eq.s32.totalorder %v160, %v3844
        %vm3885 = vcmp.eq.s32.totalorder %v160, %v3845
        %vm3886 = vcmp.eq.s32.totalorder %v161, %v3842
        %vm3887 = vcmp.eq.s32.totalorder %v161, %v3843
        %vm3888 = vcmp.eq.s32.totalorder %v161, %v3844
        %vm3889 = vcmp.eq.s32.totalorder %v161, %v3845
        %vm3890 = vcmp.eq.s32.totalorder %v162, %v3842
        %vm3891 = vcmp.eq.s32.totalorder %v162, %v3843
        %vm3892 = vcmp.eq.s32.totalorder %v162, %v3844
        %vm3893 = vcmp.eq.s32.totalorder %v162, %v3845
        %vm3894 = vcmp.eq.s32.totalorder %v163, %v3842
        %vm3895 = vcmp.eq.s32.totalorder %v163, %v3843
        %vm3896 = vcmp.eq.s32.totalorder %v163, %v3844
        %vm3897 = vcmp.eq.s32.totalorder %v163, %v3845
        %vm3898 = vcmp.eq.s32.totalorder %v164, %v3842
        %vm3899 = vcmp.eq.s32.totalorder %v164, %v3843
        %vm3900 = vcmp.eq.s32.totalorder %v164, %v3844
        %vm3901 = vcmp.eq.s32.totalorder %v164, %v3845
        %vm3902 = vcmp.eq.s32.totalorder %v165, %v3842
        %vm3903 = vcmp.eq.s32.totalorder %v165, %v3843
        %vm3904 = vcmp.eq.s32.totalorder %v165, %v3844
        %vm3905 = vcmp.eq.s32.totalorder %v165, %v3845
        %vm3906 = vcmp.eq.s32.totalorder %v166, %v3842
        %vm3907 = vcmp.eq.s32.totalorder %v166, %v3843
        %vm3908 = vcmp.eq.s32.totalorder %v166, %v3844
        %vm3909 = vcmp.eq.s32.totalorder %v166, %v3845
        %v3910 = vsel %vm3846, 1, 0
        %v3911 = vsel %vm3847, 1, 0
        %v3912 = vsel %vm3848, 1, 0
        %v3913 = vsel %vm3849, 1, 0
        %v3914 = vsel %vm3850, 1, 0
        %v3915 = vsel %vm3851, 1, 0
        %v3916 = vsel %vm3852, 1, 0
        %v3917 = vsel %vm3853, 1, 0
        %v3918 = vsel %vm3854, 1, 0
        %v3919 = vsel %vm3855, 1, 0
        %v3920 = vsel %vm3856, 1, 0
        %v3921 = vsel %vm3857, 1, 0
        %v3922 = vsel %vm3858, 1, 0
        %v3923 = vsel %vm3859, 1, 0
        %v3924 = vsel %vm3860, 1, 0
        %v3925 = vsel %vm3861, 1, 0
        %v3926 = vsel %vm3862, 1, 0
        %v3927 = vsel %vm3863, 1, 0
        %v3928 = vsel %vm3864, 1, 0
        %v3929 = vsel %vm3865, 1, 0
        %v3930 = vsel %vm3866, 1, 0
        %v3931 = vsel %vm3867, 1, 0
        %v3932 = vsel %vm3868, 1, 0
        %v3933 = vsel %vm3869, 1, 0
        %v3934 = vsel %vm3870, 1, 0
        %v3935 = vsel %vm3871, 1, 0
        %v3936 = vsel %vm3872, 1, 0
        %v3937 = vsel %vm3873, 1, 0
        %v3938 = vsel %vm3874, 1, 0
        %v3939 = vsel %vm3875, 1, 0
        %v3940 = vsel %vm3876, 1, 0
        %v3941 = vsel %vm3877, 1, 0
        %v3942 = vsel %vm3878, 1, 0
        %v3943 = vsel %vm3879, 1, 0
        %v3944 = vsel %vm3880, 1, 0
        %v3945 = vsel %vm3881, 1, 0
        %v3946 = vsel %vm3882, 1, 0
        %v3947 = vsel %vm3883, 1, 0
        %v3948 = vsel %vm3884, 1, 0
        %v3949 = vsel %vm3885, 1, 0
        %v3950 = vsel %vm3886, 1, 0
        %v3951 = vsel %vm3887, 1, 0
        %v3952 = vsel %vm3888, 1, 0
        %v3953 = vsel %vm3889, 1, 0
        %v3954 = vsel %vm3890, 1, 0
        %v3955 = vsel %vm3891, 1, 0
        %v3956 = vsel %vm3892, 1, 0
        %v3957 = vsel %vm3893, 1, 0
        %v3958 = vsel %vm3894, 1, 0
        %v3959 = vsel %vm3895, 1, 0
        %v3960 = vsel %vm3896, 1, 0
        %v3961 = vsel %vm3897, 1, 0
        %v3962 = vsel %vm3898, 1, 0
        %v3963 = vsel %vm3899, 1, 0
        %v3964 = vsel %vm3900, 1, 0
        %v3965 = vsel %vm3901, 1, 0
        %v3966 = vsel %vm3902, 1, 0
        %v3967 = vsel %vm3903, 1, 0
        %v3968 = vsel %vm3904, 1, 0
        %v3969 = vsel %vm3905, 1, 0
        %v3970 = vsel %vm3906, 1, 0
        %v3971 = vsel %vm3907, 1, 0
        %v3972 = vsel %vm3908, 1, 0
        %v3973 = vsel %vm3909, 1, 0
        %v3974 = vcvt.s32.f32 %v3910
        %v3975 = vcvt.s32.f32 %v3911
        %v3976 = vcvt.s32.f32 %v3912
        %v3977 = vcvt.s32.f32 %v3913
        %v3978 = vcvt.s32.f32 %v3914
        %v3979 = vcvt.s32.f32 %v3915
        %v3980 = vcvt.s32.f32 %v3916
        %v3981 = vcvt.s32.f32 %v3917
        %v3982 = vcvt.s32.f32 %v3918
        %v3983 = vcvt.s32.f32 %v3919
        %v3984 = vcvt.s32.f32 %v3920
        %v3985 = vcvt.s32.f32 %v3921
        %v3986 = vcvt.s32.f32 %v3922
        %v3987 = vcvt.s32.f32 %v3923
        %v3988 = vcvt.s32.f32 %v3924
        %v3989 = vcvt.s32.f32 %v3925
        %v3990 = vcvt.s32.f32 %v3926
        %v3991 = vcvt.s32.f32 %v3927
        %v3992 = vcvt.s32.f32 %v3928
        %v3993 = vcvt.s32.f32 %v3929
        %v3994 = vcvt.s32.f32 %v3930
        %v3995 = vcvt.s32.f32 %v3931
        %v3996 = vcvt.s32.f32 %v3932
        %v3997 = vcvt.s32.f32 %v3933
        %v3998 = vcvt.s32.f32 %v3934
        %v3999 = vcvt.s32.f32 %v3935
        %v4000 = vcvt.s32.f32 %v3936
        %v4001 = vcvt.s32.f32 %v3937
        %v4002 = vcvt.s32.f32 %v3938
        %v4003 = vcvt.s32.f32 %v3939
        %v4004 = vcvt.s32.f32 %v3940
        %v4005 = vcvt.s32.f32 %v3941
        %v4006 = vcvt.s32.f32 %v3942
        %v4007 = vcvt.s32.f32 %v3943
        %v4008 = vcvt.s32.f32 %v3944
        %v4009 = vcvt.s32.f32 %v3945
        %v4010 = vcvt.s32.f32 %v3946
        %v4011 = vcvt.s32.f32 %v3947
        %v4012 = vcvt.s32.f32 %v3948
        %v4013 = vcvt.s32.f32 %v3949
        %v4014 = vcvt.s32.f32 %v3950
        %v4015 = vcvt.s32.f32 %v3951
        %v4016 = vcvt.s32.f32 %v3952
        %v4017 = vcvt.s32.f32 %v3953
        %v4018 = vcvt.s32.f32 %v3954
        %v4019 = vcvt.s32.f32 %v3955
        %v4020 = vcvt.s32.f32 %v3956
        %v4021 = vcvt.s32.f32 %v3957
        %v4022 = vcvt.s32.f32 %v3958
        %v4023 = vcvt.s32.f32 %v3959
        %v4024 = vcvt.s32.f32 %v3960
        %v4025 = vcvt.s32.f32 %v3961
        %v4026 = vcvt.s32.f32 %v3962
        %v4027 = vcvt.s32.f32 %v3963
        %v4028 = vcvt.s32.f32 %v3964
        %v4029 = vcvt.s32.f32 %v3965
        %v4030 = vcvt.s32.f32 %v3966
        %v4031 = vcvt.s32.f32 %v3967
        %v4032 = vcvt.s32.f32 %v3968
        %v4033 = vcvt.s32.f32 %v3969
        %v4034 = vcvt.s32.f32 %v3970
        %v4035 = vcvt.s32.f32 %v3971
        %v4036 = vcvt.s32.f32 %v3972
        %v4037 = vcvt.s32.f32 %v3973
        %v4038 = vperm.slane %v3836, 2
        %v4039 = vperm.slane %v3836, 6
        %v4040 = vperm.slane %v3837, 2
        %v4041 = vperm.slane %v3837, 6
        %v4042 = vperm.slane %v4038, 2
        %v4043 = vperm.slane %v4039, 2
        %v4044 = vperm.slane %v4040, 2
        %v4045 = vperm.slane %v4041, 2
        %vm4046 = vcmp.eq.s32.totalorder %v151, %v4042
        %vm4047 = vcmp.eq.s32.totalorder %v151, %v4043
        %vm4048 = vcmp.eq.s32.totalorder %v151, %v4044
        %vm4049 = vcmp.eq.s32.totalorder %v151, %v4045
        %v4052 = vperm.slane %v3832, 2
        %v4053 = vperm.slane %v3832, 6
        %v4054 = vperm.slane %v3833, 2
        %v4055 = vperm.slane %v3833, 6
        %v4060 = vperm.slane %v4052, 2
        %v4061 = vperm.slane %v4053, 2
        %v4062 = vperm.slane %v4054, 2
        %v4063 = vperm.slane %v4055, 2
        %v4064 = vsel %vm4046, %v4060, 0.0
        %v4065 = vsel %vm4047, %v4061, 0.0
        %v4066 = vsel %vm4048, %v4062, 0.0
        %v4067 = vsel %vm4049, %v4063, 0.0
        %4068 = vmatpush.msra.mxu0 %v4034
        %4069 = vmatpush.msra.mxu0 %v4030
        %4070 = vmatpush.msra.mxu0 %v4026
        %4071 = vmatpush.msra.mxu0 %v4022
        %4072 = vmatpush.msra.mxu0 %v4018
        %4073 = vmatpush.msra.mxu0 %v4014
        %4074 = vmatpush.msra.mxu0 %v4010
        %4075 = vmatpush.msra.mxu0 %v4006
        %4076 = vmatpush.msra.mxu0 %v4002
        %4077 = vmatpush.msra.mxu0 %v3998
        %4078 = vmatpush.msra.mxu0 %v3994
        %4079 = vmatpush.msra.mxu0 %v3990
        %4080 = vmatpush.msra.mxu0 %v3986
        %4081 = vmatpush.msra.mxu0 %v3982
        %4082 = vmatpush.msra.mxu0 %v3978
        %4083 = vmatpush.msra.mxu0 %v3974
        %4084 = vmatmul.f32.gmra.mxu0 %v516
        %v4085 = vpop.f32.mrf.mxu0
        %v4086 = vadd.f32 0.0, %v4085
        %4087 = vdwg.mxu0
        %4088 = vmatpush.msra.mxu0 %v4035
        %4089 = vmatpush.msra.mxu0 %v4031
        %4090 = vmatpush.msra.mxu0 %v4027
        %4091 = vmatpush.msra.mxu0 %v4023
        %4092 = vmatpush.msra.mxu0 %v4019
        %4093 = vmatpush.msra.mxu0 %v4015
        %4094 = vmatpush.msra.mxu0 %v4011
        %4095 = vmatpush.msra.mxu0 %v4007
        %4096 = vmatpush.msra.mxu0 %v4003
        %4097 = vmatpush.msra.mxu0 %v3999
        %4098 = vmatpush.msra.mxu0 %v3995
        %4099 = vmatpush.msra.mxu0 %v3991
        %4100 = vmatpush.msra.mxu0 %v3987
        %4101 = vmatpush.msra.mxu0 %v3983
        %4102 = vmatpush.msra.mxu0 %v3979
        %4103 = vmatpush.msra.mxu0 %v3975
        %4104 = vmatmul.f32.gmra.mxu0 %v516
        %v4105 = vpop.f32.mrf.mxu0
        %v4106 = vadd.f32 0.0, %v4105
        %4107 = vdwg.mxu0
        %4108 = vmatpush.msra.mxu0 %v4036
        %4109 = vmatpush.msra.mxu0 %v4032
        %4110 = vmatpush.msra.mxu0 %v4028
        %4111 = vmatpush.msra.mxu0 %v4024
        %4112 = vmatpush.msra.mxu0 %v4020
        %4113 = vmatpush.msra.mxu0 %v4016
        %4114 = vmatpush.msra.mxu0 %v4012
        %4115 = vmatpush.msra.mxu0 %v4008
        %4116 = vmatpush.msra.mxu0 %v4004
        %4117 = vmatpush.msra.mxu0 %v4000
        %4118 = vmatpush.msra.mxu0 %v3996
        %4119 = vmatpush.msra.mxu0 %v3992
        %4120 = vmatpush.msra.mxu0 %v3988
        %4121 = vmatpush.msra.mxu0 %v3984
        %4122 = vmatpush.msra.mxu0 %v3980
        %4123 = vmatpush.msra.mxu0 %v3976
        %4124 = vmatmul.f32.gmra.mxu0 %v516
        %v4125 = vpop.f32.mrf.mxu0
        %v4126 = vadd.f32 0.0, %v4125
        %4127 = vdwg.mxu0
        %4128 = vmatpush.msra.mxu0 %v4037
        %4129 = vmatpush.msra.mxu0 %v4033
        %4130 = vmatpush.msra.mxu0 %v4029
        %4131 = vmatpush.msra.mxu0 %v4025
        %4132 = vmatpush.msra.mxu0 %v4021
        %4133 = vmatpush.msra.mxu0 %v4017
        %4134 = vmatpush.msra.mxu0 %v4013
        %4135 = vmatpush.msra.mxu0 %v4009
        %4136 = vmatpush.msra.mxu0 %v4005
        %4137 = vmatpush.msra.mxu0 %v4001
        %4138 = vmatpush.msra.mxu0 %v3997
        %4139 = vmatpush.msra.mxu0 %v3993
        %4140 = vmatpush.msra.mxu0 %v3989
        %4141 = vmatpush.msra.mxu0 %v3985
        %4142 = vmatpush.msra.mxu0 %v3981
        %4143 = vmatpush.msra.mxu0 %v3977
        %4144 = vmatmul.f32.gmra.mxu0 %v516
        %v4145 = vpop.f32.mrf.mxu0
        %v4146 = vadd.f32 0.0, %v4145
        %4147 = vdwg.mxu0
        %v4148 = vmul.f32 %v4086, %v4064
        %v4149 = vmul.f32 %v4106, %v4065
        %v4150 = vmul.f32 %v4126, %v4066
        %v4151 = vmul.f32 %v4146, %v4067
        %v4152 = vsel %vm601, %v4148, 0.0
        %v4153 = vrot.slane %v4152, 4
        %v4154 = vadd.f32 %v4152, %v4153
        %v4155 = vrot.slane %v4154, 2
        %v4156 = vadd.f32 %v4154, %v4155
        %v4157 = vrot.slane %v4156, 1
        %v4158 = vadd.f32 %v4156, %v4157
        %v4159 = vsel %vm601, %v4149, 0.0
        %v4160 = vrot.slane %v4159, 4
        %v4161 = vadd.f32 %v4159, %v4160
        %v4162 = vrot.slane %v4161, 2
        %v4163 = vadd.f32 %v4161, %v4162
        %v4164 = vrot.slane %v4163, 1
        %v4165 = vadd.f32 %v4163, %v4164
        %v4166 = vsel %vm601, %v4150, 0.0
        %v4167 = vrot.slane %v4166, 4
        %v4168 = vadd.f32 %v4166, %v4167
        %v4169 = vrot.slane %v4168, 2
        %v4170 = vadd.f32 %v4168, %v4169
        %v4171 = vrot.slane %v4170, 1
        %v4172 = vadd.f32 %v4170, %v4171
        %v4173 = vsel %vm601, %v4151, 0.0
        %v4174 = vrot.slane %v4173, 4
        %v4175 = vadd.f32 %v4173, %v4174
        %v4176 = vrot.slane %v4175, 2
        %v4177 = vadd.f32 %v4175, %v4176
        %v4178 = vrot.slane %v4177, 1
        %v4179 = vadd.f32 %v4177, %v4178
        %v4180 = vadd.f32 %v3590, %v4158
        %v4181 = vadd.f32 %v3591, %v4165
        %v4182 = vadd.f32 %v3592, %v4172
        %v4183 = vadd.f32 %v3593, %v4179
        %4184 = vmatpush.msra.mxu0 %v4034
        %4185 = vmatpush.msra.mxu0 %v4030
        %4186 = vmatpush.msra.mxu0 %v4026
        %4187 = vmatpush.msra.mxu0 %v4022
        %4188 = vmatpush.msra.mxu0 %v4018
        %4189 = vmatpush.msra.mxu0 %v4014
        %4190 = vmatpush.msra.mxu0 %v4010
        %4191 = vmatpush.msra.mxu0 %v4006
        %4192 = vmatpush.msra.mxu0 %v4002
        %4193 = vmatpush.msra.mxu0 %v3998
        %4194 = vmatpush.msra.mxu0 %v3994
        %4195 = vmatpush.msra.mxu0 %v3990
        %4196 = vmatpush.msra.mxu0 %v3986
        %4197 = vmatpush.msra.mxu0 %v3982
        %4198 = vmatpush.msra.mxu0 %v3978
        %4199 = vmatpush.msra.mxu0 %v3974
        %4200 = vmatmul.f32.gmra.mxu0 %v635
        %v4201 = vpop.f32.mrf.mxu0
        %v4202 = vadd.f32 0.0, %v4201
        %4203 = vdwg.mxu0
        %4204 = vmatpush.msra.mxu0 %v4035
        %4205 = vmatpush.msra.mxu0 %v4031
        %4206 = vmatpush.msra.mxu0 %v4027
        %4207 = vmatpush.msra.mxu0 %v4023
        %4208 = vmatpush.msra.mxu0 %v4019
        %4209 = vmatpush.msra.mxu0 %v4015
        %4210 = vmatpush.msra.mxu0 %v4011
        %4211 = vmatpush.msra.mxu0 %v4007
        %4212 = vmatpush.msra.mxu0 %v4003
        %4213 = vmatpush.msra.mxu0 %v3999
        %4214 = vmatpush.msra.mxu0 %v3995
        %4215 = vmatpush.msra.mxu0 %v3991
        %4216 = vmatpush.msra.mxu0 %v3987
        %4217 = vmatpush.msra.mxu0 %v3983
        %4218 = vmatpush.msra.mxu0 %v3979
        %4219 = vmatpush.msra.mxu0 %v3975
        %4220 = vmatmul.f32.gmra.mxu0 %v635
        %v4221 = vpop.f32.mrf.mxu0
        %v4222 = vadd.f32 0.0, %v4221
        %4223 = vdwg.mxu0
        %4224 = vmatpush.msra.mxu0 %v4036
        %4225 = vmatpush.msra.mxu0 %v4032
        %4226 = vmatpush.msra.mxu0 %v4028
        %4227 = vmatpush.msra.mxu0 %v4024
        %4228 = vmatpush.msra.mxu0 %v4020
        %4229 = vmatpush.msra.mxu0 %v4016
        %4230 = vmatpush.msra.mxu0 %v4012
        %4231 = vmatpush.msra.mxu0 %v4008
        %4232 = vmatpush.msra.mxu0 %v4004
        %4233 = vmatpush.msra.mxu0 %v4000
        %4234 = vmatpush.msra.mxu0 %v3996
        %4235 = vmatpush.msra.mxu0 %v3992
        %4236 = vmatpush.msra.mxu0 %v3988
        %4237 = vmatpush.msra.mxu0 %v3984
        %4238 = vmatpush.msra.mxu0 %v3980
        %4239 = vmatpush.msra.mxu0 %v3976
        %4240 = vmatmul.f32.gmra.mxu0 %v635
        %v4241 = vpop.f32.mrf.mxu0
        %v4242 = vadd.f32 0.0, %v4241
        %4243 = vdwg.mxu0
        %4244 = vmatpush.msra.mxu0 %v4037
        %4245 = vmatpush.msra.mxu0 %v4033
        %4246 = vmatpush.msra.mxu0 %v4029
        %4247 = vmatpush.msra.mxu0 %v4025
        %4248 = vmatpush.msra.mxu0 %v4021
        %4249 = vmatpush.msra.mxu0 %v4017
        %4250 = vmatpush.msra.mxu0 %v4013
        %4251 = vmatpush.msra.mxu0 %v4009
        %4252 = vmatpush.msra.mxu0 %v4005
        %4253 = vmatpush.msra.mxu0 %v4001
        %4254 = vmatpush.msra.mxu0 %v3997
        %4255 = vmatpush.msra.mxu0 %v3993
        %4256 = vmatpush.msra.mxu0 %v3989
        %4257 = vmatpush.msra.mxu0 %v3985
        %4258 = vmatpush.msra.mxu0 %v3981
        %4259 = vmatpush.msra.mxu0 %v3977
        %4260 = vmatmul.f32.gmra.mxu0 %v635
        %v4261 = vpop.f32.mrf.mxu0
        %v4262 = vadd.f32 0.0, %v4261
        %4263 = vdwg.mxu0
        %v4264 = vmul.f32 %v4202, %v4064
        %v4265 = vmul.f32 %v4222, %v4065
        %v4266 = vmul.f32 %v4242, %v4066
        %v4267 = vmul.f32 %v4262, %v4067
        %v4268 = vsel %vm601, %v4264, 0.0
        %v4269 = vrot.slane %v4268, 4
        %v4270 = vadd.f32 %v4268, %v4269
        %v4271 = vrot.slane %v4270, 2
        %v4272 = vadd.f32 %v4270, %v4271
        %v4273 = vrot.slane %v4272, 1
        %v4274 = vadd.f32 %v4272, %v4273
        %v4275 = vsel %vm601, %v4265, 0.0
        %v4276 = vrot.slane %v4275, 4
        %v4277 = vadd.f32 %v4275, %v4276
        %v4278 = vrot.slane %v4277, 2
        %v4279 = vadd.f32 %v4277, %v4278
        %v4280 = vrot.slane %v4279, 1
        %v4281 = vadd.f32 %v4279, %v4280
        %v4282 = vsel %vm601, %v4266, 0.0
        %v4283 = vrot.slane %v4282, 4
        %v4284 = vadd.f32 %v4282, %v4283
        %v4285 = vrot.slane %v4284, 2
        %v4286 = vadd.f32 %v4284, %v4285
        %v4287 = vrot.slane %v4286, 1
        %v4288 = vadd.f32 %v4286, %v4287
        %v4289 = vsel %vm601, %v4267, 0.0
        %v4290 = vrot.slane %v4289, 4
        %v4291 = vadd.f32 %v4289, %v4290
        %v4292 = vrot.slane %v4291, 2
        %v4293 = vadd.f32 %v4291, %v4292
        %v4294 = vrot.slane %v4293, 1
        %v4295 = vadd.f32 %v4293, %v4294
        %v4296 = vadd.f32 %v3706, %v4274
        %v4297 = vadd.f32 %v3707, %v4281
        %v4298 = vadd.f32 %v3708, %v4288
        %v4299 = vadd.f32 %v3709, %v4295
        %4300 = vmatpush.msra.mxu0 %v4034
        %4301 = vmatpush.msra.mxu0 %v4030
        %4302 = vmatpush.msra.mxu0 %v4026
        %4303 = vmatpush.msra.mxu0 %v4022
        %4304 = vmatpush.msra.mxu0 %v4018
        %4305 = vmatpush.msra.mxu0 %v4014
        %4306 = vmatpush.msra.mxu0 %v4010
        %4307 = vmatpush.msra.mxu0 %v4006
        %4308 = vmatpush.msra.mxu0 %v4002
        %4309 = vmatpush.msra.mxu0 %v3998
        %4310 = vmatpush.msra.mxu0 %v3994
        %4311 = vmatpush.msra.mxu0 %v3990
        %4312 = vmatpush.msra.mxu0 %v3986
        %4313 = vmatpush.msra.mxu0 %v3982
        %4314 = vmatpush.msra.mxu0 %v3978
        %4315 = vmatpush.msra.mxu0 %v3974
        %4316 = vmatmul.f32.gmra.mxu0 %v753
        %v4317 = vpop.f32.mrf.mxu0
        %v4318 = vadd.f32 0.0, %v4317
        %4319 = vdwg.mxu0
        %4320 = vmatpush.msra.mxu0 %v4035
        %4321 = vmatpush.msra.mxu0 %v4031
        %4322 = vmatpush.msra.mxu0 %v4027
        %4323 = vmatpush.msra.mxu0 %v4023
        %4324 = vmatpush.msra.mxu0 %v4019
        %4325 = vmatpush.msra.mxu0 %v4015
        %4326 = vmatpush.msra.mxu0 %v4011
        %4327 = vmatpush.msra.mxu0 %v4007
        %4328 = vmatpush.msra.mxu0 %v4003
        %4329 = vmatpush.msra.mxu0 %v3999
        %4330 = vmatpush.msra.mxu0 %v3995
        %4331 = vmatpush.msra.mxu0 %v3991
        %4332 = vmatpush.msra.mxu0 %v3987
        %4333 = vmatpush.msra.mxu0 %v3983
        %4334 = vmatpush.msra.mxu0 %v3979
        %4335 = vmatpush.msra.mxu0 %v3975
        %4336 = vmatmul.f32.gmra.mxu0 %v753
        %v4337 = vpop.f32.mrf.mxu0
        %v4338 = vadd.f32 0.0, %v4337
        %4339 = vdwg.mxu0
        %4340 = vmatpush.msra.mxu0 %v4036
        %4341 = vmatpush.msra.mxu0 %v4032
        %4342 = vmatpush.msra.mxu0 %v4028
        %4343 = vmatpush.msra.mxu0 %v4024
        %4344 = vmatpush.msra.mxu0 %v4020
        %4345 = vmatpush.msra.mxu0 %v4016
        %4346 = vmatpush.msra.mxu0 %v4012
        %4347 = vmatpush.msra.mxu0 %v4008
        %4348 = vmatpush.msra.mxu0 %v4004
        %4349 = vmatpush.msra.mxu0 %v4000
        %4350 = vmatpush.msra.mxu0 %v3996
        %4351 = vmatpush.msra.mxu0 %v3992
        %4352 = vmatpush.msra.mxu0 %v3988
        %4353 = vmatpush.msra.mxu0 %v3984
        %4354 = vmatpush.msra.mxu0 %v3980
        %4355 = vmatpush.msra.mxu0 %v3976
        %4356 = vmatmul.f32.gmra.mxu0 %v753
        %v4357 = vpop.f32.mrf.mxu0
        %v4358 = vadd.f32 0.0, %v4357
        %4359 = vdwg.mxu0
        %4360 = vmatpush.msra.mxu0 %v4037
        %4361 = vmatpush.msra.mxu0 %v4033
        %4362 = vmatpush.msra.mxu0 %v4029
        %4363 = vmatpush.msra.mxu0 %v4025
        %4364 = vmatpush.msra.mxu0 %v4021
        %4365 = vmatpush.msra.mxu0 %v4017
        %4366 = vmatpush.msra.mxu0 %v4013
        %4367 = vmatpush.msra.mxu0 %v4009
        %4368 = vmatpush.msra.mxu0 %v4005
        %4369 = vmatpush.msra.mxu0 %v4001
        %4370 = vmatpush.msra.mxu0 %v3997
        %4371 = vmatpush.msra.mxu0 %v3993
        %4372 = vmatpush.msra.mxu0 %v3989
        %4373 = vmatpush.msra.mxu0 %v3985
        %4374 = vmatpush.msra.mxu0 %v3981
        %4375 = vmatpush.msra.mxu0 %v3977
        %4376 = vmatmul.f32.gmra.mxu0 %v753
        %v4377 = vpop.f32.mrf.mxu0
        %v4378 = vadd.f32 0.0, %v4377
        %4379 = vdwg.mxu0
        %v4380 = vmul.f32 %v4318, %v4064
        %v4381 = vmul.f32 %v4338, %v4065
        %v4382 = vmul.f32 %v4358, %v4066
        %v4383 = vmul.f32 %v4378, %v4067
        %v4384 = vsel %vm601, %v4380, 0.0
        %v4385 = vrot.slane %v4384, 4
        %v4386 = vadd.f32 %v4384, %v4385
        %v4387 = vrot.slane %v4386, 2
        %v4388 = vadd.f32 %v4386, %v4387
        %v4389 = vrot.slane %v4388, 1
        %v4390 = vadd.f32 %v4388, %v4389
        %v4391 = vsel %vm601, %v4381, 0.0
        %v4392 = vrot.slane %v4391, 4
        %v4393 = vadd.f32 %v4391, %v4392
        %v4394 = vrot.slane %v4393, 2
        %v4395 = vadd.f32 %v4393, %v4394
        %v4396 = vrot.slane %v4395, 1
        %v4397 = vadd.f32 %v4395, %v4396
        %v4398 = vsel %vm601, %v4382, 0.0
        %v4399 = vrot.slane %v4398, 4
        %v4400 = vadd.f32 %v4398, %v4399
        %v4401 = vrot.slane %v4400, 2
        %v4402 = vadd.f32 %v4400, %v4401
        %v4403 = vrot.slane %v4402, 1
        %v4404 = vadd.f32 %v4402, %v4403
        %v4405 = vsel %vm601, %v4383, 0.0
        %v4406 = vrot.slane %v4405, 4
        %v4407 = vadd.f32 %v4405, %v4406
        %v4408 = vrot.slane %v4407, 2
        %v4409 = vadd.f32 %v4407, %v4408
        %v4410 = vrot.slane %v4409, 1
        %v4411 = vadd.f32 %v4409, %v4410
        %v4412 = vadd.f32 %v3822, %v4390
        %v4413 = vadd.f32 %v3823, %v4397
        %v4414 = vadd.f32 %v3824, %v4404
        %v4415 = vadd.f32 %v3825, %v4411
        %v4416 = vadd.s32 %v3826, %v870
        %v4417 = vadd.s32 %v3827, %v871
        %v4418 = vmul.f32 %v3830, %v876
        %v4419 = vmul.f32 %v3831, %v877
        %v4420 = vand.u32 %v4416, 127
        %v4421 = vand.u32 %v4417, 127
        %v4422 = vshra.s32 %v4416, 7
        %v4423 = vshra.s32 %v4417, 7
        %v4424 = vperm.slane %v4420, 2
        %v4425 = vperm.slane %v4420, 6
        %v4426 = vperm.slane %v4421, 2
        %v4427 = vperm.slane %v4421, 6
        %v4428 = vperm.slane %v4424, 2
        %v4429 = vperm.slane %v4425, 2
        %v4430 = vperm.slane %v4426, 2
        %v4431 = vperm.slane %v4427, 2
        %vm4432 = vcmp.eq.s32.totalorder %v151, %v4428
        %vm4433 = vcmp.eq.s32.totalorder %v151, %v4429
        %vm4434 = vcmp.eq.s32.totalorder %v151, %v4430
        %vm4435 = vcmp.eq.s32.totalorder %v151, %v4431
        %vm4436 = vcmp.eq.s32.totalorder %v152, %v4428
        %vm4437 = vcmp.eq.s32.totalorder %v152, %v4429
        %vm4438 = vcmp.eq.s32.totalorder %v152, %v4430
        %vm4439 = vcmp.eq.s32.totalorder %v152, %v4431
        %vm4440 = vcmp.eq.s32.totalorder %v153, %v4428
        %vm4441 = vcmp.eq.s32.totalorder %v153, %v4429
        %vm4442 = vcmp.eq.s32.totalorder %v153, %v4430
        %vm4443 = vcmp.eq.s32.totalorder %v153, %v4431
        %vm4444 = vcmp.eq.s32.totalorder %v154, %v4428
        %vm4445 = vcmp.eq.s32.totalorder %v154, %v4429
        %vm4446 = vcmp.eq.s32.totalorder %v154, %v4430
        %vm4447 = vcmp.eq.s32.totalorder %v154, %v4431
        %vm4448 = vcmp.eq.s32.totalorder %v155, %v4428
        %vm4449 = vcmp.eq.s32.totalorder %v155, %v4429
        %vm4450 = vcmp.eq.s32.totalorder %v155, %v4430
        %vm4451 = vcmp.eq.s32.totalorder %v155, %v4431
        %vm4452 = vcmp.eq.s32.totalorder %v156, %v4428
        %vm4453 = vcmp.eq.s32.totalorder %v156, %v4429
        %vm4454 = vcmp.eq.s32.totalorder %v156, %v4430
        %vm4455 = vcmp.eq.s32.totalorder %v156, %v4431
        %vm4456 = vcmp.eq.s32.totalorder %v157, %v4428
        %vm4457 = vcmp.eq.s32.totalorder %v157, %v4429
        %vm4458 = vcmp.eq.s32.totalorder %v157, %v4430
        %vm4459 = vcmp.eq.s32.totalorder %v157, %v4431
        %vm4460 = vcmp.eq.s32.totalorder %v158, %v4428
        %vm4461 = vcmp.eq.s32.totalorder %v158, %v4429
        %vm4462 = vcmp.eq.s32.totalorder %v158, %v4430
        %vm4463 = vcmp.eq.s32.totalorder %v158, %v4431
        %vm4464 = vcmp.eq.s32.totalorder %v159, %v4428
        %vm4465 = vcmp.eq.s32.totalorder %v159, %v4429
        %vm4466 = vcmp.eq.s32.totalorder %v159, %v4430
        %vm4467 = vcmp.eq.s32.totalorder %v159, %v4431
        %vm4468 = vcmp.eq.s32.totalorder %v160, %v4428
        %vm4469 = vcmp.eq.s32.totalorder %v160, %v4429
        %vm4470 = vcmp.eq.s32.totalorder %v160, %v4430
        %vm4471 = vcmp.eq.s32.totalorder %v160, %v4431
        %vm4472 = vcmp.eq.s32.totalorder %v161, %v4428
        %vm4473 = vcmp.eq.s32.totalorder %v161, %v4429
        %vm4474 = vcmp.eq.s32.totalorder %v161, %v4430
        %vm4475 = vcmp.eq.s32.totalorder %v161, %v4431
        %vm4476 = vcmp.eq.s32.totalorder %v162, %v4428
        %vm4477 = vcmp.eq.s32.totalorder %v162, %v4429
        %vm4478 = vcmp.eq.s32.totalorder %v162, %v4430
        %vm4479 = vcmp.eq.s32.totalorder %v162, %v4431
        %vm4480 = vcmp.eq.s32.totalorder %v163, %v4428
        %vm4481 = vcmp.eq.s32.totalorder %v163, %v4429
        %vm4482 = vcmp.eq.s32.totalorder %v163, %v4430
        %vm4483 = vcmp.eq.s32.totalorder %v163, %v4431
        %vm4484 = vcmp.eq.s32.totalorder %v164, %v4428
        %vm4485 = vcmp.eq.s32.totalorder %v164, %v4429
        %vm4486 = vcmp.eq.s32.totalorder %v164, %v4430
        %vm4487 = vcmp.eq.s32.totalorder %v164, %v4431
        %vm4488 = vcmp.eq.s32.totalorder %v165, %v4428
        %vm4489 = vcmp.eq.s32.totalorder %v165, %v4429
        %vm4490 = vcmp.eq.s32.totalorder %v165, %v4430
        %vm4491 = vcmp.eq.s32.totalorder %v165, %v4431
        %vm4492 = vcmp.eq.s32.totalorder %v166, %v4428
        %vm4493 = vcmp.eq.s32.totalorder %v166, %v4429
        %vm4494 = vcmp.eq.s32.totalorder %v166, %v4430
        %vm4495 = vcmp.eq.s32.totalorder %v166, %v4431
        %v4496 = vsel %vm4432, 1, 0
        %v4497 = vsel %vm4433, 1, 0
        %v4498 = vsel %vm4434, 1, 0
        %v4499 = vsel %vm4435, 1, 0
        %v4500 = vsel %vm4436, 1, 0
        %v4501 = vsel %vm4437, 1, 0
        %v4502 = vsel %vm4438, 1, 0
        %v4503 = vsel %vm4439, 1, 0
        %v4504 = vsel %vm4440, 1, 0
        %v4505 = vsel %vm4441, 1, 0
        %v4506 = vsel %vm4442, 1, 0
        %v4507 = vsel %vm4443, 1, 0
        %v4508 = vsel %vm4444, 1, 0
        %v4509 = vsel %vm4445, 1, 0
        %v4510 = vsel %vm4446, 1, 0
        %v4511 = vsel %vm4447, 1, 0
        %v4512 = vsel %vm4448, 1, 0
        %v4513 = vsel %vm4449, 1, 0
        %v4514 = vsel %vm4450, 1, 0
        %v4515 = vsel %vm4451, 1, 0
        %v4516 = vsel %vm4452, 1, 0
        %v4517 = vsel %vm4453, 1, 0
        %v4518 = vsel %vm4454, 1, 0
        %v4519 = vsel %vm4455, 1, 0
        %v4520 = vsel %vm4456, 1, 0
        %v4521 = vsel %vm4457, 1, 0
        %v4522 = vsel %vm4458, 1, 0
        %v4523 = vsel %vm4459, 1, 0
        %v4524 = vsel %vm4460, 1, 0
        %v4525 = vsel %vm4461, 1, 0
        %v4526 = vsel %vm4462, 1, 0
        %v4527 = vsel %vm4463, 1, 0
        %v4528 = vsel %vm4464, 1, 0
        %v4529 = vsel %vm4465, 1, 0
        %v4530 = vsel %vm4466, 1, 0
        %v4531 = vsel %vm4467, 1, 0
        %v4532 = vsel %vm4468, 1, 0
        %v4533 = vsel %vm4469, 1, 0
        %v4534 = vsel %vm4470, 1, 0
        %v4535 = vsel %vm4471, 1, 0
        %v4536 = vsel %vm4472, 1, 0
        %v4537 = vsel %vm4473, 1, 0
        %v4538 = vsel %vm4474, 1, 0
        %v4539 = vsel %vm4475, 1, 0
        %v4540 = vsel %vm4476, 1, 0
        %v4541 = vsel %vm4477, 1, 0
        %v4542 = vsel %vm4478, 1, 0
        %v4543 = vsel %vm4479, 1, 0
        %v4544 = vsel %vm4480, 1, 0
        %v4545 = vsel %vm4481, 1, 0
        %v4546 = vsel %vm4482, 1, 0
        %v4547 = vsel %vm4483, 1, 0
        %v4548 = vsel %vm4484, 1, 0
        %v4549 = vsel %vm4485, 1, 0
        %v4550 = vsel %vm4486, 1, 0
        %v4551 = vsel %vm4487, 1, 0
        %v4552 = vsel %vm4488, 1, 0
        %v4553 = vsel %vm4489, 1, 0
        %v4554 = vsel %vm4490, 1, 0
        %v4555 = vsel %vm4491, 1, 0
        %v4556 = vsel %vm4492, 1, 0
        %v4557 = vsel %vm4493, 1, 0
        %v4558 = vsel %vm4494, 1, 0
        %v4559 = vsel %vm4495, 1, 0
        %v4560 = vcvt.s32.f32 %v4496
        %v4561 = vcvt.s32.f32 %v4497
        %v4562 = vcvt.s32.f32 %v4498
        %v4563 = vcvt.s32.f32 %v4499
        %v4564 = vcvt.s32.f32 %v4500
        %v4565 = vcvt.s32.f32 %v4501
        %v4566 = vcvt.s32.f32 %v4502
        %v4567 = vcvt.s32.f32 %v4503
        %v4568 = vcvt.s32.f32 %v4504
        %v4569 = vcvt.s32.f32 %v4505
        %v4570 = vcvt.s32.f32 %v4506
        %v4571 = vcvt.s32.f32 %v4507
        %v4572 = vcvt.s32.f32 %v4508
        %v4573 = vcvt.s32.f32 %v4509
        %v4574 = vcvt.s32.f32 %v4510
        %v4575 = vcvt.s32.f32 %v4511
        %v4576 = vcvt.s32.f32 %v4512
        %v4577 = vcvt.s32.f32 %v4513
        %v4578 = vcvt.s32.f32 %v4514
        %v4579 = vcvt.s32.f32 %v4515
        %v4580 = vcvt.s32.f32 %v4516
        %v4581 = vcvt.s32.f32 %v4517
        %v4582 = vcvt.s32.f32 %v4518
        %v4583 = vcvt.s32.f32 %v4519
        %v4584 = vcvt.s32.f32 %v4520
        %v4585 = vcvt.s32.f32 %v4521
        %v4586 = vcvt.s32.f32 %v4522
        %v4587 = vcvt.s32.f32 %v4523
        %v4588 = vcvt.s32.f32 %v4524
        %v4589 = vcvt.s32.f32 %v4525
        %v4590 = vcvt.s32.f32 %v4526
        %v4591 = vcvt.s32.f32 %v4527
        %v4592 = vcvt.s32.f32 %v4528
        %v4593 = vcvt.s32.f32 %v4529
        %v4594 = vcvt.s32.f32 %v4530
        %v4595 = vcvt.s32.f32 %v4531
        %v4596 = vcvt.s32.f32 %v4532
        %v4597 = vcvt.s32.f32 %v4533
        %v4598 = vcvt.s32.f32 %v4534
        %v4599 = vcvt.s32.f32 %v4535
        %v4600 = vcvt.s32.f32 %v4536
        %v4601 = vcvt.s32.f32 %v4537
        %v4602 = vcvt.s32.f32 %v4538
        %v4603 = vcvt.s32.f32 %v4539
        %v4604 = vcvt.s32.f32 %v4540
        %v4605 = vcvt.s32.f32 %v4541
        %v4606 = vcvt.s32.f32 %v4542
        %v4607 = vcvt.s32.f32 %v4543
        %v4608 = vcvt.s32.f32 %v4544
        %v4609 = vcvt.s32.f32 %v4545
        %v4610 = vcvt.s32.f32 %v4546
        %v4611 = vcvt.s32.f32 %v4547
        %v4612 = vcvt.s32.f32 %v4548
        %v4613 = vcvt.s32.f32 %v4549
        %v4614 = vcvt.s32.f32 %v4550
        %v4615 = vcvt.s32.f32 %v4551
        %v4616 = vcvt.s32.f32 %v4552
        %v4617 = vcvt.s32.f32 %v4553
        %v4618 = vcvt.s32.f32 %v4554
        %v4619 = vcvt.s32.f32 %v4555
        %v4620 = vcvt.s32.f32 %v4556
        %v4621 = vcvt.s32.f32 %v4557
        %v4622 = vcvt.s32.f32 %v4558
        %v4623 = vcvt.s32.f32 %v4559
        %v4624 = vperm.slane %v4422, 2
        %v4625 = vperm.slane %v4422, 6
        %v4626 = vperm.slane %v4423, 2
        %v4627 = vperm.slane %v4423, 6
        %v4628 = vperm.slane %v4624, 2
        %v4629 = vperm.slane %v4625, 2
        %v4630 = vperm.slane %v4626, 2
        %v4631 = vperm.slane %v4627, 2
        %vm4632 = vcmp.eq.s32.totalorder %v151, %v4628
        %vm4633 = vcmp.eq.s32.totalorder %v151, %v4629
        %vm4634 = vcmp.eq.s32.totalorder %v151, %v4630
        %vm4635 = vcmp.eq.s32.totalorder %v151, %v4631
        %v4638 = vperm.slane %v4418, 2
        %v4639 = vperm.slane %v4418, 6
        %v4640 = vperm.slane %v4419, 2
        %v4641 = vperm.slane %v4419, 6
        %v4646 = vperm.slane %v4638, 2
        %v4647 = vperm.slane %v4639, 2
        %v4648 = vperm.slane %v4640, 2
        %v4649 = vperm.slane %v4641, 2
        %v4650 = vsel %vm4632, %v4646, 0.0
        %v4651 = vsel %vm4633, %v4647, 0.0
        %v4652 = vsel %vm4634, %v4648, 0.0
        %v4653 = vsel %vm4635, %v4649, 0.0
        %4654 = vmatpush.msra.mxu0 %v4620
        %4655 = vmatpush.msra.mxu0 %v4616
        %4656 = vmatpush.msra.mxu0 %v4612
        %4657 = vmatpush.msra.mxu0 %v4608
        %4658 = vmatpush.msra.mxu0 %v4604
        %4659 = vmatpush.msra.mxu0 %v4600
        %4660 = vmatpush.msra.mxu0 %v4596
        %4661 = vmatpush.msra.mxu0 %v4592
        %4662 = vmatpush.msra.mxu0 %v4588
        %4663 = vmatpush.msra.mxu0 %v4584
        %4664 = vmatpush.msra.mxu0 %v4580
        %4665 = vmatpush.msra.mxu0 %v4576
        %4666 = vmatpush.msra.mxu0 %v4572
        %4667 = vmatpush.msra.mxu0 %v4568
        %4668 = vmatpush.msra.mxu0 %v4564
        %4669 = vmatpush.msra.mxu0 %v4560
        %4670 = vmatmul.f32.gmra.mxu0 %v516
        %v4671 = vpop.f32.mrf.mxu0
        %v4672 = vadd.f32 0.0, %v4671
        %4673 = vdwg.mxu0
        %4674 = vmatpush.msra.mxu0 %v4621
        %4675 = vmatpush.msra.mxu0 %v4617
        %4676 = vmatpush.msra.mxu0 %v4613
        %4677 = vmatpush.msra.mxu0 %v4609
        %4678 = vmatpush.msra.mxu0 %v4605
        %4679 = vmatpush.msra.mxu0 %v4601
        %4680 = vmatpush.msra.mxu0 %v4597
        %4681 = vmatpush.msra.mxu0 %v4593
        %4682 = vmatpush.msra.mxu0 %v4589
        %4683 = vmatpush.msra.mxu0 %v4585
        %4684 = vmatpush.msra.mxu0 %v4581
        %4685 = vmatpush.msra.mxu0 %v4577
        %4686 = vmatpush.msra.mxu0 %v4573
        %4687 = vmatpush.msra.mxu0 %v4569
        %4688 = vmatpush.msra.mxu0 %v4565
        %4689 = vmatpush.msra.mxu0 %v4561
        %4690 = vmatmul.f32.gmra.mxu0 %v516
        %v4691 = vpop.f32.mrf.mxu0
        %v4692 = vadd.f32 0.0, %v4691
        %4693 = vdwg.mxu0
        %4694 = vmatpush.msra.mxu0 %v4622
        %4695 = vmatpush.msra.mxu0 %v4618
        %4696 = vmatpush.msra.mxu0 %v4614
        %4697 = vmatpush.msra.mxu0 %v4610
        %4698 = vmatpush.msra.mxu0 %v4606
        %4699 = vmatpush.msra.mxu0 %v4602
        %4700 = vmatpush.msra.mxu0 %v4598
        %4701 = vmatpush.msra.mxu0 %v4594
        %4702 = vmatpush.msra.mxu0 %v4590
        %4703 = vmatpush.msra.mxu0 %v4586
        %4704 = vmatpush.msra.mxu0 %v4582
        %4705 = vmatpush.msra.mxu0 %v4578
        %4706 = vmatpush.msra.mxu0 %v4574
        %4707 = vmatpush.msra.mxu0 %v4570
        %4708 = vmatpush.msra.mxu0 %v4566
        %4709 = vmatpush.msra.mxu0 %v4562
        %4710 = vmatmul.f32.gmra.mxu0 %v516
        %v4711 = vpop.f32.mrf.mxu0
        %v4712 = vadd.f32 0.0, %v4711
        %4713 = vdwg.mxu0
        %4714 = vmatpush.msra.mxu0 %v4623
        %4715 = vmatpush.msra.mxu0 %v4619
        %4716 = vmatpush.msra.mxu0 %v4615
        %4717 = vmatpush.msra.mxu0 %v4611
        %4718 = vmatpush.msra.mxu0 %v4607
        %4719 = vmatpush.msra.mxu0 %v4603
        %4720 = vmatpush.msra.mxu0 %v4599
        %4721 = vmatpush.msra.mxu0 %v4595
        %4722 = vmatpush.msra.mxu0 %v4591
        %4723 = vmatpush.msra.mxu0 %v4587
        %4724 = vmatpush.msra.mxu0 %v4583
        %4725 = vmatpush.msra.mxu0 %v4579
        %4726 = vmatpush.msra.mxu0 %v4575
        %4727 = vmatpush.msra.mxu0 %v4571
        %4728 = vmatpush.msra.mxu0 %v4567
        %4729 = vmatpush.msra.mxu0 %v4563
        %4730 = vmatmul.f32.gmra.mxu0 %v516
        %v4731 = vpop.f32.mrf.mxu0
        %v4732 = vadd.f32 0.0, %v4731
        %4733 = vdwg.mxu0
        %v4734 = vmul.f32 %v4672, %v4650
        %v4735 = vmul.f32 %v4692, %v4651
        %v4736 = vmul.f32 %v4712, %v4652
        %v4737 = vmul.f32 %v4732, %v4653
        %v4738 = vsel %vm601, %v4734, 0.0
        %v4739 = vrot.slane %v4738, 4
        %v4740 = vadd.f32 %v4738, %v4739
        %v4741 = vrot.slane %v4740, 2
        %v4742 = vadd.f32 %v4740, %v4741
        %v4743 = vrot.slane %v4742, 1
        %v4744 = vadd.f32 %v4742, %v4743
        %v4745 = vsel %vm601, %v4735, 0.0
        %v4746 = vrot.slane %v4745, 4
        %v4747 = vadd.f32 %v4745, %v4746
        %v4748 = vrot.slane %v4747, 2
        %v4749 = vadd.f32 %v4747, %v4748
        %v4750 = vrot.slane %v4749, 1
        %v4751 = vadd.f32 %v4749, %v4750
        %v4752 = vsel %vm601, %v4736, 0.0
        %v4753 = vrot.slane %v4752, 4
        %v4754 = vadd.f32 %v4752, %v4753
        %v4755 = vrot.slane %v4754, 2
        %v4756 = vadd.f32 %v4754, %v4755
        %v4757 = vrot.slane %v4756, 1
        %v4758 = vadd.f32 %v4756, %v4757
        %v4759 = vsel %vm601, %v4737, 0.0
        %v4760 = vrot.slane %v4759, 4
        %v4761 = vadd.f32 %v4759, %v4760
        %v4762 = vrot.slane %v4761, 2
        %v4763 = vadd.f32 %v4761, %v4762
        %v4764 = vrot.slane %v4763, 1
        %v4765 = vadd.f32 %v4763, %v4764
        %v4766 = vadd.f32 %v4180, %v4744
        %v4767 = vadd.f32 %v4181, %v4751
        %v4768 = vadd.f32 %v4182, %v4758
        %v4769 = vadd.f32 %v4183, %v4765
        %4770 = vmatpush.msra.mxu0 %v4620
        %4771 = vmatpush.msra.mxu0 %v4616
        %4772 = vmatpush.msra.mxu0 %v4612
        %4773 = vmatpush.msra.mxu0 %v4608
        %4774 = vmatpush.msra.mxu0 %v4604
        %4775 = vmatpush.msra.mxu0 %v4600
        %4776 = vmatpush.msra.mxu0 %v4596
        %4777 = vmatpush.msra.mxu0 %v4592
        %4778 = vmatpush.msra.mxu0 %v4588
        %4779 = vmatpush.msra.mxu0 %v4584
        %4780 = vmatpush.msra.mxu0 %v4580
        %4781 = vmatpush.msra.mxu0 %v4576
        %4782 = vmatpush.msra.mxu0 %v4572
        %4783 = vmatpush.msra.mxu0 %v4568
        %4784 = vmatpush.msra.mxu0 %v4564
        %4785 = vmatpush.msra.mxu0 %v4560
        %4786 = vmatmul.f32.gmra.mxu0 %v635
        %v4787 = vpop.f32.mrf.mxu0
        %v4788 = vadd.f32 0.0, %v4787
        %4789 = vdwg.mxu0
        %4790 = vmatpush.msra.mxu0 %v4621
        %4791 = vmatpush.msra.mxu0 %v4617
        %4792 = vmatpush.msra.mxu0 %v4613
        %4793 = vmatpush.msra.mxu0 %v4609
        %4794 = vmatpush.msra.mxu0 %v4605
        %4795 = vmatpush.msra.mxu0 %v4601
        %4796 = vmatpush.msra.mxu0 %v4597
        %4797 = vmatpush.msra.mxu0 %v4593
        %4798 = vmatpush.msra.mxu0 %v4589
        %4799 = vmatpush.msra.mxu0 %v4585
        %4800 = vmatpush.msra.mxu0 %v4581
        %4801 = vmatpush.msra.mxu0 %v4577
        %4802 = vmatpush.msra.mxu0 %v4573
        %4803 = vmatpush.msra.mxu0 %v4569
        %4804 = vmatpush.msra.mxu0 %v4565
        %4805 = vmatpush.msra.mxu0 %v4561
        %4806 = vmatmul.f32.gmra.mxu0 %v635
        %v4807 = vpop.f32.mrf.mxu0
        %v4808 = vadd.f32 0.0, %v4807
        %4809 = vdwg.mxu0
        %4810 = vmatpush.msra.mxu0 %v4622
        %4811 = vmatpush.msra.mxu0 %v4618
        %4812 = vmatpush.msra.mxu0 %v4614
        %4813 = vmatpush.msra.mxu0 %v4610
        %4814 = vmatpush.msra.mxu0 %v4606
        %4815 = vmatpush.msra.mxu0 %v4602
        %4816 = vmatpush.msra.mxu0 %v4598
        %4817 = vmatpush.msra.mxu0 %v4594
        %4818 = vmatpush.msra.mxu0 %v4590
        %4819 = vmatpush.msra.mxu0 %v4586
        %4820 = vmatpush.msra.mxu0 %v4582
        %4821 = vmatpush.msra.mxu0 %v4578
        %4822 = vmatpush.msra.mxu0 %v4574
        %4823 = vmatpush.msra.mxu0 %v4570
        %4824 = vmatpush.msra.mxu0 %v4566
        %4825 = vmatpush.msra.mxu0 %v4562
        %4826 = vmatmul.f32.gmra.mxu0 %v635
        %v4827 = vpop.f32.mrf.mxu0
        %v4828 = vadd.f32 0.0, %v4827
        %4829 = vdwg.mxu0
        %4830 = vmatpush.msra.mxu0 %v4623
        %4831 = vmatpush.msra.mxu0 %v4619
        %4832 = vmatpush.msra.mxu0 %v4615
        %4833 = vmatpush.msra.mxu0 %v4611
        %4834 = vmatpush.msra.mxu0 %v4607
        %4835 = vmatpush.msra.mxu0 %v4603
        %4836 = vmatpush.msra.mxu0 %v4599
        %4837 = vmatpush.msra.mxu0 %v4595
        %4838 = vmatpush.msra.mxu0 %v4591
        %4839 = vmatpush.msra.mxu0 %v4587
        %4840 = vmatpush.msra.mxu0 %v4583
        %4841 = vmatpush.msra.mxu0 %v4579
        %4842 = vmatpush.msra.mxu0 %v4575
        %4843 = vmatpush.msra.mxu0 %v4571
        %4844 = vmatpush.msra.mxu0 %v4567
        %4845 = vmatpush.msra.mxu0 %v4563
        %4846 = vmatmul.f32.gmra.mxu0 %v635
        %v4847 = vpop.f32.mrf.mxu0
        %v4848 = vadd.f32 0.0, %v4847
        %4849 = vdwg.mxu0
        %v4850 = vmul.f32 %v4788, %v4650
        %v4851 = vmul.f32 %v4808, %v4651
        %v4852 = vmul.f32 %v4828, %v4652
        %v4853 = vmul.f32 %v4848, %v4653
        %v4854 = vsel %vm601, %v4850, 0.0
        %v4855 = vrot.slane %v4854, 4
        %v4856 = vadd.f32 %v4854, %v4855
        %v4857 = vrot.slane %v4856, 2
        %v4858 = vadd.f32 %v4856, %v4857
        %v4859 = vrot.slane %v4858, 1
        %v4860 = vadd.f32 %v4858, %v4859
        %v4861 = vsel %vm601, %v4851, 0.0
        %v4862 = vrot.slane %v4861, 4
        %v4863 = vadd.f32 %v4861, %v4862
        %v4864 = vrot.slane %v4863, 2
        %v4865 = vadd.f32 %v4863, %v4864
        %v4866 = vrot.slane %v4865, 1
        %v4867 = vadd.f32 %v4865, %v4866
        %v4868 = vsel %vm601, %v4852, 0.0
        %v4869 = vrot.slane %v4868, 4
        %v4870 = vadd.f32 %v4868, %v4869
        %v4871 = vrot.slane %v4870, 2
        %v4872 = vadd.f32 %v4870, %v4871
        %v4873 = vrot.slane %v4872, 1
        %v4874 = vadd.f32 %v4872, %v4873
        %v4875 = vsel %vm601, %v4853, 0.0
        %v4876 = vrot.slane %v4875, 4
        %v4877 = vadd.f32 %v4875, %v4876
        %v4878 = vrot.slane %v4877, 2
        %v4879 = vadd.f32 %v4877, %v4878
        %v4880 = vrot.slane %v4879, 1
        %v4881 = vadd.f32 %v4879, %v4880
        %v4882 = vadd.f32 %v4296, %v4860
        %v4883 = vadd.f32 %v4297, %v4867
        %v4884 = vadd.f32 %v4298, %v4874
        %v4885 = vadd.f32 %v4299, %v4881
        %4886 = vmatpush.msra.mxu0 %v4620
        %4887 = vmatpush.msra.mxu0 %v4616
        %4888 = vmatpush.msra.mxu0 %v4612
        %4889 = vmatpush.msra.mxu0 %v4608
        %4890 = vmatpush.msra.mxu0 %v4604
        %4891 = vmatpush.msra.mxu0 %v4600
        %4892 = vmatpush.msra.mxu0 %v4596
        %4893 = vmatpush.msra.mxu0 %v4592
        %4894 = vmatpush.msra.mxu0 %v4588
        %4895 = vmatpush.msra.mxu0 %v4584
        %4896 = vmatpush.msra.mxu0 %v4580
        %4897 = vmatpush.msra.mxu0 %v4576
        %4898 = vmatpush.msra.mxu0 %v4572
        %4899 = vmatpush.msra.mxu0 %v4568
        %4900 = vmatpush.msra.mxu0 %v4564
        %4901 = vmatpush.msra.mxu0 %v4560
        %4902 = vmatmul.f32.gmra.mxu0 %v753
        %v4903 = vpop.f32.mrf.mxu0
        %v4904 = vadd.f32 0.0, %v4903
        %4905 = vdwg.mxu0
        %4906 = vmatpush.msra.mxu0 %v4621
        %4907 = vmatpush.msra.mxu0 %v4617
        %4908 = vmatpush.msra.mxu0 %v4613
        %4909 = vmatpush.msra.mxu0 %v4609
        %4910 = vmatpush.msra.mxu0 %v4605
        %4911 = vmatpush.msra.mxu0 %v4601
        %4912 = vmatpush.msra.mxu0 %v4597
        %4913 = vmatpush.msra.mxu0 %v4593
        %4914 = vmatpush.msra.mxu0 %v4589
        %4915 = vmatpush.msra.mxu0 %v4585
        %4916 = vmatpush.msra.mxu0 %v4581
        %4917 = vmatpush.msra.mxu0 %v4577
        %4918 = vmatpush.msra.mxu0 %v4573
        %4919 = vmatpush.msra.mxu0 %v4569
        %4920 = vmatpush.msra.mxu0 %v4565
        %4921 = vmatpush.msra.mxu0 %v4561
        %4922 = vmatmul.f32.gmra.mxu0 %v753
        %v4923 = vpop.f32.mrf.mxu0
        %v4924 = vadd.f32 0.0, %v4923
        %4925 = vdwg.mxu0
        %4926 = vmatpush.msra.mxu0 %v4622
        %4927 = vmatpush.msra.mxu0 %v4618
        %4928 = vmatpush.msra.mxu0 %v4614
        %4929 = vmatpush.msra.mxu0 %v4610
        %4930 = vmatpush.msra.mxu0 %v4606
        %4931 = vmatpush.msra.mxu0 %v4602
        %4932 = vmatpush.msra.mxu0 %v4598
        %4933 = vmatpush.msra.mxu0 %v4594
        %4934 = vmatpush.msra.mxu0 %v4590
        %4935 = vmatpush.msra.mxu0 %v4586
        %4936 = vmatpush.msra.mxu0 %v4582
        %4937 = vmatpush.msra.mxu0 %v4578
        %4938 = vmatpush.msra.mxu0 %v4574
        %4939 = vmatpush.msra.mxu0 %v4570
        %4940 = vmatpush.msra.mxu0 %v4566
        %4941 = vmatpush.msra.mxu0 %v4562
        %4942 = vmatmul.f32.gmra.mxu0 %v753
        %v4943 = vpop.f32.mrf.mxu0
        %v4944 = vadd.f32 0.0, %v4943
        %4945 = vdwg.mxu0
        %4946 = vmatpush.msra.mxu0 %v4623
        %4947 = vmatpush.msra.mxu0 %v4619
        %4948 = vmatpush.msra.mxu0 %v4615
        %4949 = vmatpush.msra.mxu0 %v4611
        %4950 = vmatpush.msra.mxu0 %v4607
        %4951 = vmatpush.msra.mxu0 %v4603
        %4952 = vmatpush.msra.mxu0 %v4599
        %4953 = vmatpush.msra.mxu0 %v4595
        %4954 = vmatpush.msra.mxu0 %v4591
        %4955 = vmatpush.msra.mxu0 %v4587
        %4956 = vmatpush.msra.mxu0 %v4583
        %4957 = vmatpush.msra.mxu0 %v4579
        %4958 = vmatpush.msra.mxu0 %v4575
        %4959 = vmatpush.msra.mxu0 %v4571
        %4960 = vmatpush.msra.mxu0 %v4567
        %4961 = vmatpush.msra.mxu0 %v4563
        %4962 = vmatmul.f32.gmra.mxu0 %v753
        %v4963 = vpop.f32.mrf.mxu0
        %v4964 = vadd.f32 0.0, %v4963
        %4965 = vdwg.mxu0
        %v4966 = vmul.f32 %v4904, %v4650
        %v4967 = vmul.f32 %v4924, %v4651
        %v4968 = vmul.f32 %v4944, %v4652
        %v4969 = vmul.f32 %v4964, %v4653
        %v4970 = vsel %vm601, %v4966, 0.0
        %v4971 = vrot.slane %v4970, 4
        %v4972 = vadd.f32 %v4970, %v4971
        %v4973 = vrot.slane %v4972, 2
        %v4974 = vadd.f32 %v4972, %v4973
        %v4975 = vrot.slane %v4974, 1
        %v4976 = vadd.f32 %v4974, %v4975
        %v4977 = vsel %vm601, %v4967, 0.0
        %v4978 = vrot.slane %v4977, 4
        %v4979 = vadd.f32 %v4977, %v4978
        %v4980 = vrot.slane %v4979, 2
        %v4981 = vadd.f32 %v4979, %v4980
        %v4982 = vrot.slane %v4981, 1
        %v4983 = vadd.f32 %v4981, %v4982
        %v4984 = vsel %vm601, %v4968, 0.0
        %v4985 = vrot.slane %v4984, 4
        %v4986 = vadd.f32 %v4984, %v4985
        %v4987 = vrot.slane %v4986, 2
        %v4988 = vadd.f32 %v4986, %v4987
        %v4989 = vrot.slane %v4988, 1
        %v4990 = vadd.f32 %v4988, %v4989
        %v4991 = vsel %vm601, %v4969, 0.0
        %v4992 = vrot.slane %v4991, 4
        %v4993 = vadd.f32 %v4991, %v4992
        %v4994 = vrot.slane %v4993, 2
        %v4995 = vadd.f32 %v4993, %v4994
        %v4996 = vrot.slane %v4995, 1
        %v4997 = vadd.f32 %v4995, %v4996
        %v4998 = vadd.f32 %v4412, %v4976
        %v4999 = vadd.f32 %v4413, %v4983
        %v5000 = vadd.f32 %v4414, %v4990
        %v5001 = vadd.f32 %v4415, %v4997
        %v5002 = vsel %vm176, %v4766, %v4882
        %v5003 = vsel %vm176, %v4767, %v4883
        %v5004 = vsel %vm176, %v4768, %v4884
        %v5005 = vsel %vm176, %v4769, %v4885
        %vm5006 = vcmask 1041408
        %v5007 = vsel %vm5006, %v5002, %v4998
        %v5008 = vsel %vm5006, %v5003, %v4999
        %v5009 = vsel %vm5006, %v5004, %v5000
        %v5010 = vsel %vm5006, %v5005, %v5001
        %v5015 = vrot.slane %v5008, 4
        %v5016 = vrot.slane %v5010, 4
        %v5017 = vsel %vm601, %v5007, %v5015
        %v5018 = vsel %vm601, %v5009, %v5016
        %v5021 = vadd.f32 %v232, %v5017
        %v5022 = vadd.f32 %v233, %v5018
        %5023 = vst [vmem:[%s143] sm:$0x77] %v5021
        %5024 = vst [vmem:[%s143 + $0x8] sm:$0x77] %v5022
      $region33: #{tpu_custom_call.1} parent=27 // loop_footer
        %s172 = sadd.s32 1, %s168
      $region34: #{tpu_custom_call.1} parent=27 // loop_footer_branch
        %167 = sbr.rel target = $region30
      $region35: #{tpu_custom_call.1} parent=27 // loop_exit
        _
      %p5025 = scmp.lt.s32.totalorder %s13, 1
      %s5026 = scalar_select %p5025, %s13, 1
      %s5027 = smul.addr %s5026, 4
      %s5028 = smul.addr %s5027, 4
      %s5029 = scalar_lea.vmem %s2, %s5028
      // Predicated region
      $region36: #{tpu_custom_call.1} parent=27 // pred_check
        %p5030 = pneg %p78
      $region37: #{tpu_custom_call.1} parent=27 // pred_check_branch
        %5032 = sbr.rel (%p5030) target = $region39
      $region38: #{tpu_custom_call.1} parent=27 // pred_region
        _
      $region39: #{tpu_custom_call.1} parent=27 // pred_fallthru
        _
    $region28: #{tpu_custom_call.1} parent=5 // pred_fallthru
      _
    %p5033 = scmp.le.s32.totalorder 2, %s8
    // Predicated region
    $region40: #{tpu_custom_call.1} parent=5 // pred_check
      %p5034 = pneg %p5033
    $region41: #{tpu_custom_call.1} parent=5 // pred_check_branch
      %5036 = sbr.rel (%p5034) target = $region43
    $region42: #{tpu_custom_call.1} parent=5 // pred_region
      %s5037 = ssub.s32 %s8, 2
      // Predicated region
      $region44: #{tpu_custom_call.1} parent=42 // pred_check
        %p5038 = pneg %p84
      $region45: #{tpu_custom_call.1} parent=42 // pred_check_branch
        %5040 = sbr.rel (%p5038) target = $region47
      $region46: #{tpu_custom_call.1} parent=42 // pred_region
        %p5041 = scmp.lt.s32.totalorder %s14, 1
        %s5042 = scalar_select %p5041, %s14, 1
        %s5043 = smul.addr %s5042, 4
        %s5044 = smul.addr %s5043, 4
        %s5045 = scalar_lea.vmem %s2, %s5044
      $region47: #{tpu_custom_call.1} parent=42 // pred_fallthru
        _
    $region43: #{tpu_custom_call.1} parent=5 // pred_fallthru
      _
  $region6: #{tpu_custom_call.1} parent=0 // loop_footer
    %s12 = sadd.s32 1, %s8
  $region7: #{tpu_custom_call.1} parent=0 // loop_footer_branch
    %7 = sbr.rel target = $region3
  $region8: #{tpu_custom_call.1} parent=0 // loop_exit
    _

</llo_original>
